<compile_context>
chip_gen: v7x
topology: tpu7x:2x2x1
jax: 0.10.0
libtpu: 0.0.40
codegen_flags: <defaults>
</compile_context>

<pallas_src>
import jax
import jax.numpy as jnp
from jax import lax
from jax.experimental import pallas as pl
from jax.experimental.pallas import tpu as pltpu


# ----------------------------------------------------------------------------
# Static tap table for the fused upsample+conv.
#
# For output pixel (2i+a, 2j+b) of conv(nearest_x2(x)), the 3x3 taps collapse
# onto the original grid:
#   row parity a=0: input rows {i-1, i}   with weights {w[0], w[1]+w[2]}
#   row parity a=1: input rows {i, i+1}   with weights {w[0]+w[1], w[2]}
# (and the same along columns with b).  So each parity is an exact 2x2-tap
# conv over x with host-pre-fused weights.  The table maps each input shift
# (dy, dx) to the (parity index p=2a+b, fused-weight index) pairs using it.
# ----------------------------------------------------------------------------
def _build_shift_users():
    users = {}
    for a in (0, 1):
        for b in (0, 1):
            for ty in (0, 1):
                for tx in (0, 1):
                    dy, dx = ty - 1 + a, tx - 1 + b
                    p = 2 * a + b
                    widx = ((a * 2 + b) * 2 + ty) * 2 + tx
                    users.setdefault((dy, dx), []).append((p, widx))
    return users


_SHIFT_USERS = _build_shift_users()   # 9 shifts, 16 (parity, weight) users total


def _fuse_upsample_weights(w_hwio):
    """(3,3,Cin,Cout) HWIO -> (16,Cin,Cout) bf16 fused weights, index ((a*2+b)*2+ty)*2+tx."""
    # parity 0 (even outputs): offsets (-1, 0) combine taps {0} and {1,2}
    # parity 1 (odd outputs):  offsets (0, +1) combine taps {0,1} and {2}
    m = jnp.array([[[1., 0., 0.], [0., 1., 1.]],
                   [[1., 1., 0.], [0., 0., 1.]]], dtype=jnp.float32)
    # Round base weights to bf16 first (matches the reference bf16 conv path),
    # fuse exactly in f32, then a single final bf16 rounding.
    wq = w_hwio.astype(jnp.bfloat16).astype(jnp.float32)
    wf = jnp.einsum('aik,bjl,klcd->abijcd', m, m, wq)
    cin, cout = w_hwio.shape[2], w_hwio.shape[3]
    return wf.reshape(16, cin, cout).astype(jnp.bfloat16)


# ----------------------------------------------------------------------------
# Exact-ish GELU (PyTorch default F.gelu is erf based).
# ----------------------------------------------------------------------------
def _erf(x):
    a1, a2, a3, a4, a5 = 0.254829592, -0.284496736, 1.421413741, -1.453152027, 1.061405429
    p = 0.3275911
    sgn = jnp.where(x >= 0.0, 1.0, -1.0)
    ax = jnp.abs(x)
    t = pl.reciprocal(1.0 + p * ax, approx=True)          # EUP, off the VALU
    poly = ((((a5 * t + a4) * t + a3) * t + a2) * t + a1) * t
    return sgn * (1.0 - poly * jnp.exp(-ax * ax))          # exp -> EUP


def _gelu(x):
    return 0.5 * x * (1.0 + _erf(x * 0.7071067811865476))


# ----------------------------------------------------------------------------
# Fused kernel: nearest-x2 upsample + 3x3 conv + bias + GELU, one batch element
# per grid step.  xp is the 1-px zero-padded original-resolution input.
# Output layout: (1, 4, H, W, Cout), parity p = 2a + b holds y[2i+a, 2j+b].
# ----------------------------------------------------------------------------
def _upsample_conv_gelu_kernel(xp_ref, wf_ref, b_ref, out_ref, acc_ref):
    cin = xp_ref.shape[-1]
    _, _, H, W, cout = out_ref.shape

    written = set()                       # trace-time bookkeeping (static loop)
    for (dy, dx), users in _SHIFT_USERS.items():
        xs = xp_ref[:, 1 + dy:1 + dy + H, 1 + dx:1 + dx + W, :]
        xs = xs.reshape(H * W, cin).astype(jnp.bfloat16)       # bf16 MXU feed
        for p, widx in users:
            contrib = jnp.dot(xs, wf_ref[widx],
                              preferred_element_type=jnp.float32)
            if p in written:
                acc_ref[p] = acc_ref[p] + contrib              # f32 VMEM accum
            else:
                acc_ref[p] = contrib
                written.add(p)

    bias = b_ref[...]                                          # (1, Cout) f32
    for p in range(4):
        y = _gelu(acc_ref[p] + bias)
        out_ref[0, p] = y.reshape(H, W, cout).astype(out_ref.dtype)


def upsample_block_forward(x_nchw, w_oihw, bias):
    """UpsampleBlock forward.  x: NCHW, w: (Cout, Cin, 3, 3) like nn.Conv2d, bias: (Cout,)."""
    B, Cin, H, W = x_nchw.shape
    Cout = w_oihw.shape[0]
    w_hwio = jnp.transpose(w_oihw, (2, 3, 1, 0))               # (3,3,Cin,Cout)
    wf = _fuse_upsample_weights(w_hwio)                        # (16,Cin,Cout) bf16

    x = jnp.transpose(x_nchw, (0, 2, 3, 1))                    # NCHW -> NHWC (glue)
    xp = jnp.pad(x, ((0, 0), (1, 1), (1, 1), (0, 0)))          # 1-px halo on the SMALL tensor

    out = pl.pallas_call(
        _upsample_conv_gelu_kernel,
        out_shape=jax.ShapeDtypeStruct((B, 4, H, W, Cout), x.dtype),
        grid=(B,),
        in_specs=[
            pl.BlockSpec((1, H + 2, W + 2, Cin), lambda n: (n, 0, 0, 0)),
            pl.BlockSpec((16, Cin, Cout), lambda n: (0, 0, 0)),
            pl.BlockSpec((1, Cout), lambda n: (0, 0)),
        ],
        out_specs=pl.BlockSpec((1, 4, H, W, Cout), lambda n: (n, 0, 0, 0, 0)),
        scratch_shapes=[pltpu.VMEM((4, H * W, Cout), jnp.float32)],
        compiler_params=pltpu.CompilerParams(dimension_semantics=("parallel",)),
    )(xp, wf, bias.reshape(1, Cout).astype(jnp.float32))

    # De-interleave the 4 parity sub-images and return NCHW in one transpose
    # (this transpose was required anyway for the NCHW module contract).
    y = out.reshape(B, 2, 2, H, W, Cout)                       # (B, a, b, i, j, c)
    y = jnp.transpose(y, (0, 5, 3, 1, 4, 2))                   # (B, c, i, a, j, b)
    return y.reshape(B, Cout, 2 * H, 2 * W)


# ----------------------------------------------------------------------------
# Pure-JAX reference (precision-matched: bf16 conv operands, f32 accumulation,
# erf GELU) for checking the fused-kernel math.
# ----------------------------------------------------------------------------
def _ref_upsample_block(x_nchw, w_oihw, bias):
    w_hwio = jnp.transpose(w_oihw, (2, 3, 1, 0))
    x = jnp.transpose(x_nchw, (0, 2, 3, 1))
    u = jnp.repeat(jnp.repeat(x, 2, axis=1), 2, axis=2)
    o = lax.conv_general_dilated(
        u.astype(jnp.bfloat16), w_hwio.astype(jnp.bfloat16),
        window_strides=(1, 1), padding=((1, 1), (1, 1)),
        dimension_numbers=("NHWC", "HWIO", "NHWC"),
        preferred_element_type=jnp.float32)
    o = o + bias.reshape(1, 1, 1, -1)
    o = jax.nn.gelu(o, approximate=False)
    return jnp.transpose(o, (0, 3, 1, 2))


if __name__ == "__main__":
    # Small shapes consistent with the module: embedding_channels E=256 so the
    # kernel's output channel dim (E//2 = 128) is a full 128-lane store.
    B, E, H, W = 2, 256, 8, 8
    E2 = E // 2

    key = jax.random.PRNGKey(0)
    kx, kw, kb = jax.random.split(key, 3)
    x = jax.random.normal(kx, (B, E, H, W), jnp.float32)            # NCHW like PyTorch
    w = jax.random.normal(kw, (E2, E, 3, 3), jnp.float32) * 0.05    # OIHW like nn.Conv2d
    b = jax.random.normal(kb, (E2,), jnp.float32) * 0.05

    out = jax.jit(upsample_block_forward)(x, w, b)
    out = jax.block_until_ready(out)
    assert out.shape == (B, E2, 2 * H, 2 * W), out.shape
    assert bool(jnp.all(jnp.isfinite(out)))

    ref = _ref_upsample_block(x, w, b)
    # Tolerance is sized for the bf16 MXU path (weight pre-fusion rounds sums of
    # bf16 weights once more than the reference does); an indexing / parity bug
    # would produce O(1) errors, far outside this band.
    assert bool(jnp.allclose(out, ref, atol=3e-2, rtol=3e-2)), \
        float(jnp.max(jnp.abs(out - ref)))

    print("KERNEL_OK")
</pallas_src>

<mosaic_0001>
module attributes {stable_mosaic.version = 11 : i64} {
  func.func @_upsample_conv_gelu_kernel(%arg0: i32, %arg1: memref<1x10x10x256xf32, #tpu.memory_space<vmem>>, %arg2: memref<16x256x128xbf16, #tpu.memory_space<vmem>>, %arg3: memref<1x128xf32, #tpu.memory_space<vmem>>, %arg4: memref<1x4x8x8x128xf32, #tpu.memory_space<vmem>>, %arg5: memref<4x64x128xf32, #tpu.memory_space<vmem>>) attributes {dimension_semantics = [#tpu.dimension_semantics<parallel>], iteration_bounds = array<i64: 2>, scalar_prefetch = 0 : i64, scratch_operands = 1 : i64, tpu.core_type = #tpu.core_type<tc>, window_params = [{transform_indices = @transform_0, window_bounds = array<i64: 1, 10, 10, 256>}, {pipeline_mode = #tpu.pipeline_mode<synchronous>, transform_indices = @transform_1, window_bounds = array<i64: 16, 256, 128>}, {pipeline_mode = #tpu.pipeline_mode<synchronous>, transform_indices = @transform_2, window_bounds = array<i64: 1, 128>}, {transform_indices = @transform_3, window_bounds = array<i64: 1, 4, 8, 8, 128>}]} {
    %c0 = arith.constant 0 : index
    %c0_0 = arith.constant 0 : index
    %c0_1 = arith.constant 0 : index
    %c0_2 = arith.constant 0 : index
    %0 = vector.load %arg1[%c0, %c0_0, %c0_1, %c0_2] : memref<1x10x10x256xf32, #tpu.memory_space<vmem>>, vector<1x8x8x256xf32>
    %1 = vector.shape_cast %0 : vector<1x8x8x256xf32> to vector<64x256xf32>
    %2 = arith.truncf %1 : vector<64x256xf32> to vector<64x256xbf16>
    %c0_3 = arith.constant 0 : index
    %c0_4 = arith.constant 0 : index
    %c0_5 = arith.constant 0 : index
    %3 = vector.load %arg2[%c0_3, %c0_4, %c0_5] : memref<16x256x128xbf16, #tpu.memory_space<vmem>>, vector<1x256x128xbf16>
    %4 = vector.shape_cast %3 : vector<1x256x128xbf16> to vector<256x128xbf16>
    %cst = arith.constant dense<0.000000e+00> : vector<64x128xf32>
    %5 = tpu.matmul %2, %4, %cst {dimension_numbers = #tpu.dot_dimension_numbers<[1], [0], [0], [1], [0, 0, 1, 1], [], []>} : vector<64x256xbf16>, vector<256x128xbf16>, vector<64x128xf32> -> vector<64x128xf32>
    %c0_6 = arith.constant 0 : index
    %c0_7 = arith.constant 0 : index
    %c0_8 = arith.constant 0 : index
    %6 = vector.load %arg5[%c0_6, %c0_7, %c0_8] : memref<4x64x128xf32, #tpu.memory_space<vmem>>, vector<1x64x128xf32>
    %7 = vector.shape_cast %6 : vector<1x64x128xf32> to vector<64x128xf32>
    %8 = vector.shape_cast %5 : vector<64x128xf32> to vector<1x64x128xf32>
    tpu.vector_store %arg5[%c0_6, %c0_7, %c0_8], %8 {strides = array<i32>} : memref<4x64x128xf32, #tpu.memory_space<vmem>>, vector<1x64x128xf32>,
    %c0_9 = arith.constant 0 : index
    %c0_10 = arith.constant 0 : index
    %c1 = arith.constant 1 : index
    %c0_11 = arith.constant 0 : index
    %9 = vector.load %arg1[%c0_9, %c0_10, %c1, %c0_11] : memref<1x10x10x256xf32, #tpu.memory_space<vmem>>, vector<1x8x8x256xf32>
    %10 = vector.shape_cast %9 : vector<1x8x8x256xf32> to vector<64x256xf32>
    %11 = arith.truncf %10 : vector<64x256xf32> to vector<64x256xbf16>
    %c1_12 = arith.constant 1 : index
    %c0_13 = arith.constant 0 : index
    %c0_14 = arith.constant 0 : index
    %12 = vector.load %arg2[%c1_12, %c0_13, %c0_14] : memref<16x256x128xbf16, #tpu.memory_space<vmem>>, vector<1x256x128xbf16>
    %13 = vector.shape_cast %12 : vector<1x256x128xbf16> to vector<256x128xbf16>
    %cst_15 = arith.constant dense<0.000000e+00> : vector<64x128xf32>
    %14 = tpu.matmul %11, %13, %cst_15 {dimension_numbers = #tpu.dot_dimension_numbers<[1], [0], [0], [1], [0, 0, 1, 1], [], []>} : vector<64x256xbf16>, vector<256x128xbf16>, vector<64x128xf32> -> vector<64x128xf32>
    %c0_16 = arith.constant 0 : index
    %c0_17 = arith.constant 0 : index
    %c0_18 = arith.constant 0 : index
    %15 = vector.load %arg5[%c0_16, %c0_17, %c0_18] : memref<4x64x128xf32, #tpu.memory_space<vmem>>, vector<1x64x128xf32>
    %16 = vector.shape_cast %15 : vector<1x64x128xf32> to vector<64x128xf32>
    %17 = arith.addf %16, %14 : vector<64x128xf32>
    %c0_19 = arith.constant 0 : index
    %c0_20 = arith.constant 0 : index
    %c0_21 = arith.constant 0 : index
    %18 = vector.load %arg5[%c0_19, %c0_20, %c0_21] : memref<4x64x128xf32, #tpu.memory_space<vmem>>, vector<1x64x128xf32>
    %19 = vector.shape_cast %18 : vector<1x64x128xf32> to vector<64x128xf32>
    %20 = vector.shape_cast %17 : vector<64x128xf32> to vector<1x64x128xf32>
    tpu.vector_store %arg5[%c0_19, %c0_20, %c0_21], %20 {strides = array<i32>} : memref<4x64x128xf32, #tpu.memory_space<vmem>>, vector<1x64x128xf32>,
    %c4 = arith.constant 4 : index
    %c0_22 = arith.constant 0 : index
    %c0_23 = arith.constant 0 : index
    %21 = vector.load %arg2[%c4, %c0_22, %c0_23] : memref<16x256x128xbf16, #tpu.memory_space<vmem>>, vector<1x256x128xbf16>
    %22 = vector.shape_cast %21 : vector<1x256x128xbf16> to vector<256x128xbf16>
    %cst_24 = arith.constant dense<0.000000e+00> : vector<64x128xf32>
    %23 = tpu.matmul %11, %22, %cst_24 {dimension_numbers = #tpu.dot_dimension_numbers<[1], [0], [0], [1], [0, 0, 1, 1], [], []>} : vector<64x256xbf16>, vector<256x128xbf16>, vector<64x128xf32> -> vector<64x128xf32>
    %c1_25 = arith.constant 1 : index
    %c0_26 = arith.constant 0 : index
    %c0_27 = arith.constant 0 : index
    %24 = vector.load %arg5[%c1_25, %c0_26, %c0_27] : memref<4x64x128xf32, #tpu.memory_space<vmem>>, vector<1x64x128xf32>
    %25 = vector.shape_cast %24 : vector<1x64x128xf32> to vector<64x128xf32>
    %26 = vector.shape_cast %23 : vector<64x128xf32> to vector<1x64x128xf32>
    tpu.vector_store %arg5[%c1_25, %c0_26, %c0_27], %26 {strides = array<i32>} : memref<4x64x128xf32, #tpu.memory_space<vmem>>, vector<1x64x128xf32>,
    %c0_28 = arith.constant 0 : index
    %c1_29 = arith.constant 1 : index
    %c0_30 = arith.constant 0 : index
    %c0_31 = arith.constant 0 : index
    %27 = vector.load %arg1[%c0_28, %c1_29, %c0_30, %c0_31] : memref<1x10x10x256xf32, #tpu.memory_space<vmem>>, vector<1x8x8x256xf32>
    %28 = vector.shape_cast %27 : vector<1x8x8x256xf32> to vector<64x256xf32>
    %29 = arith.truncf %28 : vector<64x256xf32> to vector<64x256xbf16>
    %c2 = arith.constant 2 : index
    %c0_32 = arith.constant 0 : index
    %c0_33 = arith.constant 0 : index
    %30 = vector.load %arg2[%c2, %c0_32, %c0_33] : memref<16x256x128xbf16, #tpu.memory_space<vmem>>, vector<1x256x128xbf16>
    %31 = vector.shape_cast %30 : vector<1x256x128xbf16> to vector<256x128xbf16>
    %cst_34 = arith.constant dense<0.000000e+00> : vector<64x128xf32>
    %32 = tpu.matmul %29, %31, %cst_34 {dimension_numbers = #tpu.dot_dimension_numbers<[1], [0], [0], [1], [0, 0, 1, 1], [], []>} : vector<64x256xbf16>, vector<256x128xbf16>, vector<64x128xf32> -> vector<64x128xf32>
    %c0_35 = arith.constant 0 : index
    %c0_36 = arith.constant 0 : index
    %c0_37 = arith.constant 0 : index
    %33 = vector.load %arg5[%c0_35, %c0_36, %c0_37] : memref<4x64x128xf32, #tpu.memory_space<vmem>>, vector<1x64x128xf32>
    %34 = vector.shape_cast %33 : vector<1x64x128xf32> to vector<64x128xf32>
    %35 = arith.addf %34, %32 : vector<64x128xf32>
    %c0_38 = arith.constant 0 : index
    %c0_39 = arith.constant 0 : index
    %c0_40 = arith.constant 0 : index
    %36 = vector.load %arg5[%c0_38, %c0_39, %c0_40] : memref<4x64x128xf32, #tpu.memory_space<vmem>>, vector<1x64x128xf32>
    %37 = vector.shape_cast %36 : vector<1x64x128xf32> to vector<64x128xf32>
    %38 = vector.shape_cast %35 : vector<64x128xf32> to vector<1x64x128xf32>
    tpu.vector_store %arg5[%c0_38, %c0_39, %c0_40], %38 {strides = array<i32>} : memref<4x64x128xf32, #tpu.memory_space<vmem>>, vector<1x64x128xf32>,
    %c8 = arith.constant 8 : index
    %c0_41 = arith.constant 0 : index
    %c0_42 = arith.constant 0 : index
    %39 = vector.load %arg2[%c8, %c0_41, %c0_42] : memref<16x256x128xbf16, #tpu.memory_space<vmem>>, vector<1x256x128xbf16>
    %40 = vector.shape_cast %39 : vector<1x256x128xbf16> to vector<256x128xbf16>
    %cst_43 = arith.constant dense<0.000000e+00> : vector<64x128xf32>
    %41 = tpu.matmul %29, %40, %cst_43 {dimension_numbers = #tpu.dot_dimension_numbers<[1], [0], [0], [1], [0, 0, 1, 1], [], []>} : vector<64x256xbf16>, vector<256x128xbf16>, vector<64x128xf32> -> vector<64x128xf32>
    %c2_44 = arith.constant 2 : index
    %c0_45 = arith.constant 0 : index
    %c0_46 = arith.constant 0 : index
    %42 = vector.load %arg5[%c2_44, %c0_45, %c0_46] : memref<4x64x128xf32, #tpu.memory_space<vmem>>, vector<1x64x128xf32>
    %43 = vector.shape_cast %42 : vector<1x64x128xf32> to vector<64x128xf32>
    %44 = vector.shape_cast %41 : vector<64x128xf32> to vector<1x64x128xf32>
    tpu.vector_store %arg5[%c2_44, %c0_45, %c0_46], %44 {strides = array<i32>} : memref<4x64x128xf32, #tpu.memory_space<vmem>>, vector<1x64x128xf32>,
    %c0_47 = arith.constant 0 : index
    %c1_48 = arith.constant 1 : index
    %c1_49 = arith.constant 1 : index
    %c0_50 = arith.constant 0 : index
    %45 = vector.load %arg1[%c0_47, %c1_48, %c1_49, %c0_50] : memref<1x10x10x256xf32, #tpu.memory_space<vmem>>, vector<1x8x8x256xf32>
    %46 = vector.shape_cast %45 : vector<1x8x8x256xf32> to vector<64x256xf32>
    %47 = arith.truncf %46 : vector<64x256xf32> to vector<64x256xbf16>
    %c3 = arith.constant 3 : index
    %c0_51 = arith.constant 0 : index
    %c0_52 = arith.constant 0 : index
    %48 = vector.load %arg2[%c3, %c0_51, %c0_52] : memref<16x256x128xbf16, #tpu.memory_space<vmem>>, vector<1x256x128xbf16>
    %49 = vector.shape_cast %48 : vector<1x256x128xbf16> to vector<256x128xbf16>
    %cst_53 = arith.constant dense<0.000000e+00> : vector<64x128xf32>
    %50 = tpu.matmul %47, %49, %cst_53 {dimension_numbers = #tpu.dot_dimension_numbers<[1], [0], [0], [1], [0, 0, 1, 1], [], []>} : vector<64x256xbf16>, vector<256x128xbf16>, vector<64x128xf32> -> vector<64x128xf32>
    %c0_54 = arith.constant 0 : index
    %c0_55 = arith.constant 0 : index
    %c0_56 = arith.constant 0 : index
    %51 = vector.load %arg5[%c0_54, %c0_55, %c0_56] : memref<4x64x128xf32, #tpu.memory_space<vmem>>, vector<1x64x128xf32>
    %52 = vector.shape_cast %51 : vector<1x64x128xf32> to vector<64x128xf32>
    %53 = arith.addf %52, %50 : vector<64x128xf32>
    %c0_57 = arith.constant 0 : index
    %c0_58 = arith.constant 0 : index
    %c0_59 = arith.constant 0 : index
    %54 = vector.load %arg5[%c0_57, %c0_58, %c0_59] : memref<4x64x128xf32, #tpu.memory_space<vmem>>, vector<1x64x128xf32>
    %55 = vector.shape_cast %54 : vector<1x64x128xf32> to vector<64x128xf32>
    %56 = vector.shape_cast %53 : vector<64x128xf32> to vector<1x64x128xf32>
    tpu.vector_store %arg5[%c0_57, %c0_58, %c0_59], %56 {strides = array<i32>} : memref<4x64x128xf32, #tpu.memory_space<vmem>>, vector<1x64x128xf32>,
    %c6 = arith.constant 6 : index
    %c0_60 = arith.constant 0 : index
    %c0_61 = arith.constant 0 : index
    %57 = vector.load %arg2[%c6, %c0_60, %c0_61] : memref<16x256x128xbf16, #tpu.memory_space<vmem>>, vector<1x256x128xbf16>
    %58 = vector.shape_cast %57 : vector<1x256x128xbf16> to vector<256x128xbf16>
    %cst_62 = arith.constant dense<0.000000e+00> : vector<64x128xf32>
    %59 = tpu.matmul %47, %58, %cst_62 {dimension_numbers = #tpu.dot_dimension_numbers<[1], [0], [0], [1], [0, 0, 1, 1], [], []>} : vector<64x256xbf16>, vector<256x128xbf16>, vector<64x128xf32> -> vector<64x128xf32>
    %c1_63 = arith.constant 1 : index
    %c0_64 = arith.constant 0 : index
    %c0_65 = arith.constant 0 : index
    %60 = vector.load %arg5[%c1_63, %c0_64, %c0_65] : memref<4x64x128xf32, #tpu.memory_space<vmem>>, vector<1x64x128xf32>
    %61 = vector.shape_cast %60 : vector<1x64x128xf32> to vector<64x128xf32>
    %62 = arith.addf %61, %59 : vector<64x128xf32>
    %c1_66 = arith.constant 1 : index
    %c0_67 = arith.constant 0 : index
    %c0_68 = arith.constant 0 : index
    %63 = vector.load %arg5[%c1_66, %c0_67, %c0_68] : memref<4x64x128xf32, #tpu.memory_space<vmem>>, vector<1x64x128xf32>
    %64 = vector.shape_cast %63 : vector<1x64x128xf32> to vector<64x128xf32>
    %65 = vector.shape_cast %62 : vector<64x128xf32> to vector<1x64x128xf32>
    tpu.vector_store %arg5[%c1_66, %c0_67, %c0_68], %65 {strides = array<i32>} : memref<4x64x128xf32, #tpu.memory_space<vmem>>, vector<1x64x128xf32>,
    %c9 = arith.constant 9 : index
    %c0_69 = arith.constant 0 : index
    %c0_70 = arith.constant 0 : index
    %66 = vector.load %arg2[%c9, %c0_69, %c0_70] : memref<16x256x128xbf16, #tpu.memory_space<vmem>>, vector<1x256x128xbf16>
    %67 = vector.shape_cast %66 : vector<1x256x128xbf16> to vector<256x128xbf16>
    %cst_71 = arith.constant dense<0.000000e+00> : vector<64x128xf32>
    %68 = tpu.matmul %47, %67, %cst_71 {dimension_numbers = #tpu.dot_dimension_numbers<[1], [0], [0], [1], [0, 0, 1, 1], [], []>} : vector<64x256xbf16>, vector<256x128xbf16>, vector<64x128xf32> -> vector<64x128xf32>
    %c2_72 = arith.constant 2 : index
    %c0_73 = arith.constant 0 : index
    %c0_74 = arith.constant 0 : index
    %69 = vector.load %arg5[%c2_72, %c0_73, %c0_74] : memref<4x64x128xf32, #tpu.memory_space<vmem>>, vector<1x64x128xf32>
    %70 = vector.shape_cast %69 : vector<1x64x128xf32> to vector<64x128xf32>
    %71 = arith.addf %70, %68 : vector<64x128xf32>
    %c2_75 = arith.constant 2 : index
    %c0_76 = arith.constant 0 : index
    %c0_77 = arith.constant 0 : index
    %72 = vector.load %arg5[%c2_75, %c0_76, %c0_77] : memref<4x64x128xf32, #tpu.memory_space<vmem>>, vector<1x64x128xf32>
    %73 = vector.shape_cast %72 : vector<1x64x128xf32> to vector<64x128xf32>
    %74 = vector.shape_cast %71 : vector<64x128xf32> to vector<1x64x128xf32>
    tpu.vector_store %arg5[%c2_75, %c0_76, %c0_77], %74 {strides = array<i32>} : memref<4x64x128xf32, #tpu.memory_space<vmem>>, vector<1x64x128xf32>,
    %c12 = arith.constant 12 : index
    %c0_78 = arith.constant 0 : index
    %c0_79 = arith.constant 0 : index
    %75 = vector.load %arg2[%c12, %c0_78, %c0_79] : memref<16x256x128xbf16, #tpu.memory_space<vmem>>, vector<1x256x128xbf16>
    %76 = vector.shape_cast %75 : vector<1x256x128xbf16> to vector<256x128xbf16>
    %cst_80 = arith.constant dense<0.000000e+00> : vector<64x128xf32>
    %77 = tpu.matmul %47, %76, %cst_80 {dimension_numbers = #tpu.dot_dimension_numbers<[1], [0], [0], [1], [0, 0, 1, 1], [], []>} : vector<64x256xbf16>, vector<256x128xbf16>, vector<64x128xf32> -> vector<64x128xf32>
    %c3_81 = arith.constant 3 : index
    %c0_82 = arith.constant 0 : index
    %c0_83 = arith.constant 0 : index
    %78 = vector.load %arg5[%c3_81, %c0_82, %c0_83] : memref<4x64x128xf32, #tpu.memory_space<vmem>>, vector<1x64x128xf32>
    %79 = vector.shape_cast %78 : vector<1x64x128xf32> to vector<64x128xf32>
    %80 = vector.shape_cast %77 : vector<64x128xf32> to vector<1x64x128xf32>
    tpu.vector_store %arg5[%c3_81, %c0_82, %c0_83], %80 {strides = array<i32>} : memref<4x64x128xf32, #tpu.memory_space<vmem>>, vector<1x64x128xf32>,
    %c0_84 = arith.constant 0 : index
    %c0_85 = arith.constant 0 : index
    %c2_86 = arith.constant 2 : index
    %c0_87 = arith.constant 0 : index
    %81 = vector.load %arg1[%c0_84, %c0_85, %c2_86, %c0_87] : memref<1x10x10x256xf32, #tpu.memory_space<vmem>>, vector<1x8x8x256xf32>
    %82 = vector.shape_cast %81 : vector<1x8x8x256xf32> to vector<64x256xf32>
    %83 = arith.truncf %82 : vector<64x256xf32> to vector<64x256xbf16>
    %c5 = arith.constant 5 : index
    %c0_88 = arith.constant 0 : index
    %c0_89 = arith.constant 0 : index
    %84 = vector.load %arg2[%c5, %c0_88, %c0_89] : memref<16x256x128xbf16, #tpu.memory_space<vmem>>, vector<1x256x128xbf16>
    %85 = vector.shape_cast %84 : vector<1x256x128xbf16> to vector<256x128xbf16>
    %cst_90 = arith.constant dense<0.000000e+00> : vector<64x128xf32>
    %86 = tpu.matmul %83, %85, %cst_90 {dimension_numbers = #tpu.dot_dimension_numbers<[1], [0], [0], [1], [0, 0, 1, 1], [], []>} : vector<64x256xbf16>, vector<256x128xbf16>, vector<64x128xf32> -> vector<64x128xf32>
    %c1_91 = arith.constant 1 : index
    %c0_92 = arith.constant 0 : index
    %c0_93 = arith.constant 0 : index
    %87 = vector.load %arg5[%c1_91, %c0_92, %c0_93] : memref<4x64x128xf32, #tpu.memory_space<vmem>>, vector<1x64x128xf32>
    %88 = vector.shape_cast %87 : vector<1x64x128xf32> to vector<64x128xf32>
    %89 = arith.addf %88, %86 : vector<64x128xf32>
    %c1_94 = arith.constant 1 : index
    %c0_95 = arith.constant 0 : index
    %c0_96 = arith.constant 0 : index
    %90 = vector.load %arg5[%c1_94, %c0_95, %c0_96] : memref<4x64x128xf32, #tpu.memory_space<vmem>>, vector<1x64x128xf32>
    %91 = vector.shape_cast %90 : vector<1x64x128xf32> to vector<64x128xf32>
    %92 = vector.shape_cast %89 : vector<64x128xf32> to vector<1x64x128xf32>
    tpu.vector_store %arg5[%c1_94, %c0_95, %c0_96], %92 {strides = array<i32>} : memref<4x64x128xf32, #tpu.memory_space<vmem>>, vector<1x64x128xf32>,
    %c0_97 = arith.constant 0 : index
    %c1_98 = arith.constant 1 : index
    %c2_99 = arith.constant 2 : index
    %c0_100 = arith.constant 0 : index
    %93 = vector.load %arg1[%c0_97, %c1_98, %c2_99, %c0_100] : memref<1x10x10x256xf32, #tpu.memory_space<vmem>>, vector<1x8x8x256xf32>
    %94 = vector.shape_cast %93 : vector<1x8x8x256xf32> to vector<64x256xf32>
    %95 = arith.truncf %94 : vector<64x256xf32> to vector<64x256xbf16>
    %c7 = arith.constant 7 : index
    %c0_101 = arith.constant 0 : index
    %c0_102 = arith.constant 0 : index
    %96 = vector.load %arg2[%c7, %c0_101, %c0_102] : memref<16x256x128xbf16, #tpu.memory_space<vmem>>, vector<1x256x128xbf16>
    %97 = vector.shape_cast %96 : vector<1x256x128xbf16> to vector<256x128xbf16>
    %cst_103 = arith.constant dense<0.000000e+00> : vector<64x128xf32>
    %98 = tpu.matmul %95, %97, %cst_103 {dimension_numbers = #tpu.dot_dimension_numbers<[1], [0], [0], [1], [0, 0, 1, 1], [], []>} : vector<64x256xbf16>, vector<256x128xbf16>, vector<64x128xf32> -> vector<64x128xf32>
    %c1_104 = arith.constant 1 : index
    %c0_105 = arith.constant 0 : index
    %c0_106 = arith.constant 0 : index
    %99 = vector.load %arg5[%c1_104, %c0_105, %c0_106] : memref<4x64x128xf32, #tpu.memory_space<vmem>>, vector<1x64x128xf32>
    %100 = vector.shape_cast %99 : vector<1x64x128xf32> to vector<64x128xf32>
    %101 = arith.addf %100, %98 : vector<64x128xf32>
    %c1_107 = arith.constant 1 : index
    %c0_108 = arith.constant 0 : index
    %c0_109 = arith.constant 0 : index
    %102 = vector.load %arg5[%c1_107, %c0_108, %c0_109] : memref<4x64x128xf32, #tpu.memory_space<vmem>>, vector<1x64x128xf32>
    %103 = vector.shape_cast %102 : vector<1x64x128xf32> to vector<64x128xf32>
    %104 = vector.shape_cast %101 : vector<64x128xf32> to vector<1x64x128xf32>
    tpu.vector_store %arg5[%c1_107, %c0_108, %c0_109], %104 {strides = array<i32>} : memref<4x64x128xf32, #tpu.memory_space<vmem>>, vector<1x64x128xf32>,
    %c13 = arith.constant 13 : index
    %c0_110 = arith.constant 0 : index
    %c0_111 = arith.constant 0 : index
    %105 = vector.load %arg2[%c13, %c0_110, %c0_111] : memref<16x256x128xbf16, #tpu.memory_space<vmem>>, vector<1x256x128xbf16>
    %106 = vector.shape_cast %105 : vector<1x256x128xbf16> to vector<256x128xbf16>
    %cst_112 = arith.constant dense<0.000000e+00> : vector<64x128xf32>
    %107 = tpu.matmul %95, %106, %cst_112 {dimension_numbers = #tpu.dot_dimension_numbers<[1], [0], [0], [1], [0, 0, 1, 1], [], []>} : vector<64x256xbf16>, vector<256x128xbf16>, vector<64x128xf32> -> vector<64x128xf32>
    %c3_113 = arith.constant 3 : index
    %c0_114 = arith.constant 0 : index
    %c0_115 = arith.constant 0 : index
    %108 = vector.load %arg5[%c3_113, %c0_114, %c0_115] : memref<4x64x128xf32, #tpu.memory_space<vmem>>, vector<1x64x128xf32>
    %109 = vector.shape_cast %108 : vector<1x64x128xf32> to vector<64x128xf32>
    %110 = arith.addf %109, %107 : vector<64x128xf32>
    %c3_116 = arith.constant 3 : index
    %c0_117 = arith.constant 0 : index
    %c0_118 = arith.constant 0 : index
    %111 = vector.load %arg5[%c3_116, %c0_117, %c0_118] : memref<4x64x128xf32, #tpu.memory_space<vmem>>, vector<1x64x128xf32>
    %112 = vector.shape_cast %111 : vector<1x64x128xf32> to vector<64x128xf32>
    %113 = vector.shape_cast %110 : vector<64x128xf32> to vector<1x64x128xf32>
    tpu.vector_store %arg5[%c3_116, %c0_117, %c0_118], %113 {strides = array<i32>} : memref<4x64x128xf32, #tpu.memory_space<vmem>>, vector<1x64x128xf32>,
    %c0_119 = arith.constant 0 : index
    %c2_120 = arith.constant 2 : index
    %c0_121 = arith.constant 0 : index
    %c0_122 = arith.constant 0 : index
    %114 = vector.load %arg1[%c0_119, %c2_120, %c0_121, %c0_122] : memref<1x10x10x256xf32, #tpu.memory_space<vmem>>, vector<1x8x8x256xf32>
    %115 = vector.shape_cast %114 : vector<1x8x8x256xf32> to vector<64x256xf32>
    %116 = arith.truncf %115 : vector<64x256xf32> to vector<64x256xbf16>
    %c10 = arith.constant 10 : index
    %c0_123 = arith.constant 0 : index
    %c0_124 = arith.constant 0 : index
    %117 = vector.load %arg2[%c10, %c0_123, %c0_124] : memref<16x256x128xbf16, #tpu.memory_space<vmem>>, vector<1x256x128xbf16>
    %118 = vector.shape_cast %117 : vector<1x256x128xbf16> to vector<256x128xbf16>
    %cst_125 = arith.constant dense<0.000000e+00> : vector<64x128xf32>
    %119 = tpu.matmul %116, %118, %cst_125 {dimension_numbers = #tpu.dot_dimension_numbers<[1], [0], [0], [1], [0, 0, 1, 1], [], []>} : vector<64x256xbf16>, vector<256x128xbf16>, vector<64x128xf32> -> vector<64x128xf32>
    %c2_126 = arith.constant 2 : index
    %c0_127 = arith.constant 0 : index
    %c0_128 = arith.constant 0 : index
    %120 = vector.load %arg5[%c2_126, %c0_127, %c0_128] : memref<4x64x128xf32, #tpu.memory_space<vmem>>, vector<1x64x128xf32>
    %121 = vector.shape_cast %120 : vector<1x64x128xf32> to vector<64x128xf32>
    %122 = arith.addf %121, %119 : vector<64x128xf32>
    %c2_129 = arith.constant 2 : index
    %c0_130 = arith.constant 0 : index
    %c0_131 = arith.constant 0 : index
    %123 = vector.load %arg5[%c2_129, %c0_130, %c0_131] : memref<4x64x128xf32, #tpu.memory_space<vmem>>, vector<1x64x128xf32>
    %124 = vector.shape_cast %123 : vector<1x64x128xf32> to vector<64x128xf32>
    %125 = vector.shape_cast %122 : vector<64x128xf32> to vector<1x64x128xf32>
    tpu.vector_store %arg5[%c2_129, %c0_130, %c0_131], %125 {strides = array<i32>} : memref<4x64x128xf32, #tpu.memory_space<vmem>>, vector<1x64x128xf32>,
    %c0_132 = arith.constant 0 : index
    %c2_133 = arith.constant 2 : index
    %c1_134 = arith.constant 1 : index
    %c0_135 = arith.constant 0 : index
    %126 = vector.load %arg1[%c0_132, %c2_133, %c1_134, %c0_135] : memref<1x10x10x256xf32, #tpu.memory_space<vmem>>, vector<1x8x8x256xf32>
    %127 = vector.shape_cast %126 : vector<1x8x8x256xf32> to vector<64x256xf32>
    %128 = arith.truncf %127 : vector<64x256xf32> to vector<64x256xbf16>
    %c11 = arith.constant 11 : index
    %c0_136 = arith.constant 0 : index
    %c0_137 = arith.constant 0 : index
    %129 = vector.load %arg2[%c11, %c0_136, %c0_137] : memref<16x256x128xbf16, #tpu.memory_space<vmem>>, vector<1x256x128xbf16>
    %130 = vector.shape_cast %129 : vector<1x256x128xbf16> to vector<256x128xbf16>
    %cst_138 = arith.constant dense<0.000000e+00> : vector<64x128xf32>
    %131 = tpu.matmul %128, %130, %cst_138 {dimension_numbers = #tpu.dot_dimension_numbers<[1], [0], [0], [1], [0, 0, 1, 1], [], []>} : vector<64x256xbf16>, vector<256x128xbf16>, vector<64x128xf32> -> vector<64x128xf32>
    %c2_139 = arith.constant 2 : index
    %c0_140 = arith.constant 0 : index
    %c0_141 = arith.constant 0 : index
    %132 = vector.load %arg5[%c2_139, %c0_140, %c0_141] : memref<4x64x128xf32, #tpu.memory_space<vmem>>, vector<1x64x128xf32>
    %133 = vector.shape_cast %132 : vector<1x64x128xf32> to vector<64x128xf32>
    %134 = arith.addf %133, %131 : vector<64x128xf32>
    %c2_142 = arith.constant 2 : index
    %c0_143 = arith.constant 0 : index
    %c0_144 = arith.constant 0 : index
    %135 = vector.load %arg5[%c2_142, %c0_143, %c0_144] : memref<4x64x128xf32, #tpu.memory_space<vmem>>, vector<1x64x128xf32>
    %136 = vector.shape_cast %135 : vector<1x64x128xf32> to vector<64x128xf32>
    %137 = vector.shape_cast %134 : vector<64x128xf32> to vector<1x64x128xf32>
    tpu.vector_store %arg5[%c2_142, %c0_143, %c0_144], %137 {strides = array<i32>} : memref<4x64x128xf32, #tpu.memory_space<vmem>>, vector<1x64x128xf32>,
    %c14 = arith.constant 14 : index
    %c0_145 = arith.constant 0 : index
    %c0_146 = arith.constant 0 : index
    %138 = vector.load %arg2[%c14, %c0_145, %c0_146] : memref<16x256x128xbf16, #tpu.memory_space<vmem>>, vector<1x256x128xbf16>
    %139 = vector.shape_cast %138 : vector<1x256x128xbf16> to vector<256x128xbf16>
    %cst_147 = arith.constant dense<0.000000e+00> : vector<64x128xf32>
    %140 = tpu.matmul %128, %139, %cst_147 {dimension_numbers = #tpu.dot_dimension_numbers<[1], [0], [0], [1], [0, 0, 1, 1], [], []>} : vector<64x256xbf16>, vector<256x128xbf16>, vector<64x128xf32> -> vector<64x128xf32>
    %c3_148 = arith.constant 3 : index
    %c0_149 = arith.constant 0 : index
    %c0_150 = arith.constant 0 : index
    %141 = vector.load %arg5[%c3_148, %c0_149, %c0_150] : memref<4x64x128xf32, #tpu.memory_space<vmem>>, vector<1x64x128xf32>
    %142 = vector.shape_cast %141 : vector<1x64x128xf32> to vector<64x128xf32>
    %143 = arith.addf %142, %140 : vector<64x128xf32>
    %c3_151 = arith.constant 3 : index
    %c0_152 = arith.constant 0 : index
    %c0_153 = arith.constant 0 : index
    %144 = vector.load %arg5[%c3_151, %c0_152, %c0_153] : memref<4x64x128xf32, #tpu.memory_space<vmem>>, vector<1x64x128xf32>
    %145 = vector.shape_cast %144 : vector<1x64x128xf32> to vector<64x128xf32>
    %146 = vector.shape_cast %143 : vector<64x128xf32> to vector<1x64x128xf32>
    tpu.vector_store %arg5[%c3_151, %c0_152, %c0_153], %146 {strides = array<i32>} : memref<4x64x128xf32, #tpu.memory_space<vmem>>, vector<1x64x128xf32>,
    %c0_154 = arith.constant 0 : index
    %c2_155 = arith.constant 2 : index
    %c2_156 = arith.constant 2 : index
    %c0_157 = arith.constant 0 : index
    %147 = vector.load %arg1[%c0_154, %c2_155, %c2_156, %c0_157] : memref<1x10x10x256xf32, #tpu.memory_space<vmem>>, vector<1x8x8x256xf32>
    %148 = vector.shape_cast %147 : vector<1x8x8x256xf32> to vector<64x256xf32>
    %149 = arith.truncf %148 : vector<64x256xf32> to vector<64x256xbf16>
    %c15 = arith.constant 15 : index
    %c0_158 = arith.constant 0 : index
    %c0_159 = arith.constant 0 : index
    %150 = vector.load %arg2[%c15, %c0_158, %c0_159] : memref<16x256x128xbf16, #tpu.memory_space<vmem>>, vector<1x256x128xbf16>
    %151 = vector.shape_cast %150 : vector<1x256x128xbf16> to vector<256x128xbf16>
    %cst_160 = arith.constant dense<0.000000e+00> : vector<64x128xf32>
    %152 = tpu.matmul %149, %151, %cst_160 {dimension_numbers = #tpu.dot_dimension_numbers<[1], [0], [0], [1], [0, 0, 1, 1], [], []>} : vector<64x256xbf16>, vector<256x128xbf16>, vector<64x128xf32> -> vector<64x128xf32>
    %c3_161 = arith.constant 3 : index
    %c0_162 = arith.constant 0 : index
    %c0_163 = arith.constant 0 : index
    %153 = vector.load %arg5[%c3_161, %c0_162, %c0_163] : memref<4x64x128xf32, #tpu.memory_space<vmem>>, vector<1x64x128xf32>
    %154 = vector.shape_cast %153 : vector<1x64x128xf32> to vector<64x128xf32>
    %155 = arith.addf %154, %152 : vector<64x128xf32>
    %c3_164 = arith.constant 3 : index
    %c0_165 = arith.constant 0 : index
    %c0_166 = arith.constant 0 : index
    %156 = vector.load %arg5[%c3_164, %c0_165, %c0_166] : memref<4x64x128xf32, #tpu.memory_space<vmem>>, vector<1x64x128xf32>
    %157 = vector.shape_cast %156 : vector<1x64x128xf32> to vector<64x128xf32>
    %158 = vector.shape_cast %155 : vector<64x128xf32> to vector<1x64x128xf32>
    tpu.vector_store %arg5[%c3_164, %c0_165, %c0_166], %158 {strides = array<i32>} : memref<4x64x128xf32, #tpu.memory_space<vmem>>, vector<1x64x128xf32>,
    %c0_167 = arith.constant 0 : index
    %c0_168 = arith.constant 0 : index
    %159 = vector.load %arg3[%c0_167, %c0_168] : memref<1x128xf32, #tpu.memory_space<vmem>>, vector<1x128xf32>
    %c0_169 = arith.constant 0 : index
    %c0_170 = arith.constant 0 : index
    %c0_171 = arith.constant 0 : index
    %160 = vector.load %arg5[%c0_169, %c0_170, %c0_171] : memref<4x64x128xf32, #tpu.memory_space<vmem>>, vector<1x64x128xf32>
    %161 = vector.shape_cast %160 : vector<1x64x128xf32> to vector<64x128xf32>
    %162 = vector.broadcast %159 : vector<1x128xf32> to vector<64x128xf32>
    %163 = arith.addf %161, %162 : vector<64x128xf32>
    %cst_172 = arith.constant 5.000000e-01 : f32
    %164 = vector.broadcast %cst_172 : f32 to vector<64x128xf32>
    %165 = arith.mulf %164, %163 : vector<64x128xf32>
    %cst_173 = arith.constant 0.707106769 : f32
    %166 = vector.broadcast %cst_173 : f32 to vector<64x128xf32>
    %167 = arith.mulf %163, %166 : vector<64x128xf32>
    %cst_174 = arith.constant 0.000000e+00 : f32
    %168 = vector.broadcast %cst_174 : f32 to vector<64x128xf32>
    %169 = arith.cmpf oge, %167, %168 : vector<64x128xf32>
    %cst_175 = arith.constant 1.000000e+00 : f32
    %cst_176 = arith.constant -1.000000e+00 : f32
    %170 = vector.broadcast %cst_175 : f32 to vector<64x128xf32>
    %171 = vector.broadcast %cst_176 : f32 to vector<64x128xf32>
    %172 = arith.select %169, %170, %171 : vector<64x128xi1>, vector<64x128xf32>
    %173 = math.absf %167 : vector<64x128xf32>
    %cst_177 = arith.constant 0.327591091 : f32
    %174 = vector.broadcast %cst_177 : f32 to vector<64x128xf32>
    %175 = arith.mulf %174, %173 : vector<64x128xf32>
    %cst_178 = arith.constant 1.000000e+00 : f32
    %176 = vector.broadcast %cst_178 : f32 to vector<64x128xf32>
    %177 = arith.addf %176, %175 : vector<64x128xf32>
    %178 = tpu.reciprocal %177 {approx = true} : vector<64x128xf32> -> vector<64x128xf32>
    %cst_179 = arith.constant 1.06140542 : f32
    %179 = vector.broadcast %cst_179 : f32 to vector<64x128xf32>
    %180 = arith.mulf %179, %178 : vector<64x128xf32>
    %cst_180 = arith.constant -1.45315206 : f32
    %181 = vector.broadcast %cst_180 : f32 to vector<64x128xf32>
    %182 = arith.addf %180, %181 : vector<64x128xf32>
    %183 = arith.mulf %182, %178 : vector<64x128xf32>
    %cst_181 = arith.constant 1.42141378 : f32
    %184 = vector.broadcast %cst_181 : f32 to vector<64x128xf32>
    %185 = arith.addf %183, %184 : vector<64x128xf32>
    %186 = arith.mulf %185, %178 : vector<64x128xf32>
    %cst_182 = arith.constant -0.284496725 : f32
    %187 = vector.broadcast %cst_182 : f32 to vector<64x128xf32>
    %188 = arith.addf %186, %187 : vector<64x128xf32>
    %189 = arith.mulf %188, %178 : vector<64x128xf32>
    %cst_183 = arith.constant 0.254829586 : f32
    %190 = vector.broadcast %cst_183 : f32 to vector<64x128xf32>
    %191 = arith.addf %189, %190 : vector<64x128xf32>
    %192 = arith.mulf %191, %178 : vector<64x128xf32>
    %cst_184 = arith.constant 0.000000e+00 : f32
    %193 = vector.broadcast %cst_184 : f32 to vector<64x128xf32>
    %194 = arith.subf %193, %173 : vector<64x128xf32>
    %195 = arith.mulf %194, %173 : vector<64x128xf32>
    %196 = math.exp %195 : vector<64x128xf32>
    %197 = arith.mulf %192, %196 : vector<64x128xf32>
    %cst_185 = arith.constant 1.000000e+00 : f32
    %198 = vector.broadcast %cst_185 : f32 to vector<64x128xf32>
    %199 = arith.subf %198, %197 : vector<64x128xf32>
    %200 = arith.mulf %172, %199 : vector<64x128xf32>
    %cst_186 = arith.constant 1.000000e+00 : f32
    %201 = vector.broadcast %cst_186 : f32 to vector<64x128xf32>
    %202 = arith.addf %201, %200 : vector<64x128xf32>
    %203 = arith.mulf %165, %202 : vector<64x128xf32>
    %204 = vector.shape_cast %203 : vector<64x128xf32> to vector<8x8x128xf32>
    %c0_187 = arith.constant 0 : index
    %c0_188 = arith.constant 0 : index
    %c0_189 = arith.constant 0 : index
    %c0_190 = arith.constant 0 : index
    %c0_191 = arith.constant 0 : index
    %205 = vector.load %arg4[%c0_187, %c0_188, %c0_189, %c0_190, %c0_191] : memref<1x4x8x8x128xf32, #tpu.memory_space<vmem>>, vector<1x1x8x8x128xf32>
    %206 = vector.shape_cast %205 : vector<1x1x8x8x128xf32> to vector<8x8x128xf32>
    %207 = vector.shape_cast %204 : vector<8x8x128xf32> to vector<1x1x8x8x128xf32>
    tpu.vector_store %arg4[%c0_187, %c0_188, %c0_189, %c0_190, %c0_191], %207 {strides = array<i32>} : memref<1x4x8x8x128xf32, #tpu.memory_space<vmem>>, vector<1x1x8x8x128xf32>,
    %c1_192 = arith.constant 1 : index
    %c0_193 = arith.constant 0 : index
    %c0_194 = arith.constant 0 : index
    %208 = vector.load %arg5[%c1_192, %c0_193, %c0_194] : memref<4x64x128xf32, #tpu.memory_space<vmem>>, vector<1x64x128xf32>
    %209 = vector.shape_cast %208 : vector<1x64x128xf32> to vector<64x128xf32>
    %210 = vector.broadcast %159 : vector<1x128xf32> to vector<64x128xf32>
    %211 = arith.addf %209, %210 : vector<64x128xf32>
    %cst_195 = arith.constant 5.000000e-01 : f32
    %212 = vector.broadcast %cst_195 : f32 to vector<64x128xf32>
    %213 = arith.mulf %212, %211 : vector<64x128xf32>
    %cst_196 = arith.constant 0.707106769 : f32
    %214 = vector.broadcast %cst_196 : f32 to vector<64x128xf32>
    %215 = arith.mulf %211, %214 : vector<64x128xf32>
    %cst_197 = arith.constant 0.000000e+00 : f32
    %216 = vector.broadcast %cst_197 : f32 to vector<64x128xf32>
    %217 = arith.cmpf oge, %215, %216 : vector<64x128xf32>
    %cst_198 = arith.constant 1.000000e+00 : f32
    %cst_199 = arith.constant -1.000000e+00 : f32
    %218 = vector.broadcast %cst_198 : f32 to vector<64x128xf32>
    %219 = vector.broadcast %cst_199 : f32 to vector<64x128xf32>
    %220 = arith.select %217, %218, %219 : vector<64x128xi1>, vector<64x128xf32>
    %221 = math.absf %215 : vector<64x128xf32>
    %cst_200 = arith.constant 0.327591091 : f32
    %222 = vector.broadcast %cst_200 : f32 to vector<64x128xf32>
    %223 = arith.mulf %222, %221 : vector<64x128xf32>
    %cst_201 = arith.constant 1.000000e+00 : f32
    %224 = vector.broadcast %cst_201 : f32 to vector<64x128xf32>
    %225 = arith.addf %224, %223 : vector<64x128xf32>
    %226 = tpu.reciprocal %225 {approx = true} : vector<64x128xf32> -> vector<64x128xf32>
    %cst_202 = arith.constant 1.06140542 : f32
    %227 = vector.broadcast %cst_202 : f32 to vector<64x128xf32>
    %228 = arith.mulf %227, %226 : vector<64x128xf32>
    %cst_203 = arith.constant -1.45315206 : f32
    %229 = vector.broadcast %cst_203 : f32 to vector<64x128xf32>
    %230 = arith.addf %228, %229 : vector<64x128xf32>
    %231 = arith.mulf %230, %226 : vector<64x128xf32>
    %cst_204 = arith.constant 1.42141378 : f32
    %232 = vector.broadcast %cst_204 : f32 to vector<64x128xf32>
    %233 = arith.addf %231, %232 : vector<64x128xf32>
    %234 = arith.mulf %233, %226 : vector<64x128xf32>
    %cst_205 = arith.constant -0.284496725 : f32
    %235 = vector.broadcast %cst_205 : f32 to vector<64x128xf32>
    %236 = arith.addf %234, %235 : vector<64x128xf32>
    %237 = arith.mulf %236, %226 : vector<64x128xf32>
    %cst_206 = arith.constant 0.254829586 : f32
    %238 = vector.broadcast %cst_206 : f32 to vector<64x128xf32>
    %239 = arith.addf %237, %238 : vector<64x128xf32>
    %240 = arith.mulf %239, %226 : vector<64x128xf32>
    %cst_207 = arith.constant 0.000000e+00 : f32
    %241 = vector.broadcast %cst_207 : f32 to vector<64x128xf32>
    %242 = arith.subf %241, %221 : vector<64x128xf32>
    %243 = arith.mulf %242, %221 : vector<64x128xf32>
    %244 = math.exp %243 : vector<64x128xf32>
    %245 = arith.mulf %240, %244 : vector<64x128xf32>
    %cst_208 = arith.constant 1.000000e+00 : f32
    %246 = vector.broadcast %cst_208 : f32 to vector<64x128xf32>
    %247 = arith.subf %246, %245 : vector<64x128xf32>
    %248 = arith.mulf %220, %247 : vector<64x128xf32>
    %cst_209 = arith.constant 1.000000e+00 : f32
    %249 = vector.broadcast %cst_209 : f32 to vector<64x128xf32>
    %250 = arith.addf %249, %248 : vector<64x128xf32>
    %251 = arith.mulf %213, %250 : vector<64x128xf32>
    %252 = vector.shape_cast %251 : vector<64x128xf32> to vector<8x8x128xf32>
    %c0_210 = arith.constant 0 : index
    %c1_211 = arith.constant 1 : index
    %c0_212 = arith.constant 0 : index
    %c0_213 = arith.constant 0 : index
    %c0_214 = arith.constant 0 : index
    %253 = vector.load %arg4[%c0_210, %c1_211, %c0_212, %c0_213, %c0_214] : memref<1x4x8x8x128xf32, #tpu.memory_space<vmem>>, vector<1x1x8x8x128xf32>
    %254 = vector.shape_cast %253 : vector<1x1x8x8x128xf32> to vector<8x8x128xf32>
    %255 = vector.shape_cast %252 : vector<8x8x128xf32> to vector<1x1x8x8x128xf32>
    tpu.vector_store %arg4[%c0_210, %c1_211, %c0_212, %c0_213, %c0_214], %255 {strides = array<i32>} : memref<1x4x8x8x128xf32, #tpu.memory_space<vmem>>, vector<1x1x8x8x128xf32>,
    %c2_215 = arith.constant 2 : index
    %c0_216 = arith.constant 0 : index
    %c0_217 = arith.constant 0 : index
    %256 = vector.load %arg5[%c2_215, %c0_216, %c0_217] : memref<4x64x128xf32, #tpu.memory_space<vmem>>, vector<1x64x128xf32>
    %257 = vector.shape_cast %256 : vector<1x64x128xf32> to vector<64x128xf32>
    %258 = vector.broadcast %159 : vector<1x128xf32> to vector<64x128xf32>
    %259 = arith.addf %257, %258 : vector<64x128xf32>
    %cst_218 = arith.constant 5.000000e-01 : f32
    %260 = vector.broadcast %cst_218 : f32 to vector<64x128xf32>
    %261 = arith.mulf %260, %259 : vector<64x128xf32>
    %cst_219 = arith.constant 0.707106769 : f32
    %262 = vector.broadcast %cst_219 : f32 to vector<64x128xf32>
    %263 = arith.mulf %259, %262 : vector<64x128xf32>
    %cst_220 = arith.constant 0.000000e+00 : f32
    %264 = vector.broadcast %cst_220 : f32 to vector<64x128xf32>
    %265 = arith.cmpf oge, %263, %264 : vector<64x128xf32>
    %cst_221 = arith.constant 1.000000e+00 : f32
    %cst_222 = arith.constant -1.000000e+00 : f32
    %266 = vector.broadcast %cst_221 : f32 to vector<64x128xf32>
    %267 = vector.broadcast %cst_222 : f32 to vector<64x128xf32>
    %268 = arith.select %265, %266, %267 : vector<64x128xi1>, vector<64x128xf32>
    %269 = math.absf %263 : vector<64x128xf32>
    %cst_223 = arith.constant 0.327591091 : f32
    %270 = vector.broadcast %cst_223 : f32 to vector<64x128xf32>
    %271 = arith.mulf %270, %269 : vector<64x128xf32>
    %cst_224 = arith.constant 1.000000e+00 : f32
    %272 = vector.broadcast %cst_224 : f32 to vector<64x128xf32>
    %273 = arith.addf %272, %271 : vector<64x128xf32>
    %274 = tpu.reciprocal %273 {approx = true} : vector<64x128xf32> -> vector<64x128xf32>
    %cst_225 = arith.constant 1.06140542 : f32
    %275 = vector.broadcast %cst_225 : f32 to vector<64x128xf32>
    %276 = arith.mulf %275, %274 : vector<64x128xf32>
    %cst_226 = arith.constant -1.45315206 : f32
    %277 = vector.broadcast %cst_226 : f32 to vector<64x128xf32>
    %278 = arith.addf %276, %277 : vector<64x128xf32>
    %279 = arith.mulf %278, %274 : vector<64x128xf32>
    %cst_227 = arith.constant 1.42141378 : f32
    %280 = vector.broadcast %cst_227 : f32 to vector<64x128xf32>
    %281 = arith.addf %279, %280 : vector<64x128xf32>
    %282 = arith.mulf %281, %274 : vector<64x128xf32>
    %cst_228 = arith.constant -0.284496725 : f32
    %283 = vector.broadcast %cst_228 : f32 to vector<64x128xf32>
    %284 = arith.addf %282, %283 : vector<64x128xf32>
    %285 = arith.mulf %284, %274 : vector<64x128xf32>
    %cst_229 = arith.constant 0.254829586 : f32
    %286 = vector.broadcast %cst_229 : f32 to vector<64x128xf32>
    %287 = arith.addf %285, %286 : vector<64x128xf32>
    %288 = arith.mulf %287, %274 : vector<64x128xf32>
    %cst_230 = arith.constant 0.000000e+00 : f32
    %289 = vector.broadcast %cst_230 : f32 to vector<64x128xf32>
    %290 = arith.subf %289, %269 : vector<64x128xf32>
    %291 = arith.mulf %290, %269 : vector<64x128xf32>
    %292 = math.exp %291 : vector<64x128xf32>
    %293 = arith.mulf %288, %292 : vector<64x128xf32>
    %cst_231 = arith.constant 1.000000e+00 : f32
    %294 = vector.broadcast %cst_231 : f32 to vector<64x128xf32>
    %295 = arith.subf %294, %293 : vector<64x128xf32>
    %296 = arith.mulf %268, %295 : vector<64x128xf32>
    %cst_232 = arith.constant 1.000000e+00 : f32
    %297 = vector.broadcast %cst_232 : f32 to vector<64x128xf32>
    %298 = arith.addf %297, %296 : vector<64x128xf32>
    %299 = arith.mulf %261, %298 : vector<64x128xf32>
    %300 = vector.shape_cast %299 : vector<64x128xf32> to vector<8x8x128xf32>
    %c0_233 = arith.constant 0 : index
    %c2_234 = arith.constant 2 : index
    %c0_235 = arith.constant 0 : index
    %c0_236 = arith.constant 0 : index
    %c0_237 = arith.constant 0 : index
    %301 = vector.load %arg4[%c0_233, %c2_234, %c0_235, %c0_236, %c0_237] : memref<1x4x8x8x128xf32, #tpu.memory_space<vmem>>, vector<1x1x8x8x128xf32>
    %302 = vector.shape_cast %301 : vector<1x1x8x8x128xf32> to vector<8x8x128xf32>
    %303 = vector.shape_cast %300 : vector<8x8x128xf32> to vector<1x1x8x8x128xf32>
    tpu.vector_store %arg4[%c0_233, %c2_234, %c0_235, %c0_236, %c0_237], %303 {strides = array<i32>} : memref<1x4x8x8x128xf32, #tpu.memory_space<vmem>>, vector<1x1x8x8x128xf32>,
    %c3_238 = arith.constant 3 : index
    %c0_239 = arith.constant 0 : index
    %c0_240 = arith.constant 0 : index
    %304 = vector.load %arg5[%c3_238, %c0_239, %c0_240] : memref<4x64x128xf32, #tpu.memory_space<vmem>>, vector<1x64x128xf32>
    %305 = vector.shape_cast %304 : vector<1x64x128xf32> to vector<64x128xf32>
    %306 = vector.broadcast %159 : vector<1x128xf32> to vector<64x128xf32>
    %307 = arith.addf %305, %306 : vector<64x128xf32>
    %cst_241 = arith.constant 5.000000e-01 : f32
    %308 = vector.broadcast %cst_241 : f32 to vector<64x128xf32>
    %309 = arith.mulf %308, %307 : vector<64x128xf32>
    %cst_242 = arith.constant 0.707106769 : f32
    %310 = vector.broadcast %cst_242 : f32 to vector<64x128xf32>
    %311 = arith.mulf %307, %310 : vector<64x128xf32>
    %cst_243 = arith.constant 0.000000e+00 : f32
    %312 = vector.broadcast %cst_243 : f32 to vector<64x128xf32>
    %313 = arith.cmpf oge, %311, %312 : vector<64x128xf32>
    %cst_244 = arith.constant 1.000000e+00 : f32
    %cst_245 = arith.constant -1.000000e+00 : f32
    %314 = vector.broadcast %cst_244 : f32 to vector<64x128xf32>
    %315 = vector.broadcast %cst_245 : f32 to vector<64x128xf32>
    %316 = arith.select %313, %314, %315 : vector<64x128xi1>, vector<64x128xf32>
    %317 = math.absf %311 : vector<64x128xf32>
    %cst_246 = arith.constant 0.327591091 : f32
    %318 = vector.broadcast %cst_246 : f32 to vector<64x128xf32>
    %319 = arith.mulf %318, %317 : vector<64x128xf32>
    %cst_247 = arith.constant 1.000000e+00 : f32
    %320 = vector.broadcast %cst_247 : f32 to vector<64x128xf32>
    %321 = arith.addf %320, %319 : vector<64x128xf32>
    %322 = tpu.reciprocal %321 {approx = true} : vector<64x128xf32> -> vector<64x128xf32>
    %cst_248 = arith.constant 1.06140542 : f32
    %323 = vector.broadcast %cst_248 : f32 to vector<64x128xf32>
    %324 = arith.mulf %323, %322 : vector<64x128xf32>
    %cst_249 = arith.constant -1.45315206 : f32
    %325 = vector.broadcast %cst_249 : f32 to vector<64x128xf32>
    %326 = arith.addf %324, %325 : vector<64x128xf32>
    %327 = arith.mulf %326, %322 : vector<64x128xf32>
    %cst_250 = arith.constant 1.42141378 : f32
    %328 = vector.broadcast %cst_250 : f32 to vector<64x128xf32>
    %329 = arith.addf %327, %328 : vector<64x128xf32>
    %330 = arith.mulf %329, %322 : vector<64x128xf32>
    %cst_251 = arith.constant -0.284496725 : f32
    %331 = vector.broadcast %cst_251 : f32 to vector<64x128xf32>
    %332 = arith.addf %330, %331 : vector<64x128xf32>
    %333 = arith.mulf %332, %322 : vector<64x128xf32>
    %cst_252 = arith.constant 0.254829586 : f32
    %334 = vector.broadcast %cst_252 : f32 to vector<64x128xf32>
    %335 = arith.addf %333, %334 : vector<64x128xf32>
    %336 = arith.mulf %335, %322 : vector<64x128xf32>
    %cst_253 = arith.constant 0.000000e+00 : f32
    %337 = vector.broadcast %cst_253 : f32 to vector<64x128xf32>
    %338 = arith.subf %337, %317 : vector<64x128xf32>
    %339 = arith.mulf %338, %317 : vector<64x128xf32>
    %340 = math.exp %339 : vector<64x128xf32>
    %341 = arith.mulf %336, %340 : vector<64x128xf32>
    %cst_254 = arith.constant 1.000000e+00 : f32
    %342 = vector.broadcast %cst_254 : f32 to vector<64x128xf32>
    %343 = arith.subf %342, %341 : vector<64x128xf32>
    %344 = arith.mulf %316, %343 : vector<64x128xf32>
    %cst_255 = arith.constant 1.000000e+00 : f32
    %345 = vector.broadcast %cst_255 : f32 to vector<64x128xf32>
    %346 = arith.addf %345, %344 : vector<64x128xf32>
    %347 = arith.mulf %309, %346 : vector<64x128xf32>
    %348 = vector.shape_cast %347 : vector<64x128xf32> to vector<8x8x128xf32>
    %c0_256 = arith.constant 0 : index
    %c3_257 = arith.constant 3 : index
    %c0_258 = arith.constant 0 : index
    %c0_259 = arith.constant 0 : index
    %c0_260 = arith.constant 0 : index
    %349 = vector.load %arg4[%c0_256, %c3_257, %c0_258, %c0_259, %c0_260] : memref<1x4x8x8x128xf32, #tpu.memory_space<vmem>>, vector<1x1x8x8x128xf32>
    %350 = vector.shape_cast %349 : vector<1x1x8x8x128xf32> to vector<8x8x128xf32>
    %351 = vector.shape_cast %348 : vector<8x8x128xf32> to vector<1x1x8x8x128xf32>
    tpu.vector_store %arg4[%c0_256, %c3_257, %c0_258, %c0_259, %c0_260], %351 {strides = array<i32>} : memref<1x4x8x8x128xf32, #tpu.memory_space<vmem>>, vector<1x1x8x8x128xf32>,
    return
  }
  func.func @transform_0(%arg0: i32) -> (i32, i32, i32, i32) {
    %c0_i32 = arith.constant 0 : i32
    %c0_i32_0 = arith.constant 0 : i32
    %c0_i32_1 = arith.constant 0 : i32
    %c0_i32_2 = arith.constant 0 : i32
    return %arg0, %c0_i32, %c0_i32_0, %c0_i32_1 : i32, i32, i32, i32
  }
  func.func @transform_1(%arg0: i32) -> (i32, i32, i32) {
    %c0_i32 = arith.constant 0 : i32
    %c0_i32_0 = arith.constant 0 : i32
    %c0_i32_1 = arith.constant 0 : i32
    %c0_i32_2 = arith.constant 0 : i32
    return %c0_i32, %c0_i32_0, %c0_i32_1 : i32, i32, i32
  }
  func.func @transform_2(%arg0: i32) -> (i32, i32) {
    %c0_i32 = arith.constant 0 : i32
    %c0_i32_0 = arith.constant 0 : i32
    %c0_i32_1 = arith.constant 0 : i32
    return %c0_i32, %c0_i32_0 : i32, i32
  }
  func.func @transform_3(%arg0: i32) -> (i32, i32, i32, i32, i32) {
    %c0_i32 = arith.constant 0 : i32
    %c0_i32_0 = arith.constant 0 : i32
    %c0_i32_1 = arith.constant 0 : i32
    %c0_i32_2 = arith.constant 0 : i32
    %c0_i32_3 = arith.constant 0 : i32
    return %arg0, %c0_i32, %c0_i32_0, %c0_i32_1, %c0_i32_2 : i32, i32, i32, i32, i32
  }
}

</mosaic_0001>

<llo_original>
// kernel: upsample_block_forward.1
$region0: #{upsample_block_forward.1}
  #allocation0 [shape = 'u32[]', space=smem, size = 0x4, offset = 0x4, fixed_abs, tag = 'smem constant byte address 0x4 - core index']
  #allocation1 [shape = 'u32[144,128]{1,0:T(1,128)}', space=vmem, size = 0x12000, scoped, tag = 'internal scratch']
  #allocation2 [shape = 'f32[4,64,128]{2,1,0:T(8,128)}', space=vmem, size = 0x20000, scoped, tag = 'scratch operand']
  %s0 = inlined_call_operand.vmem [shape: f32[2,10,10,256], index: 0, kind: input, shape index: {}]
  %s1 = inlined_call_operand.vmem [shape: bf16[16,256,128], index: 1, kind: input, shape index: {}]
  %s2 = inlined_call_operand.vmem [shape: f32[1,128], index: 2, kind: input, shape index: {}]
  %s3 = inlined_call_operand.vmem [shape: f32[2,4,8,8,128], index: 3, kind: output, shape index: {}]
  %s4 = sld [smem:[#allocation0]]
  $region45: #{upsample_block_forward.1} parent=0
    _
  %s6 = ssub.s32 1, %s4
  %s7 = scalar_select 0, %s6, %s4
  loop: start=0, step=1, limit=4
  $region2: #{upsample_block_forward.1} parent=0 // loop_pre_header
    _
  $region3: #{upsample_block_forward.1} parent=0 // loop_header
    %s9 = sphi 0, %s13
    %p10 = scmp.ge.s32.totalorder %s9, 4
    %s19 = sphi 0, %s21
    %s22 = sphi 0, %s19
    %s23 = sphi 0, %s22
    %s39 = sphi 0, %s23
    %s43 = sphi 0, %s43
    %s45 = sphi 0, %s43
    %s46 = sphi 0, %s45
    %s60 = sphi 0, %s46
    %s64 = sphi 0, %s64
    %s66 = sphi 0, %s64
    %s67 = sphi 0, %s66
    %s81 = sphi 0, %s67
    %s87 = sphi 0, %s89
    %s90 = sphi 0, %s87
    %s91 = sphi 0, %s90
    %s107 = sphi 0, %s91
  $region4: #{upsample_block_forward.1} parent=0 // loop_header_branch
    %12 = sbr.rel (%p10) target = $region8
  $region5: #{upsample_block_forward.1} parent=0 // loop_body
    %s14 = ssub.s32 %s9, 1
    %s15 = ssub.s32 %s9, 2
    %s16 = sadd.s32 %s9, 1
    %s17 = ssub.s32 %s9, %s16
    %p18 = scmp.eq.s32.totalorder %s17, 0
    %s20 = sadd.s32 %s19, 1
    %s21 = scalar_select %p18, %s19, %s20
    %p24 = pneg %p18
    %p25 = scmp.eq.s32.totalorder %s9, 1
    %p26 = por %p24, %p25
    %p27 = scmp.ne.s32.totalorder %s19, %s22
    %p28 = scmp.eq.s32.totalorder %s9, 0
    %p29 = por %p27, %p28
    %p30 = scmp.ne.s32.totalorder %s19, %s22
    %p31 = scmp.eq.s32.totalorder %s14, 1
    %p32 = por %p30, %p31
    %p33 = scmp.ne.s32.totalorder %s22, %s23
    %p34 = scmp.eq.s32.totalorder %s14, 0
    %p35 = por %p33, %p34
    %p36 = scmp.ne.s32.totalorder %s22, %s23
    %p37 = scmp.eq.s32.totalorder %s15, 1
    %p38 = por %p36, %p37
    %p40 = scmp.ne.s32.totalorder %s23, %s39
    %p41 = scmp.eq.s32.totalorder %s15, 0
    %p42 = por %p40, %p41
    %s44 = sadd.s32 %s43, 1
    %p47 = scmp.eq.s32.totalorder %s9, 1
    %p48 = scmp.ne.s32.totalorder %s43, %s45
    %p49 = scmp.eq.s32.totalorder %s9, 0
    %p50 = por %p48, %p49
    %p51 = scmp.ne.s32.totalorder %s43, %s45
    %p52 = scmp.eq.s32.totalorder %s14, 1
    %p53 = por %p51, %p52
    %p54 = scmp.ne.s32.totalorder %s45, %s46
    %p55 = scmp.eq.s32.totalorder %s14, 0
    %p56 = por %p54, %p55
    %p57 = scmp.ne.s32.totalorder %s45, %s46
    %p58 = scmp.eq.s32.totalorder %s15, 1
    %p59 = por %p57, %p58
    %p61 = scmp.ne.s32.totalorder %s46, %s60
    %p62 = scmp.eq.s32.totalorder %s15, 0
    %p63 = por %p61, %p62
    %s65 = sadd.s32 %s64, 1
    %p68 = scmp.eq.s32.totalorder %s9, 1
    %p69 = scmp.ne.s32.totalorder %s64, %s66
    %p70 = scmp.eq.s32.totalorder %s9, 0
    %p71 = por %p69, %p70
    %p72 = scmp.ne.s32.totalorder %s64, %s66
    %p73 = scmp.eq.s32.totalorder %s14, 1
    %p74 = por %p72, %p73
    %p75 = scmp.ne.s32.totalorder %s66, %s67
    %p76 = scmp.eq.s32.totalorder %s14, 0
    %p77 = por %p75, %p76
    %p78 = scmp.ne.s32.totalorder %s66, %s67
    %p79 = scmp.eq.s32.totalorder %s15, 1
    %p80 = por %p78, %p79
    %p82 = scmp.ne.s32.totalorder %s67, %s81
    %p83 = scmp.eq.s32.totalorder %s15, 0
    %p84 = por %p82, %p83
    %s85 = ssub.s32 %s9, %s16
    %p86 = scmp.eq.s32.totalorder %s85, 0
    %s88 = sadd.s32 %s87, 1
    %s89 = scalar_select %p86, %s87, %s88
    %p92 = pneg %p86
    %p93 = scmp.eq.s32.totalorder %s9, 1
    %p94 = por %p92, %p93
    %p95 = scmp.ne.s32.totalorder %s87, %s90
    %p96 = scmp.eq.s32.totalorder %s9, 0
    %p97 = por %p95, %p96
    %p98 = scmp.ne.s32.totalorder %s87, %s90
    %p99 = scmp.eq.s32.totalorder %s14, 1
    %p100 = por %p98, %p99
    %p101 = scmp.ne.s32.totalorder %s90, %s91
    %p102 = scmp.eq.s32.totalorder %s14, 0
    %p103 = por %p101, %p102
    %p104 = scmp.ne.s32.totalorder %s90, %s91
    %p105 = scmp.eq.s32.totalorder %s15, 1
    %p106 = por %p104, %p105
    %p108 = scmp.ne.s32.totalorder %s91, %s107
    %p109 = scmp.eq.s32.totalorder %s15, 0
    %p110 = por %p108, %p109
    %p111 = scmp.le.s32.totalorder 1, %s9
    %p112 = scmp.lt.s32.totalorder %s9, 3
    %p113 = pnand %p111, %p112
    %p114 = pneg %p113
    // Predicated region
    $region9: #{upsample_block_forward.1} parent=5 // pred_check
      _
    $region10: #{upsample_block_forward.1} parent=5 // pred_check_branch
      %116 = sbr.rel (%p113) target = $region12
    $region11: #{upsample_block_forward.1} parent=5 // pred_region
      %s117 = ssub.s32 %s9, 1
      // Predicated region
      $region13: #{upsample_block_forward.1} parent=11 // pred_check
        %p118 = pneg %p56
      $region14: #{upsample_block_forward.1} parent=11 // pred_check_branch
        %120 = sbr.rel (%p118) target = $region16
      $region15: #{upsample_block_forward.1} parent=11 // pred_region
        _
      $region16: #{upsample_block_forward.1} parent=11 // pred_fallthru
        _
      // Predicated region
      $region17: #{upsample_block_forward.1} parent=11 // pred_check
        %p121 = pneg %p77
      $region18: #{upsample_block_forward.1} parent=11 // pred_check_branch
        %123 = sbr.rel (%p121) target = $region20
      $region19: #{upsample_block_forward.1} parent=11 // pred_region
        _
      $region20: #{upsample_block_forward.1} parent=11 // pred_fallthru
        _
    $region12: #{upsample_block_forward.1} parent=5 // pred_fallthru
      _
    %p124 = scmp.lt.s32.totalorder %s9, 2
    // Predicated region
    $region21: #{upsample_block_forward.1} parent=5 // pred_check
      %p125 = pneg %p124
    $region22: #{upsample_block_forward.1} parent=5 // pred_check_branch
      %127 = sbr.rel (%p125) target = $region24
    $region23: #{upsample_block_forward.1} parent=5 // pred_region
      // Predicated region
      $region25: #{upsample_block_forward.1} parent=23 // pred_check
        %p128 = pneg %p29
      $region26: #{upsample_block_forward.1} parent=23 // pred_check_branch
        %130 = sbr.rel (%p128) target = $region28
      $region27: #{upsample_block_forward.1} parent=23 // pred_region
        %p131 = scmp.lt.s32.totalorder %s9, 1
        %s132 = scalar_select %p131, %s9, 1
        %s133 = smul.addr %s132, 40
        %s134 = smul.addr %s133, 8
        %s135 = scalar_lea.vmem %s0, %s134
      $region28: #{upsample_block_forward.1} parent=23 // pred_fallthru
        _
    $region24: #{upsample_block_forward.1} parent=5 // pred_fallthru
      _
    %p136 = scmp.le.s32.totalorder 1, %s9
    %p137 = scmp.lt.s32.totalorder %s9, 3
    %p138 = pnand %p136, %p137
    %p139 = pneg %p138
    // Predicated region
    $region29: #{upsample_block_forward.1} parent=5 // pred_check
      _
    $region30: #{upsample_block_forward.1} parent=5 // pred_check_branch
      %141 = sbr.rel (%p138) target = $region32
    $region31: #{upsample_block_forward.1} parent=5 // pred_region
      %s142 = ssub.s32 %s9, 1
      %p143 = scmp.lt.s32.totalorder %s14, 1
      %s144 = scalar_select %p143, %s14, 1
      %s145 = smul.addr %s144, 40
      %s146 = smul.addr %s145, 8
      %s147 = scalar_lea.vmem %s0, %s146
      %p148 = pneg %p35
      %p149 = pneg %p32
      %p150 = pneg %p56
      %p151 = pneg %p53
      %p152 = pneg %p77
      %p153 = pneg %p74
      %p154 = pneg %p103
      %p155 = pneg %p100
      %p156 = scmp.lt.s32.totalorder %s14, 1
      %s157 = scalar_select %p156, %s14, 1
      %s158 = smul.addr %s157, 32
      %s159 = smul.addr %s158, 8
      %s160 = scalar_lea.vmem %s3, %s159
      %p161 = scmp.lt.s32.totalorder %s14, 1
      %s162 = scalar_select %p161, %s14, 1
      %s163 = smul.addr %s162, 40
      %s164 = smul.addr %s163, 8
      %s165 = scalar_lea.vmem %s0, %s164
      %p166 = scmp.lt.s32.totalorder %s14, 1
      %s167 = scalar_select %p166, %s14, 1
      %s168 = smul.addr %s167, 32
      %s169 = smul.addr %s168, 8
      %s170 = scalar_lea.vmem %s3, %s169
      %v172 = vld [vmem:[%s165] sm:$0xff]
      %v173 = vld [vmem:[%s165 + $0x8] sm:$0xff]
      %v174 = vld [vmem:[%s165 + $0x20] sm:$0xff]
      %v175 = vld [vmem:[%s165 + $0x28] sm:$0xff]
      %v176 = vld [vmem:[%s165 + $0x40] sm:$0xff]
      %v177 = vld [vmem:[%s165 + $0x48] sm:$0xff]
      %v178 = vld [vmem:[%s165 + $0x60] sm:$0xff]
      %v179 = vld [vmem:[%s165 + $0x68] sm:$0xff]
      %v180 = vld [vmem:[%s165 + $0x80] sm:$0xff]
      %v181 = vld [vmem:[%s165 + $0x88] sm:$0xff]
      %v182 = vld [vmem:[%s165 + $0xa0] sm:$0xff]
      %v183 = vld [vmem:[%s165 + $0xa8] sm:$0xff]
      %v184 = vld [vmem:[%s165 + $0xc0] sm:$0xff]
      %v185 = vld [vmem:[%s165 + $0xc8] sm:$0xff]
      %v186 = vld [vmem:[%s165 + $0xe0] sm:$0xff]
      %v187 = vld [vmem:[%s165 + $0xe8] sm:$0xff]
      %v188 = vpack.c.bf16 %v174, %v172
      %v189 = vpack.c.bf16 %v175, %v173
      %v190 = vpack.c.bf16 %v178, %v176
      %v191 = vpack.c.bf16 %v179, %v177
      %v192 = vpack.c.bf16 %v182, %v180
      %v193 = vpack.c.bf16 %v183, %v181
      %v194 = vpack.c.bf16 %v186, %v184
      %v195 = vpack.c.bf16 %v187, %v185
      %v196 = vld [vmem:[%s1] sm:$0xf]
      %v197 = vld [vmem:[%s1 + $0x4] sm:$0xf]
      %v198 = vld [vmem:[%s1 + $0x8] sm:$0xf]
      %v199 = vld [vmem:[%s1 + $0xc] sm:$0xf]
      %v200 = vld [vmem:[%s1 + $0x10] sm:$0xf]
      %v201 = vld [vmem:[%s1 + $0x14] sm:$0xf]
      %v202 = vld [vmem:[%s1 + $0x18] sm:$0xf]
      %v203 = vld [vmem:[%s1 + $0x1c] sm:$0xf]
      %v204 = vld [vmem:[%s1 + $0x20] sm:$0xf]
      %v205 = vld [vmem:[%s1 + $0x24] sm:$0xf]
      %v206 = vld [vmem:[%s1 + $0x28] sm:$0xf]
      %v207 = vld [vmem:[%s1 + $0x2c] sm:$0xf]
      %v208 = vld [vmem:[%s1 + $0x30] sm:$0xf]
      %v209 = vld [vmem:[%s1 + $0x34] sm:$0xf]
      %v210 = vld [vmem:[%s1 + $0x38] sm:$0xf]
      %v211 = vld [vmem:[%s1 + $0x3c] sm:$0xf]
      %v212 = vld [vmem:[%s1 + $0x40] sm:$0xf]
      %v213 = vld [vmem:[%s1 + $0x44] sm:$0xf]
      %v214 = vld [vmem:[%s1 + $0x48] sm:$0xf]
      %v215 = vld [vmem:[%s1 + $0x4c] sm:$0xf]
      %v216 = vld [vmem:[%s1 + $0x50] sm:$0xf]
      %v217 = vld [vmem:[%s1 + $0x54] sm:$0xf]
      %v218 = vld [vmem:[%s1 + $0x58] sm:$0xf]
      %v219 = vld [vmem:[%s1 + $0x5c] sm:$0xf]
      %v220 = vld [vmem:[%s1 + $0x60] sm:$0xf]
      %v221 = vld [vmem:[%s1 + $0x64] sm:$0xf]
      %v222 = vld [vmem:[%s1 + $0x68] sm:$0xf]
      %v223 = vld [vmem:[%s1 + $0x6c] sm:$0xf]
      %v224 = vld [vmem:[%s1 + $0x70] sm:$0xf]
      %v225 = vld [vmem:[%s1 + $0x74] sm:$0xf]
      %v226 = vld [vmem:[%s1 + $0x78] sm:$0xf]
      %v227 = vld [vmem:[%s1 + $0x7c] sm:$0xf]
      %v260 = vunpack.c.l.b16 %v196
      %v261 = vunpack.c.l.b16 %v197
      %v262 = vunpack.c.l.b16 %v198
      %v263 = vunpack.c.l.b16 %v199
      %v264 = vunpack.c.l.b16 %v200
      %v265 = vunpack.c.l.b16 %v201
      %v266 = vunpack.c.l.b16 %v202
      %v267 = vunpack.c.l.b16 %v203
      %v268 = vunpack.c.l.b16 %v204
      %v269 = vunpack.c.l.b16 %v205
      %v270 = vunpack.c.l.b16 %v206
      %v271 = vunpack.c.l.b16 %v207
      %v272 = vunpack.c.l.b16 %v208
      %v273 = vunpack.c.l.b16 %v209
      %v274 = vunpack.c.l.b16 %v210
      %v275 = vunpack.c.l.b16 %v211
      %v276 = vunpack.c.l.b16 %v212
      %v277 = vunpack.c.l.b16 %v213
      %v278 = vunpack.c.l.b16 %v214
      %v279 = vunpack.c.l.b16 %v215
      %v280 = vunpack.c.l.b16 %v216
      %v281 = vunpack.c.l.b16 %v217
      %v282 = vunpack.c.l.b16 %v218
      %v283 = vunpack.c.l.b16 %v219
      %v284 = vunpack.c.l.b16 %v220
      %v285 = vunpack.c.l.b16 %v221
      %v286 = vunpack.c.l.b16 %v222
      %v287 = vunpack.c.l.b16 %v223
      %v288 = vunpack.c.l.b16 %v224
      %v289 = vunpack.c.l.b16 %v225
      %v290 = vunpack.c.l.b16 %v226
      %v291 = vunpack.c.l.b16 %v227
      %v292 = vpack.c.b16 %v261, %v260
      %v293 = vpack.c.b16 %v263, %v262
      %v294 = vpack.c.b16 %v265, %v264
      %v295 = vpack.c.b16 %v267, %v266
      %v296 = vpack.c.b16 %v269, %v268
      %v297 = vpack.c.b16 %v271, %v270
      %v298 = vpack.c.b16 %v273, %v272
      %v299 = vpack.c.b16 %v275, %v274
      %v300 = vpack.c.b16 %v277, %v276
      %v301 = vpack.c.b16 %v279, %v278
      %v302 = vpack.c.b16 %v281, %v280
      %v303 = vpack.c.b16 %v283, %v282
      %v304 = vpack.c.b16 %v285, %v284
      %v305 = vpack.c.b16 %v287, %v286
      %v306 = vpack.c.b16 %v289, %v288
      %v307 = vpack.c.b16 %v291, %v290
      %324 = vmatprep.subr.bf16.mxu0 0
      %325 = vmatpush1.bf16.msra.mxu0 %v292
      %326 = vmatprep.subr.bf16.mxu0 0
      %327 = vmatpush1.bf16.msra.mxu0 %v293
      %328 = vmatprep.subr.bf16.mxu0 0
      %329 = vmatpush1.bf16.msra.mxu0 %v294
      %330 = vmatprep.subr.bf16.mxu0 0
      %331 = vmatpush1.bf16.msra.mxu0 %v295
      %332 = vmatprep.subr.bf16.mxu0 0
      %333 = vmatpush1.bf16.msra.mxu0 %v296
      %334 = vmatprep.subr.bf16.mxu0 0
      %335 = vmatpush1.bf16.msra.mxu0 %v297
      %336 = vmatprep.subr.bf16.mxu0 0
      %337 = vmatpush1.bf16.msra.mxu0 %v298
      %338 = vmatprep.subr.bf16.mxu0 0
      %339 = vmatpush1.bf16.msra.mxu0 %v299
      %340 = vmatprep.subr.bf16.mxu0 0
      %341 = vmatpush1.bf16.msra.mxu0 %v300
      %342 = vmatprep.subr.bf16.mxu0 0
      %343 = vmatpush1.bf16.msra.mxu0 %v301
      %344 = vmatprep.subr.bf16.mxu0 0
      %345 = vmatpush1.bf16.msra.mxu0 %v302
      %346 = vmatprep.subr.bf16.mxu0 0
      %347 = vmatpush1.bf16.msra.mxu0 %v303
      %348 = vmatprep.subr.bf16.mxu0 0
      %349 = vmatpush1.bf16.msra.mxu0 %v304
      %350 = vmatprep.subr.bf16.mxu0 0
      %351 = vmatpush1.bf16.msra.mxu0 %v305
      %352 = vmatprep.subr.bf16.mxu0 0
      %353 = vmatpush1.bf16.msra.mxu0 %v306
      %354 = vmatprep.subr.bf16.mxu0 0
      %355 = vmatpush1.bf16.msra.mxu0 %v307
      %356 = vmatprep.mubr.bf16.mxu0 %v189
      %357 = vmatmul.mubr.bf16.gmra.mrb[0].mxu0 %v188
      %v358 = vpop.f32.mrb[0].mxu0
      %v359 = vadd.f32 0.0, %v358
      %v360 = vpop.f32.mrb[0].mxu0
      %v361 = vpop.f32.mrb[0].mxu0
      %v362 = vadd.f32 0.0, %v361
      %v363 = vpop.f32.mrb[0].mxu0
      %364 = vmatprep.mubr.bf16.mxu0 %v191
      %365 = vmatmul.mubr.bf16.gmra.mrb[0].mxu0 %v190
      %v366 = vpop.f32.mrb[0].mxu0
      %v367 = vadd.f32 0.0, %v366
      %v368 = vpop.f32.mrb[0].mxu0
      %v369 = vpop.f32.mrb[0].mxu0
      %v370 = vadd.f32 0.0, %v369
      %v371 = vpop.f32.mrb[0].mxu0
      %372 = vmatprep.mubr.bf16.mxu0 %v193
      %373 = vmatmul.mubr.bf16.gmra.mrb[0].mxu0 %v192
      %v374 = vpop.f32.mrb[0].mxu0
      %v375 = vadd.f32 0.0, %v374
      %v376 = vpop.f32.mrb[0].mxu0
      %v377 = vpop.f32.mrb[0].mxu0
      %v378 = vadd.f32 0.0, %v377
      %v379 = vpop.f32.mrb[0].mxu0
      %380 = vmatprep.mubr.bf16.mxu0 %v195
      %381 = vmatmul.mubr.bf16.gmra.mrb[0].mxu0 %v194
      %v382 = vpop.f32.mrb[0].mxu0
      %v383 = vadd.f32 0.0, %v382
      %v384 = vpop.f32.mrb[0].mxu0
      %v385 = vpop.f32.mrb[0].mxu0
      %v386 = vadd.f32 0.0, %v385
      %v387 = vpop.f32.mrb[0].mxu0
      %388 = vdwg.mxu0
      %389 = vst [vmem:[#allocation2] sm:$0xff] %v359
      %390 = vst [vmem:[#allocation2 + $0x8] sm:$0xff] %v362
      %391 = vst [vmem:[#allocation2 + $0x10] sm:$0xff] %v367
      %392 = vst [vmem:[#allocation2 + $0x18] sm:$0xff] %v370
      %393 = vst [vmem:[#allocation2 + $0x20] sm:$0xff] %v375
      %394 = vst [vmem:[#allocation2 + $0x28] sm:$0xff] %v378
      %395 = vst [vmem:[#allocation2 + $0x30] sm:$0xff] %v383
      %396 = vst [vmem:[#allocation2 + $0x38] sm:$0xff] %v386
      %v397 = vld [vmem:[%s165] sm:$0xfe]
      %v398 = vld [vmem:[%s165 + $0x8] sm:$0xfe]
      %v399 = vld [vmem:[%s165 + $0x10] sm:$0x1]
      %v400 = vld [vmem:[%s165 + $0x18] sm:$0x1]
      %v401 = vld [vmem:[%s165 + $0x20] sm:$0xfe]
      %v402 = vld [vmem:[%s165 + $0x28] sm:$0xfe]
      %v403 = vld [vmem:[%s165 + $0x30] sm:$0x1]
      %v404 = vld [vmem:[%s165 + $0x38] sm:$0x1]
      %v405 = vld [vmem:[%s165 + $0x40] sm:$0xfe]
      %v406 = vld [vmem:[%s165 + $0x48] sm:$0xfe]
      %v407 = vld [vmem:[%s165 + $0x50] sm:$0x1]
      %v408 = vld [vmem:[%s165 + $0x58] sm:$0x1]
      %v409 = vld [vmem:[%s165 + $0x60] sm:$0xfe]
      %v410 = vld [vmem:[%s165 + $0x68] sm:$0xfe]
      %v411 = vld [vmem:[%s165 + $0x70] sm:$0x1]
      %v412 = vld [vmem:[%s165 + $0x78] sm:$0x1]
      %v413 = vld [vmem:[%s165 + $0x80] sm:$0xfe]
      %v414 = vld [vmem:[%s165 + $0x88] sm:$0xfe]
      %v415 = vld [vmem:[%s165 + $0x90] sm:$0x1]
      %v416 = vld [vmem:[%s165 + $0x98] sm:$0x1]
      %v417 = vld [vmem:[%s165 + $0xa0] sm:$0xfe]
      %v418 = vld [vmem:[%s165 + $0xa8] sm:$0xfe]
      %v419 = vld [vmem:[%s165 + $0xb0] sm:$0x1]
      %v420 = vld [vmem:[%s165 + $0xb8] sm:$0x1]
      %v421 = vld [vmem:[%s165 + $0xc0] sm:$0xfe]
      %v422 = vld [vmem:[%s165 + $0xc8] sm:$0xfe]
      %v423 = vld [vmem:[%s165 + $0xd0] sm:$0x1]
      %v424 = vld [vmem:[%s165 + $0xd8] sm:$0x1]
      %v425 = vld [vmem:[%s165 + $0xe0] sm:$0xfe]
      %v426 = vld [vmem:[%s165 + $0xe8] sm:$0xfe]
      %v427 = vld [vmem:[%s165 + $0xf0] sm:$0x1]
      %v428 = vld [vmem:[%s165 + $0xf8] sm:$0x1]
      %vm461 = vcmask 1046528
      %v462 = vrot.slane %v397, 1
      %v463 = vrot.slane %v399, 1
      %v464 = vsel %vm461, %v462, %v463
      %v465 = vrot.slane %v398, 1
      %v466 = vrot.slane %v400, 1
      %v467 = vsel %vm461, %v465, %v466
      %v468 = vrot.slane %v401, 1
      %v469 = vrot.slane %v403, 1
      %v470 = vsel %vm461, %v468, %v469
      %v471 = vrot.slane %v402, 1
      %v472 = vrot.slane %v404, 1
      %v473 = vsel %vm461, %v471, %v472
      %v474 = vrot.slane %v405, 1
      %v475 = vrot.slane %v407, 1
      %v476 = vsel %vm461, %v474, %v475
      %v477 = vrot.slane %v406, 1
      %v478 = vrot.slane %v408, 1
      %v479 = vsel %vm461, %v477, %v478
      %v480 = vrot.slane %v409, 1
      %v481 = vrot.slane %v411, 1
      %v482 = vsel %vm461, %v480, %v481
      %v483 = vrot.slane %v410, 1
      %v484 = vrot.slane %v412, 1
      %v485 = vsel %vm461, %v483, %v484
      %v486 = vrot.slane %v413, 1
      %v487 = vrot.slane %v415, 1
      %v488 = vsel %vm461, %v486, %v487
      %v489 = vrot.slane %v414, 1
      %v490 = vrot.slane %v416, 1
      %v491 = vsel %vm461, %v489, %v490
      %v492 = vrot.slane %v417, 1
      %v493 = vrot.slane %v419, 1
      %v494 = vsel %vm461, %v492, %v493
      %v495 = vrot.slane %v418, 1
      %v496 = vrot.slane %v420, 1
      %v497 = vsel %vm461, %v495, %v496
      %v498 = vrot.slane %v421, 1
      %v499 = vrot.slane %v423, 1
      %v500 = vsel %vm461, %v498, %v499
      %v501 = vrot.slane %v422, 1
      %v502 = vrot.slane %v424, 1
      %v503 = vsel %vm461, %v501, %v502
      %v504 = vrot.slane %v425, 1
      %v505 = vrot.slane %v427, 1
      %v506 = vsel %vm461, %v504, %v505
      %v507 = vrot.slane %v426, 1
      %v508 = vrot.slane %v428, 1
      %v509 = vsel %vm461, %v507, %v508
      %v526 = vpack.c.bf16 %v470, %v464
      %v527 = vpack.c.bf16 %v473, %v467
      %v528 = vpack.c.bf16 %v482, %v476
      %v529 = vpack.c.bf16 %v485, %v479
      %v530 = vpack.c.bf16 %v494, %v488
      %v531 = vpack.c.bf16 %v497, %v491
      %v532 = vpack.c.bf16 %v506, %v500
      %v533 = vpack.c.bf16 %v509, %v503
      %s534 = scalar_lea.vmem %s1, 128
      %v535 = vld [vmem:[%s534] sm:$0xf]
      %v536 = vld [vmem:[%s534 + $0x4] sm:$0xf]
      %v537 = vld [vmem:[%s534 + $0x8] sm:$0xf]
      %v538 = vld [vmem:[%s534 + $0xc] sm:$0xf]
      %v539 = vld [vmem:[%s534 + $0x10] sm:$0xf]
      %v540 = vld [vmem:[%s534 + $0x14] sm:$0xf]
      %v541 = vld [vmem:[%s534 + $0x18] sm:$0xf]
      %v542 = vld [vmem:[%s534 + $0x1c] sm:$0xf]
      %v543 = vld [vmem:[%s534 + $0x20] sm:$0xf]
      %v544 = vld [vmem:[%s534 + $0x24] sm:$0xf]
      %v545 = vld [vmem:[%s534 + $0x28] sm:$0xf]
      %v546 = vld [vmem:[%s534 + $0x2c] sm:$0xf]
      %v547 = vld [vmem:[%s534 + $0x30] sm:$0xf]
      %v548 = vld [vmem:[%s534 + $0x34] sm:$0xf]
      %v549 = vld [vmem:[%s534 + $0x38] sm:$0xf]
      %v550 = vld [vmem:[%s534 + $0x3c] sm:$0xf]
      %v551 = vld [vmem:[%s534 + $0x40] sm:$0xf]
      %v552 = vld [vmem:[%s534 + $0x44] sm:$0xf]
      %v553 = vld [vmem:[%s534 + $0x48] sm:$0xf]
      %v554 = vld [vmem:[%s534 + $0x4c] sm:$0xf]
      %v555 = vld [vmem:[%s534 + $0x50] sm:$0xf]
      %v556 = vld [vmem:[%s534 + $0x54] sm:$0xf]
      %v557 = vld [vmem:[%s534 + $0x58] sm:$0xf]
      %v558 = vld [vmem:[%s534 + $0x5c] sm:$0xf]
      %v559 = vld [vmem:[%s534 + $0x60] sm:$0xf]
      %v560 = vld [vmem:[%s534 + $0x64] sm:$0xf]
      %v561 = vld [vmem:[%s534 + $0x68] sm:$0xf]
      %v562 = vld [vmem:[%s534 + $0x6c] sm:$0xf]
      %v563 = vld [vmem:[%s534 + $0x70] sm:$0xf]
      %v564 = vld [vmem:[%s534 + $0x74] sm:$0xf]
      %v565 = vld [vmem:[%s534 + $0x78] sm:$0xf]
      %v566 = vld [vmem:[%s534 + $0x7c] sm:$0xf]
      %v599 = vunpack.c.l.b16 %v535
      %v600 = vunpack.c.l.b16 %v536
      %v601 = vunpack.c.l.b16 %v537
      %v602 = vunpack.c.l.b16 %v538
      %v603 = vunpack.c.l.b16 %v539
      %v604 = vunpack.c.l.b16 %v540
      %v605 = vunpack.c.l.b16 %v541
      %v606 = vunpack.c.l.b16 %v542
      %v607 = vunpack.c.l.b16 %v543
      %v608 = vunpack.c.l.b16 %v544
      %v609 = vunpack.c.l.b16 %v545
      %v610 = vunpack.c.l.b16 %v546
      %v611 = vunpack.c.l.b16 %v547
      %v612 = vunpack.c.l.b16 %v548
      %v613 = vunpack.c.l.b16 %v549
      %v614 = vunpack.c.l.b16 %v550
      %v615 = vunpack.c.l.b16 %v551
      %v616 = vunpack.c.l.b16 %v552
      %v617 = vunpack.c.l.b16 %v553
      %v618 = vunpack.c.l.b16 %v554
      %v619 = vunpack.c.l.b16 %v555
      %v620 = vunpack.c.l.b16 %v556
      %v621 = vunpack.c.l.b16 %v557
      %v622 = vunpack.c.l.b16 %v558
      %v623 = vunpack.c.l.b16 %v559
      %v624 = vunpack.c.l.b16 %v560
      %v625 = vunpack.c.l.b16 %v561
      %v626 = vunpack.c.l.b16 %v562
      %v627 = vunpack.c.l.b16 %v563
      %v628 = vunpack.c.l.b16 %v564
      %v629 = vunpack.c.l.b16 %v565
      %v630 = vunpack.c.l.b16 %v566
      %v631 = vpack.c.b16 %v600, %v599
      %v632 = vpack.c.b16 %v602, %v601
      %v633 = vpack.c.b16 %v604, %v603
      %v634 = vpack.c.b16 %v606, %v605
      %v635 = vpack.c.b16 %v608, %v607
      %v636 = vpack.c.b16 %v610, %v609
      %v637 = vpack.c.b16 %v612, %v611
      %v638 = vpack.c.b16 %v614, %v613
      %v639 = vpack.c.b16 %v616, %v615
      %v640 = vpack.c.b16 %v618, %v617
      %v641 = vpack.c.b16 %v620, %v619
      %v642 = vpack.c.b16 %v622, %v621
      %v643 = vpack.c.b16 %v624, %v623
      %v644 = vpack.c.b16 %v626, %v625
      %v645 = vpack.c.b16 %v628, %v627
      %v646 = vpack.c.b16 %v630, %v629
      %663 = vmatprep.subr.bf16.mxu0 0
      %664 = vmatpush1.bf16.msra.mxu0 %v631
      %665 = vmatprep.subr.bf16.mxu0 0
      %666 = vmatpush1.bf16.msra.mxu0 %v632
      %667 = vmatprep.subr.bf16.mxu0 0
      %668 = vmatpush1.bf16.msra.mxu0 %v633
      %669 = vmatprep.subr.bf16.mxu0 0
      %670 = vmatpush1.bf16.msra.mxu0 %v634
      %671 = vmatprep.subr.bf16.mxu0 0
      %672 = vmatpush1.bf16.msra.mxu0 %v635
      %673 = vmatprep.subr.bf16.mxu0 0
      %674 = vmatpush1.bf16.msra.mxu0 %v636
      %675 = vmatprep.subr.bf16.mxu0 0
      %676 = vmatpush1.bf16.msra.mxu0 %v637
      %677 = vmatprep.subr.bf16.mxu0 0
      %678 = vmatpush1.bf16.msra.mxu0 %v638
      %679 = vmatprep.subr.bf16.mxu0 0
      %680 = vmatpush1.bf16.msra.mxu0 %v639
      %681 = vmatprep.subr.bf16.mxu0 0
      %682 = vmatpush1.bf16.msra.mxu0 %v640
      %683 = vmatprep.subr.bf16.mxu0 0
      %684 = vmatpush1.bf16.msra.mxu0 %v641
      %685 = vmatprep.subr.bf16.mxu0 0
      %686 = vmatpush1.bf16.msra.mxu0 %v642
      %687 = vmatprep.subr.bf16.mxu0 0
      %688 = vmatpush1.bf16.msra.mxu0 %v643
      %689 = vmatprep.subr.bf16.mxu0 0
      %690 = vmatpush1.bf16.msra.mxu0 %v644
      %691 = vmatprep.subr.bf16.mxu0 0
      %692 = vmatpush1.bf16.msra.mxu0 %v645
      %693 = vmatprep.subr.bf16.mxu0 0
      %694 = vmatpush1.bf16.msra.mxu0 %v646
      %695 = vmatprep.mubr.bf16.mxu0 %v527
      %696 = vmatmul.mubr.bf16.gmra.mrb[0].mxu0 %v526
      %v697 = vpop.f32.mrb[0].mxu0
      %v698 = vadd.f32 0.0, %v697
      %v699 = vpop.f32.mrb[0].mxu0
      %v700 = vpop.f32.mrb[0].mxu0
      %v701 = vadd.f32 0.0, %v700
      %v702 = vpop.f32.mrb[0].mxu0
      %703 = vmatprep.mubr.bf16.mxu0 %v529
      %704 = vmatmul.mubr.bf16.gmra.mrb[0].mxu0 %v528
      %v705 = vpop.f32.mrb[0].mxu0
      %v706 = vadd.f32 0.0, %v705
      %v707 = vpop.f32.mrb[0].mxu0
      %v708 = vpop.f32.mrb[0].mxu0
      %v709 = vadd.f32 0.0, %v708
      %v710 = vpop.f32.mrb[0].mxu0
      %711 = vmatprep.mubr.bf16.mxu0 %v531
      %712 = vmatmul.mubr.bf16.gmra.mrb[0].mxu0 %v530
      %v713 = vpop.f32.mrb[0].mxu0
      %v714 = vadd.f32 0.0, %v713
      %v715 = vpop.f32.mrb[0].mxu0
      %v716 = vpop.f32.mrb[0].mxu0
      %v717 = vadd.f32 0.0, %v716
      %v718 = vpop.f32.mrb[0].mxu0
      %719 = vmatprep.mubr.bf16.mxu0 %v533
      %720 = vmatmul.mubr.bf16.gmra.mrb[0].mxu0 %v532
      %v721 = vpop.f32.mrb[0].mxu0
      %v722 = vadd.f32 0.0, %v721
      %v723 = vpop.f32.mrb[0].mxu0
      %v724 = vpop.f32.mrb[0].mxu0
      %v725 = vadd.f32 0.0, %v724
      %v726 = vpop.f32.mrb[0].mxu0
      %727 = vdwg.mxu0
      %v728 = vld [vmem:[#allocation2] sm:$0xff]
      %v729 = vld [vmem:[#allocation2 + $0x8] sm:$0xff]
      %v730 = vld [vmem:[#allocation2 + $0x10] sm:$0xff]
      %v731 = vld [vmem:[#allocation2 + $0x18] sm:$0xff]
      %v732 = vld [vmem:[#allocation2 + $0x20] sm:$0xff]
      %v733 = vld [vmem:[#allocation2 + $0x28] sm:$0xff]
      %v734 = vld [vmem:[#allocation2 + $0x30] sm:$0xff]
      %v735 = vld [vmem:[#allocation2 + $0x38] sm:$0xff]
      %v736 = vadd.f32 %v728, %v698
      %v737 = vadd.f32 %v729, %v701
      %v738 = vadd.f32 %v730, %v706
      %v739 = vadd.f32 %v731, %v709
      %v740 = vadd.f32 %v732, %v714
      %v741 = vadd.f32 %v733, %v717
      %v742 = vadd.f32 %v734, %v722
      %v743 = vadd.f32 %v735, %v725
      %744 = vst [vmem:[#allocation2] sm:$0xff] %v736
      %745 = vst [vmem:[#allocation2 + $0x8] sm:$0xff] %v737
      %746 = vst [vmem:[#allocation2 + $0x10] sm:$0xff] %v738
      %747 = vst [vmem:[#allocation2 + $0x18] sm:$0xff] %v739
      %748 = vst [vmem:[#allocation2 + $0x20] sm:$0xff] %v740
      %749 = vst [vmem:[#allocation2 + $0x28] sm:$0xff] %v741
      %750 = vst [vmem:[#allocation2 + $0x30] sm:$0xff] %v742
      %751 = vst [vmem:[#allocation2 + $0x38] sm:$0xff] %v743
      %s752 = scalar_lea.vmem %s1, 512
      %v753 = vld [vmem:[%s752] sm:$0xf]
      %v754 = vld [vmem:[%s752 + $0x4] sm:$0xf]
      %v755 = vld [vmem:[%s752 + $0x8] sm:$0xf]
      %v756 = vld [vmem:[%s752 + $0xc] sm:$0xf]
      %v757 = vld [vmem:[%s752 + $0x10] sm:$0xf]
      %v758 = vld [vmem:[%s752 + $0x14] sm:$0xf]
      %v759 = vld [vmem:[%s752 + $0x18] sm:$0xf]
      %v760 = vld [vmem:[%s752 + $0x1c] sm:$0xf]
      %v761 = vld [vmem:[%s752 + $0x20] sm:$0xf]
      %v762 = vld [vmem:[%s752 + $0x24] sm:$0xf]
      %v763 = vld [vmem:[%s752 + $0x28] sm:$0xf]
      %v764 = vld [vmem:[%s752 + $0x2c] sm:$0xf]
      %v765 = vld [vmem:[%s752 + $0x30] sm:$0xf]
      %v766 = vld [vmem:[%s752 + $0x34] sm:$0xf]
      %v767 = vld [vmem:[%s752 + $0x38] sm:$0xf]
      %v768 = vld [vmem:[%s752 + $0x3c] sm:$0xf]
      %v769 = vld [vmem:[%s752 + $0x40] sm:$0xf]
      %v770 = vld [vmem:[%s752 + $0x44] sm:$0xf]
      %v771 = vld [vmem:[%s752 + $0x48] sm:$0xf]
      %v772 = vld [vmem:[%s752 + $0x4c] sm:$0xf]
      %v773 = vld [vmem:[%s752 + $0x50] sm:$0xf]
      %v774 = vld [vmem:[%s752 + $0x54] sm:$0xf]
      %v775 = vld [vmem:[%s752 + $0x58] sm:$0xf]
      %v776 = vld [vmem:[%s752 + $0x5c] sm:$0xf]
      %v777 = vld [vmem:[%s752 + $0x60] sm:$0xf]
      %v778 = vld [vmem:[%s752 + $0x64] sm:$0xf]
      %v779 = vld [vmem:[%s752 + $0x68] sm:$0xf]
      %v780 = vld [vmem:[%s752 + $0x6c] sm:$0xf]
      %v781 = vld [vmem:[%s752 + $0x70] sm:$0xf]
      %v782 = vld [vmem:[%s752 + $0x74] sm:$0xf]
      %v783 = vld [vmem:[%s752 + $0x78] sm:$0xf]
      %v784 = vld [vmem:[%s752 + $0x7c] sm:$0xf]
      %v817 = vunpack.c.l.b16 %v753
      %v818 = vunpack.c.l.b16 %v754
      %v819 = vunpack.c.l.b16 %v755
      %v820 = vunpack.c.l.b16 %v756
      %v821 = vunpack.c.l.b16 %v757
      %v822 = vunpack.c.l.b16 %v758
      %v823 = vunpack.c.l.b16 %v759
      %v824 = vunpack.c.l.b16 %v760
      %v825 = vunpack.c.l.b16 %v761
      %v826 = vunpack.c.l.b16 %v762
      %v827 = vunpack.c.l.b16 %v763
      %v828 = vunpack.c.l.b16 %v764
      %v829 = vunpack.c.l.b16 %v765
      %v830 = vunpack.c.l.b16 %v766
      %v831 = vunpack.c.l.b16 %v767
      %v832 = vunpack.c.l.b16 %v768
      %v833 = vunpack.c.l.b16 %v769
      %v834 = vunpack.c.l.b16 %v770
      %v835 = vunpack.c.l.b16 %v771
      %v836 = vunpack.c.l.b16 %v772
      %v837 = vunpack.c.l.b16 %v773
      %v838 = vunpack.c.l.b16 %v774
      %v839 = vunpack.c.l.b16 %v775
      %v840 = vunpack.c.l.b16 %v776
      %v841 = vunpack.c.l.b16 %v777
      %v842 = vunpack.c.l.b16 %v778
      %v843 = vunpack.c.l.b16 %v779
      %v844 = vunpack.c.l.b16 %v780
      %v845 = vunpack.c.l.b16 %v781
      %v846 = vunpack.c.l.b16 %v782
      %v847 = vunpack.c.l.b16 %v783
      %v848 = vunpack.c.l.b16 %v784
      %v849 = vpack.c.b16 %v818, %v817
      %v850 = vpack.c.b16 %v820, %v819
      %v851 = vpack.c.b16 %v822, %v821
      %v852 = vpack.c.b16 %v824, %v823
      %v853 = vpack.c.b16 %v826, %v825
      %v854 = vpack.c.b16 %v828, %v827
      %v855 = vpack.c.b16 %v830, %v829
      %v856 = vpack.c.b16 %v832, %v831
      %v857 = vpack.c.b16 %v834, %v833
      %v858 = vpack.c.b16 %v836, %v835
      %v859 = vpack.c.b16 %v838, %v837
      %v860 = vpack.c.b16 %v840, %v839
      %v861 = vpack.c.b16 %v842, %v841
      %v862 = vpack.c.b16 %v844, %v843
      %v863 = vpack.c.b16 %v846, %v845
      %v864 = vpack.c.b16 %v848, %v847
      %881 = vmatprep.subr.bf16.mxu0 0
      %882 = vmatpush1.bf16.msra.mxu0 %v849
      %883 = vmatprep.subr.bf16.mxu0 0
      %884 = vmatpush1.bf16.msra.mxu0 %v850
      %885 = vmatprep.subr.bf16.mxu0 0
      %886 = vmatpush1.bf16.msra.mxu0 %v851
      %887 = vmatprep.subr.bf16.mxu0 0
      %888 = vmatpush1.bf16.msra.mxu0 %v852
      %889 = vmatprep.subr.bf16.mxu0 0
      %890 = vmatpush1.bf16.msra.mxu0 %v853
      %891 = vmatprep.subr.bf16.mxu0 0
      %892 = vmatpush1.bf16.msra.mxu0 %v854
      %893 = vmatprep.subr.bf16.mxu0 0
      %894 = vmatpush1.bf16.msra.mxu0 %v855
      %895 = vmatprep.subr.bf16.mxu0 0
      %896 = vmatpush1.bf16.msra.mxu0 %v856
      %897 = vmatprep.subr.bf16.mxu0 0
      %898 = vmatpush1.bf16.msra.mxu0 %v857
      %899 = vmatprep.subr.bf16.mxu0 0
      %900 = vmatpush1.bf16.msra.mxu0 %v858
      %901 = vmatprep.subr.bf16.mxu0 0
      %902 = vmatpush1.bf16.msra.mxu0 %v859
      %903 = vmatprep.subr.bf16.mxu0 0
      %904 = vmatpush1.bf16.msra.mxu0 %v860
      %905 = vmatprep.subr.bf16.mxu0 0
      %906 = vmatpush1.bf16.msra.mxu0 %v861
      %907 = vmatprep.subr.bf16.mxu0 0
      %908 = vmatpush1.bf16.msra.mxu0 %v862
      %909 = vmatprep.subr.bf16.mxu0 0
      %910 = vmatpush1.bf16.msra.mxu0 %v863
      %911 = vmatprep.subr.bf16.mxu0 0
      %912 = vmatpush1.bf16.msra.mxu0 %v864
      %913 = vmatprep.mubr.bf16.mxu0 %v527
      %914 = vmatmul.mubr.bf16.gmra.mrb[0].mxu0 %v526
      %v915 = vpop.f32.mrb[0].mxu0
      %v916 = vadd.f32 0.0, %v915
      %v917 = vpop.f32.mrb[0].mxu0
      %v918 = vpop.f32.mrb[0].mxu0
      %v919 = vadd.f32 0.0, %v918
      %v920 = vpop.f32.mrb[0].mxu0
      %921 = vmatprep.mubr.bf16.mxu0 %v529
      %922 = vmatmul.mubr.bf16.gmra.mrb[0].mxu0 %v528
      %v923 = vpop.f32.mrb[0].mxu0
      %v924 = vadd.f32 0.0, %v923
      %v925 = vpop.f32.mrb[0].mxu0
      %v926 = vpop.f32.mrb[0].mxu0
      %v927 = vadd.f32 0.0, %v926
      %v928 = vpop.f32.mrb[0].mxu0
      %929 = vmatprep.mubr.bf16.mxu0 %v531
      %930 = vmatmul.mubr.bf16.gmra.mrb[0].mxu0 %v530
      %v931 = vpop.f32.mrb[0].mxu0
      %v932 = vadd.f32 0.0, %v931
      %v933 = vpop.f32.mrb[0].mxu0
      %v934 = vpop.f32.mrb[0].mxu0
      %v935 = vadd.f32 0.0, %v934
      %v936 = vpop.f32.mrb[0].mxu0
      %937 = vmatprep.mubr.bf16.mxu0 %v533
      %938 = vmatmul.mubr.bf16.gmra.mrb[0].mxu0 %v532
      %v939 = vpop.f32.mrb[0].mxu0
      %v940 = vadd.f32 0.0, %v939
      %v941 = vpop.f32.mrb[0].mxu0
      %v942 = vpop.f32.mrb[0].mxu0
      %v943 = vadd.f32 0.0, %v942
      %v944 = vpop.f32.mrb[0].mxu0
      %945 = vdwg.mxu0
      %s946 = scalar_lea.vmem [#allocation2], 64
      %947 = vst [vmem:[%s946] sm:$0xff] %v916
      %948 = vst [vmem:[%s946 + $0x8] sm:$0xff] %v919
      %949 = vst [vmem:[%s946 + $0x10] sm:$0xff] %v924
      %950 = vst [vmem:[%s946 + $0x18] sm:$0xff] %v927
      %951 = vst [vmem:[%s946 + $0x20] sm:$0xff] %v932
      %952 = vst [vmem:[%s946 + $0x28] sm:$0xff] %v935
      %953 = vst [vmem:[%s946 + $0x30] sm:$0xff] %v940
      %954 = vst [vmem:[%s946 + $0x38] sm:$0xff] %v943
      %s955 = scalar_lea.vmem %s165, 32
      %v956 = vld [vmem:[%s955] sm:$0xff]
      %v957 = vld [vmem:[%s955 + $0x8] sm:$0xff]
      %v958 = vld [vmem:[%s955 + $0x20] sm:$0xff]
      %v959 = vld [vmem:[%s955 + $0x28] sm:$0xff]
      %v960 = vld [vmem:[%s955 + $0x40] sm:$0xff]
      %v961 = vld [vmem:[%s955 + $0x48] sm:$0xff]
      %v962 = vld [vmem:[%s955 + $0x60] sm:$0xff]
      %v963 = vld [vmem:[%s955 + $0x68] sm:$0xff]
      %v964 = vld [vmem:[%s955 + $0x80] sm:$0xff]
      %v965 = vld [vmem:[%s955 + $0x88] sm:$0xff]
      %v966 = vld [vmem:[%s955 + $0xa0] sm:$0xff]
      %v967 = vld [vmem:[%s955 + $0xa8] sm:$0xff]
      %v968 = vld [vmem:[%s955 + $0xc0] sm:$0xff]
      %v969 = vld [vmem:[%s955 + $0xc8] sm:$0xff]
      %v970 = vld [vmem:[%s955 + $0xe0] sm:$0xff]
      %v971 = vld [vmem:[%s955 + $0xe8] sm:$0xff]
      %v972 = vpack.c.bf16 %v958, %v956
      %v973 = vpack.c.bf16 %v959, %v957
      %v974 = vpack.c.bf16 %v962, %v960
      %v975 = vpack.c.bf16 %v963, %v961
      %v976 = vpack.c.bf16 %v966, %v964
      %v977 = vpack.c.bf16 %v967, %v965
      %v978 = vpack.c.bf16 %v970, %v968
      %v979 = vpack.c.bf16 %v971, %v969
      %s980 = scalar_lea.vmem %s1, 256
      %v981 = vld [vmem:[%s980] sm:$0xf]
      %v982 = vld [vmem:[%s980 + $0x4] sm:$0xf]
      %v983 = vld [vmem:[%s980 + $0x8] sm:$0xf]
      %v984 = vld [vmem:[%s980 + $0xc] sm:$0xf]
      %v985 = vld [vmem:[%s980 + $0x10] sm:$0xf]
      %v986 = vld [vmem:[%s980 + $0x14] sm:$0xf]
      %v987 = vld [vmem:[%s980 + $0x18] sm:$0xf]
      %v988 = vld [vmem:[%s980 + $0x1c] sm:$0xf]
      %v989 = vld [vmem:[%s980 + $0x20] sm:$0xf]
      %v990 = vld [vmem:[%s980 + $0x24] sm:$0xf]
      %v991 = vld [vmem:[%s980 + $0x28] sm:$0xf]
      %v992 = vld [vmem:[%s980 + $0x2c] sm:$0xf]
      %v993 = vld [vmem:[%s980 + $0x30] sm:$0xf]
      %v994 = vld [vmem:[%s980 + $0x34] sm:$0xf]
      %v995 = vld [vmem:[%s980 + $0x38] sm:$0xf]
      %v996 = vld [vmem:[%s980 + $0x3c] sm:$0xf]
      %v997 = vld [vmem:[%s980 + $0x40] sm:$0xf]
      %v998 = vld [vmem:[%s980 + $0x44] sm:$0xf]
      %v999 = vld [vmem:[%s980 + $0x48] sm:$0xf]
      %v1000 = vld [vmem:[%s980 + $0x4c] sm:$0xf]
      %v1001 = vld [vmem:[%s980 + $0x50] sm:$0xf]
      %v1002 = vld [vmem:[%s980 + $0x54] sm:$0xf]
      %v1003 = vld [vmem:[%s980 + $0x58] sm:$0xf]
      %v1004 = vld [vmem:[%s980 + $0x5c] sm:$0xf]
      %v1005 = vld [vmem:[%s980 + $0x60] sm:$0xf]
      %v1006 = vld [vmem:[%s980 + $0x64] sm:$0xf]
      %v1007 = vld [vmem:[%s980 + $0x68] sm:$0xf]
      %v1008 = vld [vmem:[%s980 + $0x6c] sm:$0xf]
      %v1009 = vld [vmem:[%s980 + $0x70] sm:$0xf]
      %v1010 = vld [vmem:[%s980 + $0x74] sm:$0xf]
      %v1011 = vld [vmem:[%s980 + $0x78] sm:$0xf]
      %v1012 = vld [vmem:[%s980 + $0x7c] sm:$0xf]
      %v1045 = vunpack.c.l.b16 %v981
      %v1046 = vunpack.c.l.b16 %v982
      %v1047 = vunpack.c.l.b16 %v983
      %v1048 = vunpack.c.l.b16 %v984
      %v1049 = vunpack.c.l.b16 %v985
      %v1050 = vunpack.c.l.b16 %v986
      %v1051 = vunpack.c.l.b16 %v987
      %v1052 = vunpack.c.l.b16 %v988
      %v1053 = vunpack.c.l.b16 %v989
      %v1054 = vunpack.c.l.b16 %v990
      %v1055 = vunpack.c.l.b16 %v991
      %v1056 = vunpack.c.l.b16 %v992
      %v1057 = vunpack.c.l.b16 %v993
      %v1058 = vunpack.c.l.b16 %v994
      %v1059 = vunpack.c.l.b16 %v995
      %v1060 = vunpack.c.l.b16 %v996
      %v1061 = vunpack.c.l.b16 %v997
      %v1062 = vunpack.c.l.b16 %v998
      %v1063 = vunpack.c.l.b16 %v999
      %v1064 = vunpack.c.l.b16 %v1000
      %v1065 = vunpack.c.l.b16 %v1001
      %v1066 = vunpack.c.l.b16 %v1002
      %v1067 = vunpack.c.l.b16 %v1003
      %v1068 = vunpack.c.l.b16 %v1004
      %v1069 = vunpack.c.l.b16 %v1005
      %v1070 = vunpack.c.l.b16 %v1006
      %v1071 = vunpack.c.l.b16 %v1007
      %v1072 = vunpack.c.l.b16 %v1008
      %v1073 = vunpack.c.l.b16 %v1009
      %v1074 = vunpack.c.l.b16 %v1010
      %v1075 = vunpack.c.l.b16 %v1011
      %v1076 = vunpack.c.l.b16 %v1012
      %v1077 = vpack.c.b16 %v1046, %v1045
      %v1078 = vpack.c.b16 %v1048, %v1047
      %v1079 = vpack.c.b16 %v1050, %v1049
      %v1080 = vpack.c.b16 %v1052, %v1051
      %v1081 = vpack.c.b16 %v1054, %v1053
      %v1082 = vpack.c.b16 %v1056, %v1055
      %v1083 = vpack.c.b16 %v1058, %v1057
      %v1084 = vpack.c.b16 %v1060, %v1059
      %v1085 = vpack.c.b16 %v1062, %v1061
      %v1086 = vpack.c.b16 %v1064, %v1063
      %v1087 = vpack.c.b16 %v1066, %v1065
      %v1088 = vpack.c.b16 %v1068, %v1067
      %v1089 = vpack.c.b16 %v1070, %v1069
      %v1090 = vpack.c.b16 %v1072, %v1071
      %v1091 = vpack.c.b16 %v1074, %v1073
      %v1092 = vpack.c.b16 %v1076, %v1075
      %1109 = vmatprep.subr.bf16.mxu0 0
      %1110 = vmatpush1.bf16.msra.mxu0 %v1077
      %1111 = vmatprep.subr.bf16.mxu0 0
      %1112 = vmatpush1.bf16.msra.mxu0 %v1078
      %1113 = vmatprep.subr.bf16.mxu0 0
      %1114 = vmatpush1.bf16.msra.mxu0 %v1079
      %1115 = vmatprep.subr.bf16.mxu0 0
      %1116 = vmatpush1.bf16.msra.mxu0 %v1080
      %1117 = vmatprep.subr.bf16.mxu0 0
      %1118 = vmatpush1.bf16.msra.mxu0 %v1081
      %1119 = vmatprep.subr.bf16.mxu0 0
      %1120 = vmatpush1.bf16.msra.mxu0 %v1082
      %1121 = vmatprep.subr.bf16.mxu0 0
      %1122 = vmatpush1.bf16.msra.mxu0 %v1083
      %1123 = vmatprep.subr.bf16.mxu0 0
      %1124 = vmatpush1.bf16.msra.mxu0 %v1084
      %1125 = vmatprep.subr.bf16.mxu0 0
      %1126 = vmatpush1.bf16.msra.mxu0 %v1085
      %1127 = vmatprep.subr.bf16.mxu0 0
      %1128 = vmatpush1.bf16.msra.mxu0 %v1086
      %1129 = vmatprep.subr.bf16.mxu0 0
      %1130 = vmatpush1.bf16.msra.mxu0 %v1087
      %1131 = vmatprep.subr.bf16.mxu0 0
      %1132 = vmatpush1.bf16.msra.mxu0 %v1088
      %1133 = vmatprep.subr.bf16.mxu0 0
      %1134 = vmatpush1.bf16.msra.mxu0 %v1089
      %1135 = vmatprep.subr.bf16.mxu0 0
      %1136 = vmatpush1.bf16.msra.mxu0 %v1090
      %1137 = vmatprep.subr.bf16.mxu0 0
      %1138 = vmatpush1.bf16.msra.mxu0 %v1091
      %1139 = vmatprep.subr.bf16.mxu0 0
      %1140 = vmatpush1.bf16.msra.mxu0 %v1092
      %1141 = vmatprep.mubr.bf16.mxu0 %v973
      %1142 = vmatmul.mubr.bf16.gmra.mrb[0].mxu0 %v972
      %v1143 = vpop.f32.mrb[0].mxu0
      %v1144 = vadd.f32 0.0, %v1143
      %v1145 = vpop.f32.mrb[0].mxu0
      %v1146 = vpop.f32.mrb[0].mxu0
      %v1147 = vadd.f32 0.0, %v1146
      %v1148 = vpop.f32.mrb[0].mxu0
      %1149 = vmatprep.mubr.bf16.mxu0 %v975
      %1150 = vmatmul.mubr.bf16.gmra.mrb[0].mxu0 %v974
      %v1151 = vpop.f32.mrb[0].mxu0
      %v1152 = vadd.f32 0.0, %v1151
      %v1153 = vpop.f32.mrb[0].mxu0
      %v1154 = vpop.f32.mrb[0].mxu0
      %v1155 = vadd.f32 0.0, %v1154
      %v1156 = vpop.f32.mrb[0].mxu0
      %1157 = vmatprep.mubr.bf16.mxu0 %v977
      %1158 = vmatmul.mubr.bf16.gmra.mrb[0].mxu0 %v976
      %v1159 = vpop.f32.mrb[0].mxu0
      %v1160 = vadd.f32 0.0, %v1159
      %v1161 = vpop.f32.mrb[0].mxu0
      %v1162 = vpop.f32.mrb[0].mxu0
      %v1163 = vadd.f32 0.0, %v1162
      %v1164 = vpop.f32.mrb[0].mxu0
      %1165 = vmatprep.mubr.bf16.mxu0 %v979
      %1166 = vmatmul.mubr.bf16.gmra.mrb[0].mxu0 %v978
      %v1167 = vpop.f32.mrb[0].mxu0
      %v1168 = vadd.f32 0.0, %v1167
      %v1169 = vpop.f32.mrb[0].mxu0
      %v1170 = vpop.f32.mrb[0].mxu0
      %v1171 = vadd.f32 0.0, %v1170
      %v1172 = vpop.f32.mrb[0].mxu0
      %1173 = vdwg.mxu0
      %v1174 = vld [vmem:[#allocation2] sm:$0xff]
      %v1175 = vld [vmem:[#allocation2 + $0x8] sm:$0xff]
      %v1176 = vld [vmem:[#allocation2 + $0x10] sm:$0xff]
      %v1177 = vld [vmem:[#allocation2 + $0x18] sm:$0xff]
      %v1178 = vld [vmem:[#allocation2 + $0x20] sm:$0xff]
      %v1179 = vld [vmem:[#allocation2 + $0x28] sm:$0xff]
      %v1180 = vld [vmem:[#allocation2 + $0x30] sm:$0xff]
      %v1181 = vld [vmem:[#allocation2 + $0x38] sm:$0xff]
      %v1182 = vadd.f32 %v1174, %v1144
      %v1183 = vadd.f32 %v1175, %v1147
      %v1184 = vadd.f32 %v1176, %v1152
      %v1185 = vadd.f32 %v1177, %v1155
      %v1186 = vadd.f32 %v1178, %v1160
      %v1187 = vadd.f32 %v1179, %v1163
      %v1188 = vadd.f32 %v1180, %v1168
      %v1189 = vadd.f32 %v1181, %v1171
      %1190 = vst [vmem:[#allocation2] sm:$0xff] %v1182
      %1191 = vst [vmem:[#allocation2 + $0x8] sm:$0xff] %v1183
      %1192 = vst [vmem:[#allocation2 + $0x10] sm:$0xff] %v1184
      %1193 = vst [vmem:[#allocation2 + $0x18] sm:$0xff] %v1185
      %1194 = vst [vmem:[#allocation2 + $0x20] sm:$0xff] %v1186
      %1195 = vst [vmem:[#allocation2 + $0x28] sm:$0xff] %v1187
      %1196 = vst [vmem:[#allocation2 + $0x30] sm:$0xff] %v1188
      %1197 = vst [vmem:[#allocation2 + $0x38] sm:$0xff] %v1189
      %s1198 = scalar_lea.vmem %s1, 1024
      %v1199 = vld [vmem:[%s1198] sm:$0xf]
      %v1200 = vld [vmem:[%s1198 + $0x4] sm:$0xf]
      %v1201 = vld [vmem:[%s1198 + $0x8] sm:$0xf]
      %v1202 = vld [vmem:[%s1198 + $0xc] sm:$0xf]
      %v1203 = vld [vmem:[%s1198 + $0x10] sm:$0xf]
      %v1204 = vld [vmem:[%s1198 + $0x14] sm:$0xf]
      %v1205 = vld [vmem:[%s1198 + $0x18] sm:$0xf]
      %v1206 = vld [vmem:[%s1198 + $0x1c] sm:$0xf]
      %v1207 = vld [vmem:[%s1198 + $0x20] sm:$0xf]
      %v1208 = vld [vmem:[%s1198 + $0x24] sm:$0xf]
      %v1209 = vld [vmem:[%s1198 + $0x28] sm:$0xf]
      %v1210 = vld [vmem:[%s1198 + $0x2c] sm:$0xf]
      %v1211 = vld [vmem:[%s1198 + $0x30] sm:$0xf]
      %v1212 = vld [vmem:[%s1198 + $0x34] sm:$0xf]
      %v1213 = vld [vmem:[%s1198 + $0x38] sm:$0xf]
      %v1214 = vld [vmem:[%s1198 + $0x3c] sm:$0xf]
      %v1215 = vld [vmem:[%s1198 + $0x40] sm:$0xf]
      %v1216 = vld [vmem:[%s1198 + $0x44] sm:$0xf]
      %v1217 = vld [vmem:[%s1198 + $0x48] sm:$0xf]
      %v1218 = vld [vmem:[%s1198 + $0x4c] sm:$0xf]
      %v1219 = vld [vmem:[%s1198 + $0x50] sm:$0xf]
      %v1220 = vld [vmem:[%s1198 + $0x54] sm:$0xf]
      %v1221 = vld [vmem:[%s1198 + $0x58] sm:$0xf]
      %v1222 = vld [vmem:[%s1198 + $0x5c] sm:$0xf]
      %v1223 = vld [vmem:[%s1198 + $0x60] sm:$0xf]
      %v1224 = vld [vmem:[%s1198 + $0x64] sm:$0xf]
      %v1225 = vld [vmem:[%s1198 + $0x68] sm:$0xf]
      %v1226 = vld [vmem:[%s1198 + $0x6c] sm:$0xf]
      %v1227 = vld [vmem:[%s1198 + $0x70] sm:$0xf]
      %v1228 = vld [vmem:[%s1198 + $0x74] sm:$0xf]
      %v1229 = vld [vmem:[%s1198 + $0x78] sm:$0xf]
      %v1230 = vld [vmem:[%s1198 + $0x7c] sm:$0xf]
      %v1263 = vunpack.c.l.b16 %v1199
      %v1264 = vunpack.c.l.b16 %v1200
      %v1265 = vunpack.c.l.b16 %v1201
      %v1266 = vunpack.c.l.b16 %v1202
      %v1267 = vunpack.c.l.b16 %v1203
      %v1268 = vunpack.c.l.b16 %v1204
      %v1269 = vunpack.c.l.b16 %v1205
      %v1270 = vunpack.c.l.b16 %v1206
      %v1271 = vunpack.c.l.b16 %v1207
      %v1272 = vunpack.c.l.b16 %v1208
      %v1273 = vunpack.c.l.b16 %v1209
      %v1274 = vunpack.c.l.b16 %v1210
      %v1275 = vunpack.c.l.b16 %v1211
      %v1276 = vunpack.c.l.b16 %v1212
      %v1277 = vunpack.c.l.b16 %v1213
      %v1278 = vunpack.c.l.b16 %v1214
      %v1279 = vunpack.c.l.b16 %v1215
      %v1280 = vunpack.c.l.b16 %v1216
      %v1281 = vunpack.c.l.b16 %v1217
      %v1282 = vunpack.c.l.b16 %v1218
      %v1283 = vunpack.c.l.b16 %v1219
      %v1284 = vunpack.c.l.b16 %v1220
      %v1285 = vunpack.c.l.b16 %v1221
      %v1286 = vunpack.c.l.b16 %v1222
      %v1287 = vunpack.c.l.b16 %v1223
      %v1288 = vunpack.c.l.b16 %v1224
      %v1289 = vunpack.c.l.b16 %v1225
      %v1290 = vunpack.c.l.b16 %v1226
      %v1291 = vunpack.c.l.b16 %v1227
      %v1292 = vunpack.c.l.b16 %v1228
      %v1293 = vunpack.c.l.b16 %v1229
      %v1294 = vunpack.c.l.b16 %v1230
      %v1295 = vpack.c.b16 %v1264, %v1263
      %v1296 = vpack.c.b16 %v1266, %v1265
      %v1297 = vpack.c.b16 %v1268, %v1267
      %v1298 = vpack.c.b16 %v1270, %v1269
      %v1299 = vpack.c.b16 %v1272, %v1271
      %v1300 = vpack.c.b16 %v1274, %v1273
      %v1301 = vpack.c.b16 %v1276, %v1275
      %v1302 = vpack.c.b16 %v1278, %v1277
      %v1303 = vpack.c.b16 %v1280, %v1279
      %v1304 = vpack.c.b16 %v1282, %v1281
      %v1305 = vpack.c.b16 %v1284, %v1283
      %v1306 = vpack.c.b16 %v1286, %v1285
      %v1307 = vpack.c.b16 %v1288, %v1287
      %v1308 = vpack.c.b16 %v1290, %v1289
      %v1309 = vpack.c.b16 %v1292, %v1291
      %v1310 = vpack.c.b16 %v1294, %v1293
      %1327 = vmatprep.subr.bf16.mxu0 0
      %1328 = vmatpush1.bf16.msra.mxu0 %v1295
      %1329 = vmatprep.subr.bf16.mxu0 0
      %1330 = vmatpush1.bf16.msra.mxu0 %v1296
      %1331 = vmatprep.subr.bf16.mxu0 0
      %1332 = vmatpush1.bf16.msra.mxu0 %v1297
      %1333 = vmatprep.subr.bf16.mxu0 0
      %1334 = vmatpush1.bf16.msra.mxu0 %v1298
      %1335 = vmatprep.subr.bf16.mxu0 0
      %1336 = vmatpush1.bf16.msra.mxu0 %v1299
      %1337 = vmatprep.subr.bf16.mxu0 0
      %1338 = vmatpush1.bf16.msra.mxu0 %v1300
      %1339 = vmatprep.subr.bf16.mxu0 0
      %1340 = vmatpush1.bf16.msra.mxu0 %v1301
      %1341 = vmatprep.subr.bf16.mxu0 0
      %1342 = vmatpush1.bf16.msra.mxu0 %v1302
      %1343 = vmatprep.subr.bf16.mxu0 0
      %1344 = vmatpush1.bf16.msra.mxu0 %v1303
      %1345 = vmatprep.subr.bf16.mxu0 0
      %1346 = vmatpush1.bf16.msra.mxu0 %v1304
      %1347 = vmatprep.subr.bf16.mxu0 0
      %1348 = vmatpush1.bf16.msra.mxu0 %v1305
      %1349 = vmatprep.subr.bf16.mxu0 0
      %1350 = vmatpush1.bf16.msra.mxu0 %v1306
      %1351 = vmatprep.subr.bf16.mxu0 0
      %1352 = vmatpush1.bf16.msra.mxu0 %v1307
      %1353 = vmatprep.subr.bf16.mxu0 0
      %1354 = vmatpush1.bf16.msra.mxu0 %v1308
      %1355 = vmatprep.subr.bf16.mxu0 0
      %1356 = vmatpush1.bf16.msra.mxu0 %v1309
      %1357 = vmatprep.subr.bf16.mxu0 0
      %1358 = vmatpush1.bf16.msra.mxu0 %v1310
      %1359 = vmatprep.mubr.bf16.mxu0 %v973
      %1360 = vmatmul.mubr.bf16.gmra.mrb[0].mxu0 %v972
      %v1361 = vpop.f32.mrb[0].mxu0
      %v1362 = vadd.f32 0.0, %v1361
      %v1363 = vpop.f32.mrb[0].mxu0
      %v1364 = vpop.f32.mrb[0].mxu0
      %v1365 = vadd.f32 0.0, %v1364
      %v1366 = vpop.f32.mrb[0].mxu0
      %1367 = vmatprep.mubr.bf16.mxu0 %v975
      %1368 = vmatmul.mubr.bf16.gmra.mrb[0].mxu0 %v974
      %v1369 = vpop.f32.mrb[0].mxu0
      %v1370 = vadd.f32 0.0, %v1369
      %v1371 = vpop.f32.mrb[0].mxu0
      %v1372 = vpop.f32.mrb[0].mxu0
      %v1373 = vadd.f32 0.0, %v1372
      %v1374 = vpop.f32.mrb[0].mxu0
      %1375 = vmatprep.mubr.bf16.mxu0 %v977
      %1376 = vmatmul.mubr.bf16.gmra.mrb[0].mxu0 %v976
      %v1377 = vpop.f32.mrb[0].mxu0
      %v1378 = vadd.f32 0.0, %v1377
      %v1379 = vpop.f32.mrb[0].mxu0
      %v1380 = vpop.f32.mrb[0].mxu0
      %v1381 = vadd.f32 0.0, %v1380
      %v1382 = vpop.f32.mrb[0].mxu0
      %1383 = vmatprep.mubr.bf16.mxu0 %v979
      %1384 = vmatmul.mubr.bf16.gmra.mrb[0].mxu0 %v978
      %v1385 = vpop.f32.mrb[0].mxu0
      %v1386 = vadd.f32 0.0, %v1385
      %v1387 = vpop.f32.mrb[0].mxu0
      %v1388 = vpop.f32.mrb[0].mxu0
      %v1389 = vadd.f32 0.0, %v1388
      %v1390 = vpop.f32.mrb[0].mxu0
      %1391 = vdwg.mxu0
      %s1392 = scalar_lea.vmem [#allocation2], 128
      %1393 = vst [vmem:[%s1392] sm:$0xff] %v1362
      %1394 = vst [vmem:[%s1392 + $0x8] sm:$0xff] %v1365
      %1395 = vst [vmem:[%s1392 + $0x10] sm:$0xff] %v1370
      %1396 = vst [vmem:[%s1392 + $0x18] sm:$0xff] %v1373
      %1397 = vst [vmem:[%s1392 + $0x20] sm:$0xff] %v1378
      %1398 = vst [vmem:[%s1392 + $0x28] sm:$0xff] %v1381
      %1399 = vst [vmem:[%s1392 + $0x30] sm:$0xff] %v1386
      %1400 = vst [vmem:[%s1392 + $0x38] sm:$0xff] %v1389
      %v1401 = vld [vmem:[%s955] sm:$0xfe]
      %v1402 = vld [vmem:[%s955 + $0x8] sm:$0xfe]
      %v1403 = vld [vmem:[%s955 + $0x10] sm:$0x1]
      %v1404 = vld [vmem:[%s955 + $0x18] sm:$0x1]
      %v1405 = vld [vmem:[%s955 + $0x20] sm:$0xfe]
      %v1406 = vld [vmem:[%s955 + $0x28] sm:$0xfe]
      %v1407 = vld [vmem:[%s955 + $0x30] sm:$0x1]
      %v1408 = vld [vmem:[%s955 + $0x38] sm:$0x1]
      %v1409 = vld [vmem:[%s955 + $0x40] sm:$0xfe]
      %v1410 = vld [vmem:[%s955 + $0x48] sm:$0xfe]
      %v1411 = vld [vmem:[%s955 + $0x50] sm:$0x1]
      %v1412 = vld [vmem:[%s955 + $0x58] sm:$0x1]
      %v1413 = vld [vmem:[%s955 + $0x60] sm:$0xfe]
      %v1414 = vld [vmem:[%s955 + $0x68] sm:$0xfe]
      %v1415 = vld [vmem:[%s955 + $0x70] sm:$0x1]
      %v1416 = vld [vmem:[%s955 + $0x78] sm:$0x1]
      %v1417 = vld [vmem:[%s955 + $0x80] sm:$0xfe]
      %v1418 = vld [vmem:[%s955 + $0x88] sm:$0xfe]
      %v1419 = vld [vmem:[%s955 + $0x90] sm:$0x1]
      %v1420 = vld [vmem:[%s955 + $0x98] sm:$0x1]
      %v1421 = vld [vmem:[%s955 + $0xa0] sm:$0xfe]
      %v1422 = vld [vmem:[%s955 + $0xa8] sm:$0xfe]
      %v1423 = vld [vmem:[%s955 + $0xb0] sm:$0x1]
      %v1424 = vld [vmem:[%s955 + $0xb8] sm:$0x1]
      %v1425 = vld [vmem:[%s955 + $0xc0] sm:$0xfe]
      %v1426 = vld [vmem:[%s955 + $0xc8] sm:$0xfe]
      %v1427 = vld [vmem:[%s955 + $0xd0] sm:$0x1]
      %v1428 = vld [vmem:[%s955 + $0xd8] sm:$0x1]
      %v1429 = vld [vmem:[%s955 + $0xe0] sm:$0xfe]
      %v1430 = vld [vmem:[%s955 + $0xe8] sm:$0xfe]
      %v1431 = vld [vmem:[%s955 + $0xf0] sm:$0x1]
      %v1432 = vld [vmem:[%s955 + $0xf8] sm:$0x1]
      %v1465 = vrot.slane %v1401, 1
      %v1466 = vrot.slane %v1403, 1
      %v1467 = vsel %vm461, %v1465, %v1466
      %v1468 = vrot.slane %v1402, 1
      %v1469 = vrot.slane %v1404, 1
      %v1470 = vsel %vm461, %v1468, %v1469
      %v1471 = vrot.slane %v1405, 1
      %v1472 = vrot.slane %v1407, 1
      %v1473 = vsel %vm461, %v1471, %v1472
      %v1474 = vrot.slane %v1406, 1
      %v1475 = vrot.slane %v1408, 1
      %v1476 = vsel %vm461, %v1474, %v1475
      %v1477 = vrot.slane %v1409, 1
      %v1478 = vrot.slane %v1411, 1
      %v1479 = vsel %vm461, %v1477, %v1478
      %v1480 = vrot.slane %v1410, 1
      %v1481 = vrot.slane %v1412, 1
      %v1482 = vsel %vm461, %v1480, %v1481
      %v1483 = vrot.slane %v1413, 1
      %v1484 = vrot.slane %v1415, 1
      %v1485 = vsel %vm461, %v1483, %v1484
      %v1486 = vrot.slane %v1414, 1
      %v1487 = vrot.slane %v1416, 1
      %v1488 = vsel %vm461, %v1486, %v1487
      %v1489 = vrot.slane %v1417, 1
      %v1490 = vrot.slane %v1419, 1
      %v1491 = vsel %vm461, %v1489, %v1490
      %v1492 = vrot.slane %v1418, 1
      %v1493 = vrot.slane %v1420, 1
      %v1494 = vsel %vm461, %v1492, %v1493
      %v1495 = vrot.slane %v1421, 1
      %v1496 = vrot.slane %v1423, 1
      %v1497 = vsel %vm461, %v1495, %v1496
      %v1498 = vrot.slane %v1422, 1
      %v1499 = vrot.slane %v1424, 1
      %v1500 = vsel %vm461, %v1498, %v1499
      %v1501 = vrot.slane %v1425, 1
      %v1502 = vrot.slane %v1427, 1
      %v1503 = vsel %vm461, %v1501, %v1502
      %v1504 = vrot.slane %v1426, 1
      %v1505 = vrot.slane %v1428, 1
      %v1506 = vsel %vm461, %v1504, %v1505
      %v1507 = vrot.slane %v1429, 1
      %v1508 = vrot.slane %v1431, 1
      %v1509 = vsel %vm461, %v1507, %v1508
      %v1510 = vrot.slane %v1430, 1
      %v1511 = vrot.slane %v1432, 1
      %v1512 = vsel %vm461, %v1510, %v1511
      %v1529 = vpack.c.bf16 %v1473, %v1467
      %v1530 = vpack.c.bf16 %v1476, %v1470
      %v1531 = vpack.c.bf16 %v1485, %v1479
      %v1532 = vpack.c.bf16 %v1488, %v1482
      %v1533 = vpack.c.bf16 %v1497, %v1491
      %v1534 = vpack.c.bf16 %v1500, %v1494
      %v1535 = vpack.c.bf16 %v1509, %v1503
      %v1536 = vpack.c.bf16 %v1512, %v1506
      %s1537 = scalar_lea.vmem %s1, 384
      %v1538 = vld [vmem:[%s1537] sm:$0xf]
      %v1539 = vld [vmem:[%s1537 + $0x4] sm:$0xf]
      %v1540 = vld [vmem:[%s1537 + $0x8] sm:$0xf]
      %v1541 = vld [vmem:[%s1537 + $0xc] sm:$0xf]
      %v1542 = vld [vmem:[%s1537 + $0x10] sm:$0xf]
      %v1543 = vld [vmem:[%s1537 + $0x14] sm:$0xf]
      %v1544 = vld [vmem:[%s1537 + $0x18] sm:$0xf]
      %v1545 = vld [vmem:[%s1537 + $0x1c] sm:$0xf]
      %v1546 = vld [vmem:[%s1537 + $0x20] sm:$0xf]
      %v1547 = vld [vmem:[%s1537 + $0x24] sm:$0xf]
      %v1548 = vld [vmem:[%s1537 + $0x28] sm:$0xf]
      %v1549 = vld [vmem:[%s1537 + $0x2c] sm:$0xf]
      %v1550 = vld [vmem:[%s1537 + $0x30] sm:$0xf]
      %v1551 = vld [vmem:[%s1537 + $0x34] sm:$0xf]
      %v1552 = vld [vmem:[%s1537 + $0x38] sm:$0xf]
      %v1553 = vld [vmem:[%s1537 + $0x3c] sm:$0xf]
      %v1554 = vld [vmem:[%s1537 + $0x40] sm:$0xf]
      %v1555 = vld [vmem:[%s1537 + $0x44] sm:$0xf]
      %v1556 = vld [vmem:[%s1537 + $0x48] sm:$0xf]
      %v1557 = vld [vmem:[%s1537 + $0x4c] sm:$0xf]
      %v1558 = vld [vmem:[%s1537 + $0x50] sm:$0xf]
      %v1559 = vld [vmem:[%s1537 + $0x54] sm:$0xf]
      %v1560 = vld [vmem:[%s1537 + $0x58] sm:$0xf]
      %v1561 = vld [vmem:[%s1537 + $0x5c] sm:$0xf]
      %v1562 = vld [vmem:[%s1537 + $0x60] sm:$0xf]
      %v1563 = vld [vmem:[%s1537 + $0x64] sm:$0xf]
      %v1564 = vld [vmem:[%s1537 + $0x68] sm:$0xf]
      %v1565 = vld [vmem:[%s1537 + $0x6c] sm:$0xf]
      %v1566 = vld [vmem:[%s1537 + $0x70] sm:$0xf]
      %v1567 = vld [vmem:[%s1537 + $0x74] sm:$0xf]
      %v1568 = vld [vmem:[%s1537 + $0x78] sm:$0xf]
      %v1569 = vld [vmem:[%s1537 + $0x7c] sm:$0xf]
      %v1602 = vunpack.c.l.b16 %v1538
      %v1603 = vunpack.c.l.b16 %v1539
      %v1604 = vunpack.c.l.b16 %v1540
      %v1605 = vunpack.c.l.b16 %v1541
      %v1606 = vunpack.c.l.b16 %v1542
      %v1607 = vunpack.c.l.b16 %v1543
      %v1608 = vunpack.c.l.b16 %v1544
      %v1609 = vunpack.c.l.b16 %v1545
      %v1610 = vunpack.c.l.b16 %v1546
      %v1611 = vunpack.c.l.b16 %v1547
      %v1612 = vunpack.c.l.b16 %v1548
      %v1613 = vunpack.c.l.b16 %v1549
      %v1614 = vunpack.c.l.b16 %v1550
      %v1615 = vunpack.c.l.b16 %v1551
      %v1616 = vunpack.c.l.b16 %v1552
      %v1617 = vunpack.c.l.b16 %v1553
      %v1618 = vunpack.c.l.b16 %v1554
      %v1619 = vunpack.c.l.b16 %v1555
      %v1620 = vunpack.c.l.b16 %v1556
      %v1621 = vunpack.c.l.b16 %v1557
      %v1622 = vunpack.c.l.b16 %v1558
      %v1623 = vunpack.c.l.b16 %v1559
      %v1624 = vunpack.c.l.b16 %v1560
      %v1625 = vunpack.c.l.b16 %v1561
      %v1626 = vunpack.c.l.b16 %v1562
      %v1627 = vunpack.c.l.b16 %v1563
      %v1628 = vunpack.c.l.b16 %v1564
      %v1629 = vunpack.c.l.b16 %v1565
      %v1630 = vunpack.c.l.b16 %v1566
      %v1631 = vunpack.c.l.b16 %v1567
      %v1632 = vunpack.c.l.b16 %v1568
      %v1633 = vunpack.c.l.b16 %v1569
      %v1634 = vpack.c.b16 %v1603, %v1602
      %v1635 = vpack.c.b16 %v1605, %v1604
      %v1636 = vpack.c.b16 %v1607, %v1606
      %v1637 = vpack.c.b16 %v1609, %v1608
      %v1638 = vpack.c.b16 %v1611, %v1610
      %v1639 = vpack.c.b16 %v1613, %v1612
      %v1640 = vpack.c.b16 %v1615, %v1614
      %v1641 = vpack.c.b16 %v1617, %v1616
      %v1642 = vpack.c.b16 %v1619, %v1618
      %v1643 = vpack.c.b16 %v1621, %v1620
      %v1644 = vpack.c.b16 %v1623, %v1622
      %v1645 = vpack.c.b16 %v1625, %v1624
      %v1646 = vpack.c.b16 %v1627, %v1626
      %v1647 = vpack.c.b16 %v1629, %v1628
      %v1648 = vpack.c.b16 %v1631, %v1630
      %v1649 = vpack.c.b16 %v1633, %v1632
      %1666 = vmatprep.subr.bf16.mxu0 0
      %1667 = vmatpush1.bf16.msra.mxu0 %v1634
      %1668 = vmatprep.subr.bf16.mxu0 0
      %1669 = vmatpush1.bf16.msra.mxu0 %v1635
      %1670 = vmatprep.subr.bf16.mxu0 0
      %1671 = vmatpush1.bf16.msra.mxu0 %v1636
      %1672 = vmatprep.subr.bf16.mxu0 0
      %1673 = vmatpush1.bf16.msra.mxu0 %v1637
      %1674 = vmatprep.subr.bf16.mxu0 0
      %1675 = vmatpush1.bf16.msra.mxu0 %v1638
      %1676 = vmatprep.subr.bf16.mxu0 0
      %1677 = vmatpush1.bf16.msra.mxu0 %v1639
      %1678 = vmatprep.subr.bf16.mxu0 0
      %1679 = vmatpush1.bf16.msra.mxu0 %v1640
      %1680 = vmatprep.subr.bf16.mxu0 0
      %1681 = vmatpush1.bf16.msra.mxu0 %v1641
      %1682 = vmatprep.subr.bf16.mxu0 0
      %1683 = vmatpush1.bf16.msra.mxu0 %v1642
      %1684 = vmatprep.subr.bf16.mxu0 0
      %1685 = vmatpush1.bf16.msra.mxu0 %v1643
      %1686 = vmatprep.subr.bf16.mxu0 0
      %1687 = vmatpush1.bf16.msra.mxu0 %v1644
      %1688 = vmatprep.subr.bf16.mxu0 0
      %1689 = vmatpush1.bf16.msra.mxu0 %v1645
      %1690 = vmatprep.subr.bf16.mxu0 0
      %1691 = vmatpush1.bf16.msra.mxu0 %v1646
      %1692 = vmatprep.subr.bf16.mxu0 0
      %1693 = vmatpush1.bf16.msra.mxu0 %v1647
      %1694 = vmatprep.subr.bf16.mxu0 0
      %1695 = vmatpush1.bf16.msra.mxu0 %v1648
      %1696 = vmatprep.subr.bf16.mxu0 0
      %1697 = vmatpush1.bf16.msra.mxu0 %v1649
      %1698 = vmatprep.mubr.bf16.mxu0 %v1530
      %1699 = vmatmul.mubr.bf16.gmra.mrb[0].mxu0 %v1529
      %v1700 = vpop.f32.mrb[0].mxu0
      %v1701 = vadd.f32 0.0, %v1700
      %v1702 = vpop.f32.mrb[0].mxu0
      %v1703 = vpop.f32.mrb[0].mxu0
      %v1704 = vadd.f32 0.0, %v1703
      %v1705 = vpop.f32.mrb[0].mxu0
      %1706 = vmatprep.mubr.bf16.mxu0 %v1532
      %1707 = vmatmul.mubr.bf16.gmra.mrb[0].mxu0 %v1531
      %v1708 = vpop.f32.mrb[0].mxu0
      %v1709 = vadd.f32 0.0, %v1708
      %v1710 = vpop.f32.mrb[0].mxu0
      %v1711 = vpop.f32.mrb[0].mxu0
      %v1712 = vadd.f32 0.0, %v1711
      %v1713 = vpop.f32.mrb[0].mxu0
      %1714 = vmatprep.mubr.bf16.mxu0 %v1534
      %1715 = vmatmul.mubr.bf16.gmra.mrb[0].mxu0 %v1533
      %v1716 = vpop.f32.mrb[0].mxu0
      %v1717 = vadd.f32 0.0, %v1716
      %v1718 = vpop.f32.mrb[0].mxu0
      %v1719 = vpop.f32.mrb[0].mxu0
      %v1720 = vadd.f32 0.0, %v1719
      %v1721 = vpop.f32.mrb[0].mxu0
      %1722 = vmatprep.mubr.bf16.mxu0 %v1536
      %1723 = vmatmul.mubr.bf16.gmra.mrb[0].mxu0 %v1535
      %v1724 = vpop.f32.mrb[0].mxu0
      %v1725 = vadd.f32 0.0, %v1724
      %v1726 = vpop.f32.mrb[0].mxu0
      %v1727 = vpop.f32.mrb[0].mxu0
      %v1728 = vadd.f32 0.0, %v1727
      %v1729 = vpop.f32.mrb[0].mxu0
      %1730 = vdwg.mxu0
      %v1731 = vld [vmem:[#allocation2] sm:$0xff]
      %v1732 = vld [vmem:[#allocation2 + $0x8] sm:$0xff]
      %v1733 = vld [vmem:[#allocation2 + $0x10] sm:$0xff]
      %v1734 = vld [vmem:[#allocation2 + $0x18] sm:$0xff]
      %v1735 = vld [vmem:[#allocation2 + $0x20] sm:$0xff]
      %v1736 = vld [vmem:[#allocation2 + $0x28] sm:$0xff]
      %v1737 = vld [vmem:[#allocation2 + $0x30] sm:$0xff]
      %v1738 = vld [vmem:[#allocation2 + $0x38] sm:$0xff]
      %v1739 = vadd.f32 %v1731, %v1701
      %v1740 = vadd.f32 %v1732, %v1704
      %v1741 = vadd.f32 %v1733, %v1709
      %v1742 = vadd.f32 %v1734, %v1712
      %v1743 = vadd.f32 %v1735, %v1717
      %v1744 = vadd.f32 %v1736, %v1720
      %v1745 = vadd.f32 %v1737, %v1725
      %v1746 = vadd.f32 %v1738, %v1728
      %1747 = vst [vmem:[#allocation2] sm:$0xff] %v1739
      %1748 = vst [vmem:[#allocation2 + $0x8] sm:$0xff] %v1740
      %1749 = vst [vmem:[#allocation2 + $0x10] sm:$0xff] %v1741
      %1750 = vst [vmem:[#allocation2 + $0x18] sm:$0xff] %v1742
      %1751 = vst [vmem:[#allocation2 + $0x20] sm:$0xff] %v1743
      %1752 = vst [vmem:[#allocation2 + $0x28] sm:$0xff] %v1744
      %1753 = vst [vmem:[#allocation2 + $0x30] sm:$0xff] %v1745
      %1754 = vst [vmem:[#allocation2 + $0x38] sm:$0xff] %v1746
      %s1755 = scalar_lea.vmem %s1, 768
      %v1756 = vld [vmem:[%s1755] sm:$0xf]
      %v1757 = vld [vmem:[%s1755 + $0x4] sm:$0xf]
      %v1758 = vld [vmem:[%s1755 + $0x8] sm:$0xf]
      %v1759 = vld [vmem:[%s1755 + $0xc] sm:$0xf]
      %v1760 = vld [vmem:[%s1755 + $0x10] sm:$0xf]
      %v1761 = vld [vmem:[%s1755 + $0x14] sm:$0xf]
      %v1762 = vld [vmem:[%s1755 + $0x18] sm:$0xf]
      %v1763 = vld [vmem:[%s1755 + $0x1c] sm:$0xf]
      %v1764 = vld [vmem:[%s1755 + $0x20] sm:$0xf]
      %v1765 = vld [vmem:[%s1755 + $0x24] sm:$0xf]
      %v1766 = vld [vmem:[%s1755 + $0x28] sm:$0xf]
      %v1767 = vld [vmem:[%s1755 + $0x2c] sm:$0xf]
      %v1768 = vld [vmem:[%s1755 + $0x30] sm:$0xf]
      %v1769 = vld [vmem:[%s1755 + $0x34] sm:$0xf]
      %v1770 = vld [vmem:[%s1755 + $0x38] sm:$0xf]
      %v1771 = vld [vmem:[%s1755 + $0x3c] sm:$0xf]
      %v1772 = vld [vmem:[%s1755 + $0x40] sm:$0xf]
      %v1773 = vld [vmem:[%s1755 + $0x44] sm:$0xf]
      %v1774 = vld [vmem:[%s1755 + $0x48] sm:$0xf]
      %v1775 = vld [vmem:[%s1755 + $0x4c] sm:$0xf]
      %v1776 = vld [vmem:[%s1755 + $0x50] sm:$0xf]
      %v1777 = vld [vmem:[%s1755 + $0x54] sm:$0xf]
      %v1778 = vld [vmem:[%s1755 + $0x58] sm:$0xf]
      %v1779 = vld [vmem:[%s1755 + $0x5c] sm:$0xf]
      %v1780 = vld [vmem:[%s1755 + $0x60] sm:$0xf]
      %v1781 = vld [vmem:[%s1755 + $0x64] sm:$0xf]
      %v1782 = vld [vmem:[%s1755 + $0x68] sm:$0xf]
      %v1783 = vld [vmem:[%s1755 + $0x6c] sm:$0xf]
      %v1784 = vld [vmem:[%s1755 + $0x70] sm:$0xf]
      %v1785 = vld [vmem:[%s1755 + $0x74] sm:$0xf]
      %v1786 = vld [vmem:[%s1755 + $0x78] sm:$0xf]
      %v1787 = vld [vmem:[%s1755 + $0x7c] sm:$0xf]
      %v1820 = vunpack.c.l.b16 %v1756
      %v1821 = vunpack.c.l.b16 %v1757
      %v1822 = vunpack.c.l.b16 %v1758
      %v1823 = vunpack.c.l.b16 %v1759
      %v1824 = vunpack.c.l.b16 %v1760
      %v1825 = vunpack.c.l.b16 %v1761
      %v1826 = vunpack.c.l.b16 %v1762
      %v1827 = vunpack.c.l.b16 %v1763
      %v1828 = vunpack.c.l.b16 %v1764
      %v1829 = vunpack.c.l.b16 %v1765
      %v1830 = vunpack.c.l.b16 %v1766
      %v1831 = vunpack.c.l.b16 %v1767
      %v1832 = vunpack.c.l.b16 %v1768
      %v1833 = vunpack.c.l.b16 %v1769
      %v1834 = vunpack.c.l.b16 %v1770
      %v1835 = vunpack.c.l.b16 %v1771
      %v1836 = vunpack.c.l.b16 %v1772
      %v1837 = vunpack.c.l.b16 %v1773
      %v1838 = vunpack.c.l.b16 %v1774
      %v1839 = vunpack.c.l.b16 %v1775
      %v1840 = vunpack.c.l.b16 %v1776
      %v1841 = vunpack.c.l.b16 %v1777
      %v1842 = vunpack.c.l.b16 %v1778
      %v1843 = vunpack.c.l.b16 %v1779
      %v1844 = vunpack.c.l.b16 %v1780
      %v1845 = vunpack.c.l.b16 %v1781
      %v1846 = vunpack.c.l.b16 %v1782
      %v1847 = vunpack.c.l.b16 %v1783
      %v1848 = vunpack.c.l.b16 %v1784
      %v1849 = vunpack.c.l.b16 %v1785
      %v1850 = vunpack.c.l.b16 %v1786
      %v1851 = vunpack.c.l.b16 %v1787
      %v1852 = vpack.c.b16 %v1821, %v1820
      %v1853 = vpack.c.b16 %v1823, %v1822
      %v1854 = vpack.c.b16 %v1825, %v1824
      %v1855 = vpack.c.b16 %v1827, %v1826
      %v1856 = vpack.c.b16 %v1829, %v1828
      %v1857 = vpack.c.b16 %v1831, %v1830
      %v1858 = vpack.c.b16 %v1833, %v1832
      %v1859 = vpack.c.b16 %v1835, %v1834
      %v1860 = vpack.c.b16 %v1837, %v1836
      %v1861 = vpack.c.b16 %v1839, %v1838
      %v1862 = vpack.c.b16 %v1841, %v1840
      %v1863 = vpack.c.b16 %v1843, %v1842
      %v1864 = vpack.c.b16 %v1845, %v1844
      %v1865 = vpack.c.b16 %v1847, %v1846
      %v1866 = vpack.c.b16 %v1849, %v1848
      %v1867 = vpack.c.b16 %v1851, %v1850
      %1884 = vmatprep.subr.bf16.mxu0 0
      %1885 = vmatpush1.bf16.msra.mxu0 %v1852
      %1886 = vmatprep.subr.bf16.mxu0 0
      %1887 = vmatpush1.bf16.msra.mxu0 %v1853
      %1888 = vmatprep.subr.bf16.mxu0 0
      %1889 = vmatpush1.bf16.msra.mxu0 %v1854
      %1890 = vmatprep.subr.bf16.mxu0 0
      %1891 = vmatpush1.bf16.msra.mxu0 %v1855
      %1892 = vmatprep.subr.bf16.mxu0 0
      %1893 = vmatpush1.bf16.msra.mxu0 %v1856
      %1894 = vmatprep.subr.bf16.mxu0 0
      %1895 = vmatpush1.bf16.msra.mxu0 %v1857
      %1896 = vmatprep.subr.bf16.mxu0 0
      %1897 = vmatpush1.bf16.msra.mxu0 %v1858
      %1898 = vmatprep.subr.bf16.mxu0 0
      %1899 = vmatpush1.bf16.msra.mxu0 %v1859
      %1900 = vmatprep.subr.bf16.mxu0 0
      %1901 = vmatpush1.bf16.msra.mxu0 %v1860
      %1902 = vmatprep.subr.bf16.mxu0 0
      %1903 = vmatpush1.bf16.msra.mxu0 %v1861
      %1904 = vmatprep.subr.bf16.mxu0 0
      %1905 = vmatpush1.bf16.msra.mxu0 %v1862
      %1906 = vmatprep.subr.bf16.mxu0 0
      %1907 = vmatpush1.bf16.msra.mxu0 %v1863
      %1908 = vmatprep.subr.bf16.mxu0 0
      %1909 = vmatpush1.bf16.msra.mxu0 %v1864
      %1910 = vmatprep.subr.bf16.mxu0 0
      %1911 = vmatpush1.bf16.msra.mxu0 %v1865
      %1912 = vmatprep.subr.bf16.mxu0 0
      %1913 = vmatpush1.bf16.msra.mxu0 %v1866
      %1914 = vmatprep.subr.bf16.mxu0 0
      %1915 = vmatpush1.bf16.msra.mxu0 %v1867
      %1916 = vmatprep.mubr.bf16.mxu0 %v1530
      %1917 = vmatmul.mubr.bf16.gmra.mrb[0].mxu0 %v1529
      %v1918 = vpop.f32.mrb[0].mxu0
      %v1919 = vadd.f32 0.0, %v1918
      %v1920 = vpop.f32.mrb[0].mxu0
      %v1921 = vpop.f32.mrb[0].mxu0
      %v1922 = vadd.f32 0.0, %v1921
      %v1923 = vpop.f32.mrb[0].mxu0
      %1924 = vmatprep.mubr.bf16.mxu0 %v1532
      %1925 = vmatmul.mubr.bf16.gmra.mrb[0].mxu0 %v1531
      %v1926 = vpop.f32.mrb[0].mxu0
      %v1927 = vadd.f32 0.0, %v1926
      %v1928 = vpop.f32.mrb[0].mxu0
      %v1929 = vpop.f32.mrb[0].mxu0
      %v1930 = vadd.f32 0.0, %v1929
      %v1931 = vpop.f32.mrb[0].mxu0
      %1932 = vmatprep.mubr.bf16.mxu0 %v1534
      %1933 = vmatmul.mubr.bf16.gmra.mrb[0].mxu0 %v1533
      %v1934 = vpop.f32.mrb[0].mxu0
      %v1935 = vadd.f32 0.0, %v1934
      %v1936 = vpop.f32.mrb[0].mxu0
      %v1937 = vpop.f32.mrb[0].mxu0
      %v1938 = vadd.f32 0.0, %v1937
      %v1939 = vpop.f32.mrb[0].mxu0
      %1940 = vmatprep.mubr.bf16.mxu0 %v1536
      %1941 = vmatmul.mubr.bf16.gmra.mrb[0].mxu0 %v1535
      %v1942 = vpop.f32.mrb[0].mxu0
      %v1943 = vadd.f32 0.0, %v1942
      %v1944 = vpop.f32.mrb[0].mxu0
      %v1945 = vpop.f32.mrb[0].mxu0
      %v1946 = vadd.f32 0.0, %v1945
      %v1947 = vpop.f32.mrb[0].mxu0
      %1948 = vdwg.mxu0
      %v1949 = vld [vmem:[%s946] sm:$0xff]
      %v1950 = vld [vmem:[%s946 + $0x8] sm:$0xff]
      %v1951 = vld [vmem:[%s946 + $0x10] sm:$0xff]
      %v1952 = vld [vmem:[%s946 + $0x18] sm:$0xff]
      %v1953 = vld [vmem:[%s946 + $0x20] sm:$0xff]
      %v1954 = vld [vmem:[%s946 + $0x28] sm:$0xff]
      %v1955 = vld [vmem:[%s946 + $0x30] sm:$0xff]
      %v1956 = vld [vmem:[%s946 + $0x38] sm:$0xff]
      %v1957 = vadd.f32 %v1949, %v1919
      %v1958 = vadd.f32 %v1950, %v1922
      %v1959 = vadd.f32 %v1951, %v1927
      %v1960 = vadd.f32 %v1952, %v1930
      %v1961 = vadd.f32 %v1953, %v1935
      %v1962 = vadd.f32 %v1954, %v1938
      %v1963 = vadd.f32 %v1955, %v1943
      %v1964 = vadd.f32 %v1956, %v1946
      %1965 = vst [vmem:[%s946] sm:$0xff] %v1957
      %1966 = vst [vmem:[%s946 + $0x8] sm:$0xff] %v1958
      %1967 = vst [vmem:[%s946 + $0x10] sm:$0xff] %v1959
      %1968 = vst [vmem:[%s946 + $0x18] sm:$0xff] %v1960
      %1969 = vst [vmem:[%s946 + $0x20] sm:$0xff] %v1961
      %1970 = vst [vmem:[%s946 + $0x28] sm:$0xff] %v1962
      %1971 = vst [vmem:[%s946 + $0x30] sm:$0xff] %v1963
      %1972 = vst [vmem:[%s946 + $0x38] sm:$0xff] %v1964
      %s1973 = scalar_lea.vmem %s1, 1152
      %v1974 = vld [vmem:[%s1973] sm:$0xf]
      %v1975 = vld [vmem:[%s1973 + $0x4] sm:$0xf]
      %v1976 = vld [vmem:[%s1973 + $0x8] sm:$0xf]
      %v1977 = vld [vmem:[%s1973 + $0xc] sm:$0xf]
      %v1978 = vld [vmem:[%s1973 + $0x10] sm:$0xf]
      %v1979 = vld [vmem:[%s1973 + $0x14] sm:$0xf]
      %v1980 = vld [vmem:[%s1973 + $0x18] sm:$0xf]
      %v1981 = vld [vmem:[%s1973 + $0x1c] sm:$0xf]
      %v1982 = vld [vmem:[%s1973 + $0x20] sm:$0xf]
      %v1983 = vld [vmem:[%s1973 + $0x24] sm:$0xf]
      %v1984 = vld [vmem:[%s1973 + $0x28] sm:$0xf]
      %v1985 = vld [vmem:[%s1973 + $0x2c] sm:$0xf]
      %v1986 = vld [vmem:[%s1973 + $0x30] sm:$0xf]
      %v1987 = vld [vmem:[%s1973 + $0x34] sm:$0xf]
      %v1988 = vld [vmem:[%s1973 + $0x38] sm:$0xf]
      %v1989 = vld [vmem:[%s1973 + $0x3c] sm:$0xf]
      %v1990 = vld [vmem:[%s1973 + $0x40] sm:$0xf]
      %v1991 = vld [vmem:[%s1973 + $0x44] sm:$0xf]
      %v1992 = vld [vmem:[%s1973 + $0x48] sm:$0xf]
      %v1993 = vld [vmem:[%s1973 + $0x4c] sm:$0xf]
      %v1994 = vld [vmem:[%s1973 + $0x50] sm:$0xf]
      %v1995 = vld [vmem:[%s1973 + $0x54] sm:$0xf]
      %v1996 = vld [vmem:[%s1973 + $0x58] sm:$0xf]
      %v1997 = vld [vmem:[%s1973 + $0x5c] sm:$0xf]
      %v1998 = vld [vmem:[%s1973 + $0x60] sm:$0xf]
      %v1999 = vld [vmem:[%s1973 + $0x64] sm:$0xf]
      %v2000 = vld [vmem:[%s1973 + $0x68] sm:$0xf]
      %v2001 = vld [vmem:[%s1973 + $0x6c] sm:$0xf]
      %v2002 = vld [vmem:[%s1973 + $0x70] sm:$0xf]
      %v2003 = vld [vmem:[%s1973 + $0x74] sm:$0xf]
      %v2004 = vld [vmem:[%s1973 + $0x78] sm:$0xf]
      %v2005 = vld [vmem:[%s1973 + $0x7c] sm:$0xf]
      %v2038 = vunpack.c.l.b16 %v1974
      %v2039 = vunpack.c.l.b16 %v1975
      %v2040 = vunpack.c.l.b16 %v1976
      %v2041 = vunpack.c.l.b16 %v1977
      %v2042 = vunpack.c.l.b16 %v1978
      %v2043 = vunpack.c.l.b16 %v1979
      %v2044 = vunpack.c.l.b16 %v1980
      %v2045 = vunpack.c.l.b16 %v1981
      %v2046 = vunpack.c.l.b16 %v1982
      %v2047 = vunpack.c.l.b16 %v1983
      %v2048 = vunpack.c.l.b16 %v1984
      %v2049 = vunpack.c.l.b16 %v1985
      %v2050 = vunpack.c.l.b16 %v1986
      %v2051 = vunpack.c.l.b16 %v1987
      %v2052 = vunpack.c.l.b16 %v1988
      %v2053 = vunpack.c.l.b16 %v1989
      %v2054 = vunpack.c.l.b16 %v1990
      %v2055 = vunpack.c.l.b16 %v1991
      %v2056 = vunpack.c.l.b16 %v1992
      %v2057 = vunpack.c.l.b16 %v1993
      %v2058 = vunpack.c.l.b16 %v1994
      %v2059 = vunpack.c.l.b16 %v1995
      %v2060 = vunpack.c.l.b16 %v1996
      %v2061 = vunpack.c.l.b16 %v1997
      %v2062 = vunpack.c.l.b16 %v1998
      %v2063 = vunpack.c.l.b16 %v1999
      %v2064 = vunpack.c.l.b16 %v2000
      %v2065 = vunpack.c.l.b16 %v2001
      %v2066 = vunpack.c.l.b16 %v2002
      %v2067 = vunpack.c.l.b16 %v2003
      %v2068 = vunpack.c.l.b16 %v2004
      %v2069 = vunpack.c.l.b16 %v2005
      %v2070 = vpack.c.b16 %v2039, %v2038
      %v2071 = vpack.c.b16 %v2041, %v2040
      %v2072 = vpack.c.b16 %v2043, %v2042
      %v2073 = vpack.c.b16 %v2045, %v2044
      %v2074 = vpack.c.b16 %v2047, %v2046
      %v2075 = vpack.c.b16 %v2049, %v2048
      %v2076 = vpack.c.b16 %v2051, %v2050
      %v2077 = vpack.c.b16 %v2053, %v2052
      %v2078 = vpack.c.b16 %v2055, %v2054
      %v2079 = vpack.c.b16 %v2057, %v2056
      %v2080 = vpack.c.b16 %v2059, %v2058
      %v2081 = vpack.c.b16 %v2061, %v2060
      %v2082 = vpack.c.b16 %v2063, %v2062
      %v2083 = vpack.c.b16 %v2065, %v2064
      %v2084 = vpack.c.b16 %v2067, %v2066
      %v2085 = vpack.c.b16 %v2069, %v2068
      %2102 = vmatprep.subr.bf16.mxu0 0
      %2103 = vmatpush1.bf16.msra.mxu0 %v2070
      %2104 = vmatprep.subr.bf16.mxu0 0
      %2105 = vmatpush1.bf16.msra.mxu0 %v2071
      %2106 = vmatprep.subr.bf16.mxu0 0
      %2107 = vmatpush1.bf16.msra.mxu0 %v2072
      %2108 = vmatprep.subr.bf16.mxu0 0
      %2109 = vmatpush1.bf16.msra.mxu0 %v2073
      %2110 = vmatprep.subr.bf16.mxu0 0
      %2111 = vmatpush1.bf16.msra.mxu0 %v2074
      %2112 = vmatprep.subr.bf16.mxu0 0
      %2113 = vmatpush1.bf16.msra.mxu0 %v2075
      %2114 = vmatprep.subr.bf16.mxu0 0
      %2115 = vmatpush1.bf16.msra.mxu0 %v2076
      %2116 = vmatprep.subr.bf16.mxu0 0
      %2117 = vmatpush1.bf16.msra.mxu0 %v2077
      %2118 = vmatprep.subr.bf16.mxu0 0
      %2119 = vmatpush1.bf16.msra.mxu0 %v2078
      %2120 = vmatprep.subr.bf16.mxu0 0
      %2121 = vmatpush1.bf16.msra.mxu0 %v2079
      %2122 = vmatprep.subr.bf16.mxu0 0
      %2123 = vmatpush1.bf16.msra.mxu0 %v2080
      %2124 = vmatprep.subr.bf16.mxu0 0
      %2125 = vmatpush1.bf16.msra.mxu0 %v2081
      %2126 = vmatprep.subr.bf16.mxu0 0
      %2127 = vmatpush1.bf16.msra.mxu0 %v2082
      %2128 = vmatprep.subr.bf16.mxu0 0
      %2129 = vmatpush1.bf16.msra.mxu0 %v2083
      %2130 = vmatprep.subr.bf16.mxu0 0
      %2131 = vmatpush1.bf16.msra.mxu0 %v2084
      %2132 = vmatprep.subr.bf16.mxu0 0
      %2133 = vmatpush1.bf16.msra.mxu0 %v2085
      %2134 = vmatprep.mubr.bf16.mxu0 %v1530
      %2135 = vmatmul.mubr.bf16.gmra.mrb[0].mxu0 %v1529
      %v2136 = vpop.f32.mrb[0].mxu0
      %v2137 = vadd.f32 0.0, %v2136
      %v2138 = vpop.f32.mrb[0].mxu0
      %v2139 = vpop.f32.mrb[0].mxu0
      %v2140 = vadd.f32 0.0, %v2139
      %v2141 = vpop.f32.mrb[0].mxu0
      %2142 = vmatprep.mubr.bf16.mxu0 %v1532
      %2143 = vmatmul.mubr.bf16.gmra.mrb[0].mxu0 %v1531
      %v2144 = vpop.f32.mrb[0].mxu0
      %v2145 = vadd.f32 0.0, %v2144
      %v2146 = vpop.f32.mrb[0].mxu0
      %v2147 = vpop.f32.mrb[0].mxu0
      %v2148 = vadd.f32 0.0, %v2147
      %v2149 = vpop.f32.mrb[0].mxu0
      %2150 = vmatprep.mubr.bf16.mxu0 %v1534
      %2151 = vmatmul.mubr.bf16.gmra.mrb[0].mxu0 %v1533
      %v2152 = vpop.f32.mrb[0].mxu0
      %v2153 = vadd.f32 0.0, %v2152
      %v2154 = vpop.f32.mrb[0].mxu0
      %v2155 = vpop.f32.mrb[0].mxu0
      %v2156 = vadd.f32 0.0, %v2155
      %v2157 = vpop.f32.mrb[0].mxu0
      %2158 = vmatprep.mubr.bf16.mxu0 %v1536
      %2159 = vmatmul.mubr.bf16.gmra.mrb[0].mxu0 %v1535
      %v2160 = vpop.f32.mrb[0].mxu0
      %v2161 = vadd.f32 0.0, %v2160
      %v2162 = vpop.f32.mrb[0].mxu0
      %v2163 = vpop.f32.mrb[0].mxu0
      %v2164 = vadd.f32 0.0, %v2163
      %v2165 = vpop.f32.mrb[0].mxu0
      %2166 = vdwg.mxu0
      %v2167 = vld [vmem:[%s1392] sm:$0xff]
      %v2168 = vld [vmem:[%s1392 + $0x8] sm:$0xff]
      %v2169 = vld [vmem:[%s1392 + $0x10] sm:$0xff]
      %v2170 = vld [vmem:[%s1392 + $0x18] sm:$0xff]
      %v2171 = vld [vmem:[%s1392 + $0x20] sm:$0xff]
      %v2172 = vld [vmem:[%s1392 + $0x28] sm:$0xff]
      %v2173 = vld [vmem:[%s1392 + $0x30] sm:$0xff]
      %v2174 = vld [vmem:[%s1392 + $0x38] sm:$0xff]
      %v2175 = vadd.f32 %v2167, %v2137
      %v2176 = vadd.f32 %v2168, %v2140
      %v2177 = vadd.f32 %v2169, %v2145
      %v2178 = vadd.f32 %v2170, %v2148
      %v2179 = vadd.f32 %v2171, %v2153
      %v2180 = vadd.f32 %v2172, %v2156
      %v2181 = vadd.f32 %v2173, %v2161
      %v2182 = vadd.f32 %v2174, %v2164
      %2183 = vst [vmem:[%s1392] sm:$0xff] %v2175
      %2184 = vst [vmem:[%s1392 + $0x8] sm:$0xff] %v2176
      %2185 = vst [vmem:[%s1392 + $0x10] sm:$0xff] %v2177
      %2186 = vst [vmem:[%s1392 + $0x18] sm:$0xff] %v2178
      %2187 = vst [vmem:[%s1392 + $0x20] sm:$0xff] %v2179
      %2188 = vst [vmem:[%s1392 + $0x28] sm:$0xff] %v2180
      %2189 = vst [vmem:[%s1392 + $0x30] sm:$0xff] %v2181
      %2190 = vst [vmem:[%s1392 + $0x38] sm:$0xff] %v2182
      %s2191 = scalar_lea.vmem %s1, 1536
      %v2192 = vld [vmem:[%s2191] sm:$0xf]
      %v2193 = vld [vmem:[%s2191 + $0x4] sm:$0xf]
      %v2194 = vld [vmem:[%s2191 + $0x8] sm:$0xf]
      %v2195 = vld [vmem:[%s2191 + $0xc] sm:$0xf]
      %v2196 = vld [vmem:[%s2191 + $0x10] sm:$0xf]
      %v2197 = vld [vmem:[%s2191 + $0x14] sm:$0xf]
      %v2198 = vld [vmem:[%s2191 + $0x18] sm:$0xf]
      %v2199 = vld [vmem:[%s2191 + $0x1c] sm:$0xf]
      %v2200 = vld [vmem:[%s2191 + $0x20] sm:$0xf]
      %v2201 = vld [vmem:[%s2191 + $0x24] sm:$0xf]
      %v2202 = vld [vmem:[%s2191 + $0x28] sm:$0xf]
      %v2203 = vld [vmem:[%s2191 + $0x2c] sm:$0xf]
      %v2204 = vld [vmem:[%s2191 + $0x30] sm:$0xf]
      %v2205 = vld [vmem:[%s2191 + $0x34] sm:$0xf]
      %v2206 = vld [vmem:[%s2191 + $0x38] sm:$0xf]
      %v2207 = vld [vmem:[%s2191 + $0x3c] sm:$0xf]
      %v2208 = vld [vmem:[%s2191 + $0x40] sm:$0xf]
      %v2209 = vld [vmem:[%s2191 + $0x44] sm:$0xf]
      %v2210 = vld [vmem:[%s2191 + $0x48] sm:$0xf]
      %v2211 = vld [vmem:[%s2191 + $0x4c] sm:$0xf]
      %v2212 = vld [vmem:[%s2191 + $0x50] sm:$0xf]
      %v2213 = vld [vmem:[%s2191 + $0x54] sm:$0xf]
      %v2214 = vld [vmem:[%s2191 + $0x58] sm:$0xf]
      %v2215 = vld [vmem:[%s2191 + $0x5c] sm:$0xf]
      %v2216 = vld [vmem:[%s2191 + $0x60] sm:$0xf]
      %v2217 = vld [vmem:[%s2191 + $0x64] sm:$0xf]
      %v2218 = vld [vmem:[%s2191 + $0x68] sm:$0xf]
      %v2219 = vld [vmem:[%s2191 + $0x6c] sm:$0xf]
      %v2220 = vld [vmem:[%s2191 + $0x70] sm:$0xf]
      %v2221 = vld [vmem:[%s2191 + $0x74] sm:$0xf]
      %v2222 = vld [vmem:[%s2191 + $0x78] sm:$0xf]
      %v2223 = vld [vmem:[%s2191 + $0x7c] sm:$0xf]
      %v2256 = vunpack.c.l.b16 %v2192
      %v2257 = vunpack.c.l.b16 %v2193
      %v2258 = vunpack.c.l.b16 %v2194
      %v2259 = vunpack.c.l.b16 %v2195
      %v2260 = vunpack.c.l.b16 %v2196
      %v2261 = vunpack.c.l.b16 %v2197
      %v2262 = vunpack.c.l.b16 %v2198
      %v2263 = vunpack.c.l.b16 %v2199
      %v2264 = vunpack.c.l.b16 %v2200
      %v2265 = vunpack.c.l.b16 %v2201
      %v2266 = vunpack.c.l.b16 %v2202
      %v2267 = vunpack.c.l.b16 %v2203
      %v2268 = vunpack.c.l.b16 %v2204
      %v2269 = vunpack.c.l.b16 %v2205
      %v2270 = vunpack.c.l.b16 %v2206
      %v2271 = vunpack.c.l.b16 %v2207
      %v2272 = vunpack.c.l.b16 %v2208
      %v2273 = vunpack.c.l.b16 %v2209
      %v2274 = vunpack.c.l.b16 %v2210
      %v2275 = vunpack.c.l.b16 %v2211
      %v2276 = vunpack.c.l.b16 %v2212
      %v2277 = vunpack.c.l.b16 %v2213
      %v2278 = vunpack.c.l.b16 %v2214
      %v2279 = vunpack.c.l.b16 %v2215
      %v2280 = vunpack.c.l.b16 %v2216
      %v2281 = vunpack.c.l.b16 %v2217
      %v2282 = vunpack.c.l.b16 %v2218
      %v2283 = vunpack.c.l.b16 %v2219
      %v2284 = vunpack.c.l.b16 %v2220
      %v2285 = vunpack.c.l.b16 %v2221
      %v2286 = vunpack.c.l.b16 %v2222
      %v2287 = vunpack.c.l.b16 %v2223
      %v2288 = vpack.c.b16 %v2257, %v2256
      %v2289 = vpack.c.b16 %v2259, %v2258
      %v2290 = vpack.c.b16 %v2261, %v2260
      %v2291 = vpack.c.b16 %v2263, %v2262
      %v2292 = vpack.c.b16 %v2265, %v2264
      %v2293 = vpack.c.b16 %v2267, %v2266
      %v2294 = vpack.c.b16 %v2269, %v2268
      %v2295 = vpack.c.b16 %v2271, %v2270
      %v2296 = vpack.c.b16 %v2273, %v2272
      %v2297 = vpack.c.b16 %v2275, %v2274
      %v2298 = vpack.c.b16 %v2277, %v2276
      %v2299 = vpack.c.b16 %v2279, %v2278
      %v2300 = vpack.c.b16 %v2281, %v2280
      %v2301 = vpack.c.b16 %v2283, %v2282
      %v2302 = vpack.c.b16 %v2285, %v2284
      %v2303 = vpack.c.b16 %v2287, %v2286
      %2320 = vmatprep.subr.bf16.mxu0 0
      %2321 = vmatpush1.bf16.msra.mxu0 %v2288
      %2322 = vmatprep.subr.bf16.mxu0 0
      %2323 = vmatpush1.bf16.msra.mxu0 %v2289
      %2324 = vmatprep.subr.bf16.mxu0 0
      %2325 = vmatpush1.bf16.msra.mxu0 %v2290
      %2326 = vmatprep.subr.bf16.mxu0 0
      %2327 = vmatpush1.bf16.msra.mxu0 %v2291
      %2328 = vmatprep.subr.bf16.mxu0 0
      %2329 = vmatpush1.bf16.msra.mxu0 %v2292
      %2330 = vmatprep.subr.bf16.mxu0 0
      %2331 = vmatpush1.bf16.msra.mxu0 %v2293
      %2332 = vmatprep.subr.bf16.mxu0 0
      %2333 = vmatpush1.bf16.msra.mxu0 %v2294
      %2334 = vmatprep.subr.bf16.mxu0 0
      %2335 = vmatpush1.bf16.msra.mxu0 %v2295
      %2336 = vmatprep.subr.bf16.mxu0 0
      %2337 = vmatpush1.bf16.msra.mxu0 %v2296
      %2338 = vmatprep.subr.bf16.mxu0 0
      %2339 = vmatpush1.bf16.msra.mxu0 %v2297
      %2340 = vmatprep.subr.bf16.mxu0 0
      %2341 = vmatpush1.bf16.msra.mxu0 %v2298
      %2342 = vmatprep.subr.bf16.mxu0 0
      %2343 = vmatpush1.bf16.msra.mxu0 %v2299
      %2344 = vmatprep.subr.bf16.mxu0 0
      %2345 = vmatpush1.bf16.msra.mxu0 %v2300
      %2346 = vmatprep.subr.bf16.mxu0 0
      %2347 = vmatpush1.bf16.msra.mxu0 %v2301
      %2348 = vmatprep.subr.bf16.mxu0 0
      %2349 = vmatpush1.bf16.msra.mxu0 %v2302
      %2350 = vmatprep.subr.bf16.mxu0 0
      %2351 = vmatpush1.bf16.msra.mxu0 %v2303
      %2352 = vmatprep.mubr.bf16.mxu0 %v1530
      %2353 = vmatmul.mubr.bf16.gmra.mrb[0].mxu0 %v1529
      %v2354 = vpop.f32.mrb[0].mxu0
      %v2355 = vadd.f32 0.0, %v2354
      %v2356 = vpop.f32.mrb[0].mxu0
      %v2357 = vpop.f32.mrb[0].mxu0
      %v2358 = vadd.f32 0.0, %v2357
      %v2359 = vpop.f32.mrb[0].mxu0
      %2360 = vmatprep.mubr.bf16.mxu0 %v1532
      %2361 = vmatmul.mubr.bf16.gmra.mrb[0].mxu0 %v1531
      %v2362 = vpop.f32.mrb[0].mxu0
      %v2363 = vadd.f32 0.0, %v2362
      %v2364 = vpop.f32.mrb[0].mxu0
      %v2365 = vpop.f32.mrb[0].mxu0
      %v2366 = vadd.f32 0.0, %v2365
      %v2367 = vpop.f32.mrb[0].mxu0
      %2368 = vmatprep.mubr.bf16.mxu0 %v1534
      %2369 = vmatmul.mubr.bf16.gmra.mrb[0].mxu0 %v1533
      %v2370 = vpop.f32.mrb[0].mxu0
      %v2371 = vadd.f32 0.0, %v2370
      %v2372 = vpop.f32.mrb[0].mxu0
      %v2373 = vpop.f32.mrb[0].mxu0
      %v2374 = vadd.f32 0.0, %v2373
      %v2375 = vpop.f32.mrb[0].mxu0
      %2376 = vmatprep.mubr.bf16.mxu0 %v1536
      %2377 = vmatmul.mubr.bf16.gmra.mrb[0].mxu0 %v1535
      %v2378 = vpop.f32.mrb[0].mxu0
      %v2379 = vadd.f32 0.0, %v2378
      %v2380 = vpop.f32.mrb[0].mxu0
      %v2381 = vpop.f32.mrb[0].mxu0
      %v2382 = vadd.f32 0.0, %v2381
      %v2383 = vpop.f32.mrb[0].mxu0
      %2384 = vdwg.mxu0
      %s2385 = scalar_lea.vmem [#allocation2], 192
      %2386 = vst [vmem:[%s2385] sm:$0xff] %v2355
      %2387 = vst [vmem:[%s2385 + $0x8] sm:$0xff] %v2358
      %2388 = vst [vmem:[%s2385 + $0x10] sm:$0xff] %v2363
      %2389 = vst [vmem:[%s2385 + $0x18] sm:$0xff] %v2366
      %2390 = vst [vmem:[%s2385 + $0x20] sm:$0xff] %v2371
      %2391 = vst [vmem:[%s2385 + $0x28] sm:$0xff] %v2374
      %2392 = vst [vmem:[%s2385 + $0x30] sm:$0xff] %v2379
      %2393 = vst [vmem:[%s2385 + $0x38] sm:$0xff] %v2382
      %v2394 = vld [vmem:[%s165] sm:$0xfc]
      %v2395 = vld [vmem:[%s165 + $0x8] sm:$0xfc]
      %v2396 = vld [vmem:[%s165 + $0x10] sm:$0x3]
      %v2397 = vld [vmem:[%s165 + $0x18] sm:$0x3]
      %v2398 = vld [vmem:[%s165 + $0x20] sm:$0xfc]
      %v2399 = vld [vmem:[%s165 + $0x28] sm:$0xfc]
      %v2400 = vld [vmem:[%s165 + $0x30] sm:$0x3]
      %v2401 = vld [vmem:[%s165 + $0x38] sm:$0x3]
      %v2402 = vld [vmem:[%s165 + $0x40] sm:$0xfc]
      %v2403 = vld [vmem:[%s165 + $0x48] sm:$0xfc]
      %v2404 = vld [vmem:[%s165 + $0x50] sm:$0x3]
      %v2405 = vld [vmem:[%s165 + $0x58] sm:$0x3]
      %v2406 = vld [vmem:[%s165 + $0x60] sm:$0xfc]
      %v2407 = vld [vmem:[%s165 + $0x68] sm:$0xfc]
      %v2408 = vld [vmem:[%s165 + $0x70] sm:$0x3]
      %v2409 = vld [vmem:[%s165 + $0x78] sm:$0x3]
      %v2410 = vld [vmem:[%s165 + $0x80] sm:$0xfc]
      %v2411 = vld [vmem:[%s165 + $0x88] sm:$0xfc]
      %v2412 = vld [vmem:[%s165 + $0x90] sm:$0x3]
      %v2413 = vld [vmem:[%s165 + $0x98] sm:$0x3]
      %v2414 = vld [vmem:[%s165 + $0xa0] sm:$0xfc]
      %v2415 = vld [vmem:[%s165 + $0xa8] sm:$0xfc]
      %v2416 = vld [vmem:[%s165 + $0xb0] sm:$0x3]
      %v2417 = vld [vmem:[%s165 + $0xb8] sm:$0x3]
      %v2418 = vld [vmem:[%s165 + $0xc0] sm:$0xfc]
      %v2419 = vld [vmem:[%s165 + $0xc8] sm:$0xfc]
      %v2420 = vld [vmem:[%s165 + $0xd0] sm:$0x3]
      %v2421 = vld [vmem:[%s165 + $0xd8] sm:$0x3]
      %v2422 = vld [vmem:[%s165 + $0xe0] sm:$0xfc]
      %v2423 = vld [vmem:[%s165 + $0xe8] sm:$0xfc]
      %v2424 = vld [vmem:[%s165 + $0xf0] sm:$0x3]
      %v2425 = vld [vmem:[%s165 + $0xf8] sm:$0x3]
      %vm2458 = vcmask 1045504
      %v2459 = vrot.slane %v2394, 2
      %v2460 = vrot.slane %v2396, 2
      %v2461 = vsel %vm2458, %v2459, %v2460
      %v2462 = vrot.slane %v2395, 2
      %v2463 = vrot.slane %v2397, 2
      %v2464 = vsel %vm2458, %v2462, %v2463
      %v2465 = vrot.slane %v2398, 2
      %v2466 = vrot.slane %v2400, 2
      %v2467 = vsel %vm2458, %v2465, %v2466
      %v2468 = vrot.slane %v2399, 2
      %v2469 = vrot.slane %v2401, 2
      %v2470 = vsel %vm2458, %v2468, %v2469
      %v2471 = vrot.slane %v2402, 2
      %v2472 = vrot.slane %v2404, 2
      %v2473 = vsel %vm2458, %v2471, %v2472
      %v2474 = vrot.slane %v2403, 2
      %v2475 = vrot.slane %v2405, 2
      %v2476 = vsel %vm2458, %v2474, %v2475
      %v2477 = vrot.slane %v2406, 2
      %v2478 = vrot.slane %v2408, 2
      %v2479 = vsel %vm2458, %v2477, %v2478
      %v2480 = vrot.slane %v2407, 2
      %v2481 = vrot.slane %v2409, 2
      %v2482 = vsel %vm2458, %v2480, %v2481
      %v2483 = vrot.slane %v2410, 2
      %v2484 = vrot.slane %v2412, 2
      %v2485 = vsel %vm2458, %v2483, %v2484
      %v2486 = vrot.slane %v2411, 2
      %v2487 = vrot.slane %v2413, 2
      %v2488 = vsel %vm2458, %v2486, %v2487
      %v2489 = vrot.slane %v2414, 2
      %v2490 = vrot.slane %v2416, 2
      %v2491 = vsel %vm2458, %v2489, %v2490
      %v2492 = vrot.slane %v2415, 2
      %v2493 = vrot.slane %v2417, 2
      %v2494 = vsel %vm2458, %v2492, %v2493
      %v2495 = vrot.slane %v2418, 2
      %v2496 = vrot.slane %v2420, 2
      %v2497 = vsel %vm2458, %v2495, %v2496
      %v2498 = vrot.slane %v2419, 2
      %v2499 = vrot.slane %v2421, 2
      %v2500 = vsel %vm2458, %v2498, %v2499
      %v2501 = vrot.slane %v2422, 2
      %v2502 = vrot.slane %v2424, 2
      %v2503 = vsel %vm2458, %v2501, %v2502
      %v2504 = vrot.slane %v2423, 2
      %v2505 = vrot.slane %v2425, 2
      %v2506 = vsel %vm2458, %v2504, %v2505
      %v2523 = vpack.c.bf16 %v2467, %v2461
      %v2524 = vpack.c.bf16 %v2470, %v2464
      %v2525 = vpack.c.bf16 %v2479, %v2473
      %v2526 = vpack.c.bf16 %v2482, %v2476
      %v2527 = vpack.c.bf16 %v2491, %v2485
      %v2528 = vpack.c.bf16 %v2494, %v2488
      %v2529 = vpack.c.bf16 %v2503, %v2497
      %v2530 = vpack.c.bf16 %v2506, %v2500
      %s2531 = scalar_lea.vmem %s1, 640
      %v2532 = vld [vmem:[%s2531] sm:$0xf]
      %v2533 = vld [vmem:[%s2531 + $0x4] sm:$0xf]
      %v2534 = vld [vmem:[%s2531 + $0x8] sm:$0xf]
      %v2535 = vld [vmem:[%s2531 + $0xc] sm:$0xf]
      %v2536 = vld [vmem:[%s2531 + $0x10] sm:$0xf]
      %v2537 = vld [vmem:[%s2531 + $0x14] sm:$0xf]
      %v2538 = vld [vmem:[%s2531 + $0x18] sm:$0xf]
      %v2539 = vld [vmem:[%s2531 + $0x1c] sm:$0xf]
      %v2540 = vld [vmem:[%s2531 + $0x20] sm:$0xf]
      %v2541 = vld [vmem:[%s2531 + $0x24] sm:$0xf]
      %v2542 = vld [vmem:[%s2531 + $0x28] sm:$0xf]
      %v2543 = vld [vmem:[%s2531 + $0x2c] sm:$0xf]
      %v2544 = vld [vmem:[%s2531 + $0x30] sm:$0xf]
      %v2545 = vld [vmem:[%s2531 + $0x34] sm:$0xf]
      %v2546 = vld [vmem:[%s2531 + $0x38] sm:$0xf]
      %v2547 = vld [vmem:[%s2531 + $0x3c] sm:$0xf]
      %v2548 = vld [vmem:[%s2531 + $0x40] sm:$0xf]
      %v2549 = vld [vmem:[%s2531 + $0x44] sm:$0xf]
      %v2550 = vld [vmem:[%s2531 + $0x48] sm:$0xf]
      %v2551 = vld [vmem:[%s2531 + $0x4c] sm:$0xf]
      %v2552 = vld [vmem:[%s2531 + $0x50] sm:$0xf]
      %v2553 = vld [vmem:[%s2531 + $0x54] sm:$0xf]
      %v2554 = vld [vmem:[%s2531 + $0x58] sm:$0xf]
      %v2555 = vld [vmem:[%s2531 + $0x5c] sm:$0xf]
      %v2556 = vld [vmem:[%s2531 + $0x60] sm:$0xf]
      %v2557 = vld [vmem:[%s2531 + $0x64] sm:$0xf]
      %v2558 = vld [vmem:[%s2531 + $0x68] sm:$0xf]
      %v2559 = vld [vmem:[%s2531 + $0x6c] sm:$0xf]
      %v2560 = vld [vmem:[%s2531 + $0x70] sm:$0xf]
      %v2561 = vld [vmem:[%s2531 + $0x74] sm:$0xf]
      %v2562 = vld [vmem:[%s2531 + $0x78] sm:$0xf]
      %v2563 = vld [vmem:[%s2531 + $0x7c] sm:$0xf]
      %v2596 = vunpack.c.l.b16 %v2532
      %v2597 = vunpack.c.l.b16 %v2533
      %v2598 = vunpack.c.l.b16 %v2534
      %v2599 = vunpack.c.l.b16 %v2535
      %v2600 = vunpack.c.l.b16 %v2536
      %v2601 = vunpack.c.l.b16 %v2537
      %v2602 = vunpack.c.l.b16 %v2538
      %v2603 = vunpack.c.l.b16 %v2539
      %v2604 = vunpack.c.l.b16 %v2540
      %v2605 = vunpack.c.l.b16 %v2541
      %v2606 = vunpack.c.l.b16 %v2542
      %v2607 = vunpack.c.l.b16 %v2543
      %v2608 = vunpack.c.l.b16 %v2544
      %v2609 = vunpack.c.l.b16 %v2545
      %v2610 = vunpack.c.l.b16 %v2546
      %v2611 = vunpack.c.l.b16 %v2547
      %v2612 = vunpack.c.l.b16 %v2548
      %v2613 = vunpack.c.l.b16 %v2549
      %v2614 = vunpack.c.l.b16 %v2550
      %v2615 = vunpack.c.l.b16 %v2551
      %v2616 = vunpack.c.l.b16 %v2552
      %v2617 = vunpack.c.l.b16 %v2553
      %v2618 = vunpack.c.l.b16 %v2554
      %v2619 = vunpack.c.l.b16 %v2555
      %v2620 = vunpack.c.l.b16 %v2556
      %v2621 = vunpack.c.l.b16 %v2557
      %v2622 = vunpack.c.l.b16 %v2558
      %v2623 = vunpack.c.l.b16 %v2559
      %v2624 = vunpack.c.l.b16 %v2560
      %v2625 = vunpack.c.l.b16 %v2561
      %v2626 = vunpack.c.l.b16 %v2562
      %v2627 = vunpack.c.l.b16 %v2563
      %v2628 = vpack.c.b16 %v2597, %v2596
      %v2629 = vpack.c.b16 %v2599, %v2598
      %v2630 = vpack.c.b16 %v2601, %v2600
      %v2631 = vpack.c.b16 %v2603, %v2602
      %v2632 = vpack.c.b16 %v2605, %v2604
      %v2633 = vpack.c.b16 %v2607, %v2606
      %v2634 = vpack.c.b16 %v2609, %v2608
      %v2635 = vpack.c.b16 %v2611, %v2610
      %v2636 = vpack.c.b16 %v2613, %v2612
      %v2637 = vpack.c.b16 %v2615, %v2614
      %v2638 = vpack.c.b16 %v2617, %v2616
      %v2639 = vpack.c.b16 %v2619, %v2618
      %v2640 = vpack.c.b16 %v2621, %v2620
      %v2641 = vpack.c.b16 %v2623, %v2622
      %v2642 = vpack.c.b16 %v2625, %v2624
      %v2643 = vpack.c.b16 %v2627, %v2626
      %2660 = vmatprep.subr.bf16.mxu0 0
      %2661 = vmatpush1.bf16.msra.mxu0 %v2628
      %2662 = vmatprep.subr.bf16.mxu0 0
      %2663 = vmatpush1.bf16.msra.mxu0 %v2629
      %2664 = vmatprep.subr.bf16.mxu0 0
      %2665 = vmatpush1.bf16.msra.mxu0 %v2630
      %2666 = vmatprep.subr.bf16.mxu0 0
      %2667 = vmatpush1.bf16.msra.mxu0 %v2631
      %2668 = vmatprep.subr.bf16.mxu0 0
      %2669 = vmatpush1.bf16.msra.mxu0 %v2632
      %2670 = vmatprep.subr.bf16.mxu0 0
      %2671 = vmatpush1.bf16.msra.mxu0 %v2633
      %2672 = vmatprep.subr.bf16.mxu0 0
      %2673 = vmatpush1.bf16.msra.mxu0 %v2634
      %2674 = vmatprep.subr.bf16.mxu0 0
      %2675 = vmatpush1.bf16.msra.mxu0 %v2635
      %2676 = vmatprep.subr.bf16.mxu0 0
      %2677 = vmatpush1.bf16.msra.mxu0 %v2636
      %2678 = vmatprep.subr.bf16.mxu0 0
      %2679 = vmatpush1.bf16.msra.mxu0 %v2637
      %2680 = vmatprep.subr.bf16.mxu0 0
      %2681 = vmatpush1.bf16.msra.mxu0 %v2638
      %2682 = vmatprep.subr.bf16.mxu0 0
      %2683 = vmatpush1.bf16.msra.mxu0 %v2639
      %2684 = vmatprep.subr.bf16.mxu0 0
      %2685 = vmatpush1.bf16.msra.mxu0 %v2640
      %2686 = vmatprep.subr.bf16.mxu0 0
      %2687 = vmatpush1.bf16.msra.mxu0 %v2641
      %2688 = vmatprep.subr.bf16.mxu0 0
      %2689 = vmatpush1.bf16.msra.mxu0 %v2642
      %2690 = vmatprep.subr.bf16.mxu0 0
      %2691 = vmatpush1.bf16.msra.mxu0 %v2643
      %2692 = vmatprep.mubr.bf16.mxu0 %v2524
      %2693 = vmatmul.mubr.bf16.gmra.mrb[0].mxu0 %v2523
      %v2694 = vpop.f32.mrb[0].mxu0
      %v2695 = vadd.f32 0.0, %v2694
      %v2696 = vpop.f32.mrb[0].mxu0
      %v2697 = vpop.f32.mrb[0].mxu0
      %v2698 = vadd.f32 0.0, %v2697
      %v2699 = vpop.f32.mrb[0].mxu0
      %2700 = vmatprep.mubr.bf16.mxu0 %v2526
      %2701 = vmatmul.mubr.bf16.gmra.mrb[0].mxu0 %v2525
      %v2702 = vpop.f32.mrb[0].mxu0
      %v2703 = vadd.f32 0.0, %v2702
      %v2704 = vpop.f32.mrb[0].mxu0
      %v2705 = vpop.f32.mrb[0].mxu0
      %v2706 = vadd.f32 0.0, %v2705
      %v2707 = vpop.f32.mrb[0].mxu0
      %2708 = vmatprep.mubr.bf16.mxu0 %v2528
      %2709 = vmatmul.mubr.bf16.gmra.mrb[0].mxu0 %v2527
      %v2710 = vpop.f32.mrb[0].mxu0
      %v2711 = vadd.f32 0.0, %v2710
      %v2712 = vpop.f32.mrb[0].mxu0
      %v2713 = vpop.f32.mrb[0].mxu0
      %v2714 = vadd.f32 0.0, %v2713
      %v2715 = vpop.f32.mrb[0].mxu0
      %2716 = vmatprep.mubr.bf16.mxu0 %v2530
      %2717 = vmatmul.mubr.bf16.gmra.mrb[0].mxu0 %v2529
      %v2718 = vpop.f32.mrb[0].mxu0
      %v2719 = vadd.f32 0.0, %v2718
      %v2720 = vpop.f32.mrb[0].mxu0
      %v2721 = vpop.f32.mrb[0].mxu0
      %v2722 = vadd.f32 0.0, %v2721
      %v2723 = vpop.f32.mrb[0].mxu0
      %2724 = vdwg.mxu0
      %v2725 = vld [vmem:[%s946] sm:$0xff]
      %v2726 = vld [vmem:[%s946 + $0x8] sm:$0xff]
      %v2727 = vld [vmem:[%s946 + $0x10] sm:$0xff]
      %v2728 = vld [vmem:[%s946 + $0x18] sm:$0xff]
      %v2729 = vld [vmem:[%s946 + $0x20] sm:$0xff]
      %v2730 = vld [vmem:[%s946 + $0x28] sm:$0xff]
      %v2731 = vld [vmem:[%s946 + $0x30] sm:$0xff]
      %v2732 = vld [vmem:[%s946 + $0x38] sm:$0xff]
      %v2733 = vadd.f32 %v2725, %v2695
      %v2734 = vadd.f32 %v2726, %v2698
      %v2735 = vadd.f32 %v2727, %v2703
      %v2736 = vadd.f32 %v2728, %v2706
      %v2737 = vadd.f32 %v2729, %v2711
      %v2738 = vadd.f32 %v2730, %v2714
      %v2739 = vadd.f32 %v2731, %v2719
      %v2740 = vadd.f32 %v2732, %v2722
      %2741 = vst [vmem:[%s946] sm:$0xff] %v2733
      %2742 = vst [vmem:[%s946 + $0x8] sm:$0xff] %v2734
      %2743 = vst [vmem:[%s946 + $0x10] sm:$0xff] %v2735
      %2744 = vst [vmem:[%s946 + $0x18] sm:$0xff] %v2736
      %2745 = vst [vmem:[%s946 + $0x20] sm:$0xff] %v2737
      %2746 = vst [vmem:[%s946 + $0x28] sm:$0xff] %v2738
      %2747 = vst [vmem:[%s946 + $0x30] sm:$0xff] %v2739
      %2748 = vst [vmem:[%s946 + $0x38] sm:$0xff] %v2740
      %v2749 = vld [vmem:[%s955] sm:$0xfc]
      %v2750 = vld [vmem:[%s955 + $0x8] sm:$0xfc]
      %v2751 = vld [vmem:[%s955 + $0x10] sm:$0x3]
      %v2752 = vld [vmem:[%s955 + $0x18] sm:$0x3]
      %v2753 = vld [vmem:[%s955 + $0x20] sm:$0xfc]
      %v2754 = vld [vmem:[%s955 + $0x28] sm:$0xfc]
      %v2755 = vld [vmem:[%s955 + $0x30] sm:$0x3]
      %v2756 = vld [vmem:[%s955 + $0x38] sm:$0x3]
      %v2757 = vld [vmem:[%s955 + $0x40] sm:$0xfc]
      %v2758 = vld [vmem:[%s955 + $0x48] sm:$0xfc]
      %v2759 = vld [vmem:[%s955 + $0x50] sm:$0x3]
      %v2760 = vld [vmem:[%s955 + $0x58] sm:$0x3]
      %v2761 = vld [vmem:[%s955 + $0x60] sm:$0xfc]
      %v2762 = vld [vmem:[%s955 + $0x68] sm:$0xfc]
      %v2763 = vld [vmem:[%s955 + $0x70] sm:$0x3]
      %v2764 = vld [vmem:[%s955 + $0x78] sm:$0x3]
      %v2765 = vld [vmem:[%s955 + $0x80] sm:$0xfc]
      %v2766 = vld [vmem:[%s955 + $0x88] sm:$0xfc]
      %v2767 = vld [vmem:[%s955 + $0x90] sm:$0x3]
      %v2768 = vld [vmem:[%s955 + $0x98] sm:$0x3]
      %v2769 = vld [vmem:[%s955 + $0xa0] sm:$0xfc]
      %v2770 = vld [vmem:[%s955 + $0xa8] sm:$0xfc]
      %v2771 = vld [vmem:[%s955 + $0xb0] sm:$0x3]
      %v2772 = vld [vmem:[%s955 + $0xb8] sm:$0x3]
      %v2773 = vld [vmem:[%s955 + $0xc0] sm:$0xfc]
      %v2774 = vld [vmem:[%s955 + $0xc8] sm:$0xfc]
      %v2775 = vld [vmem:[%s955 + $0xd0] sm:$0x3]
      %v2776 = vld [vmem:[%s955 + $0xd8] sm:$0x3]
      %v2777 = vld [vmem:[%s955 + $0xe0] sm:$0xfc]
      %v2778 = vld [vmem:[%s955 + $0xe8] sm:$0xfc]
      %v2779 = vld [vmem:[%s955 + $0xf0] sm:$0x3]
      %v2780 = vld [vmem:[%s955 + $0xf8] sm:$0x3]
      %v2813 = vrot.slane %v2749, 2
      %v2814 = vrot.slane %v2751, 2
      %v2815 = vsel %vm2458, %v2813, %v2814
      %v2816 = vrot.slane %v2750, 2
      %v2817 = vrot.slane %v2752, 2
      %v2818 = vsel %vm2458, %v2816, %v2817
      %v2819 = vrot.slane %v2753, 2
      %v2820 = vrot.slane %v2755, 2
      %v2821 = vsel %vm2458, %v2819, %v2820
      %v2822 = vrot.slane %v2754, 2
      %v2823 = vrot.slane %v2756, 2
      %v2824 = vsel %vm2458, %v2822, %v2823
      %v2825 = vrot.slane %v2757, 2
      %v2826 = vrot.slane %v2759, 2
      %v2827 = vsel %vm2458, %v2825, %v2826
      %v2828 = vrot.slane %v2758, 2
      %v2829 = vrot.slane %v2760, 2
      %v2830 = vsel %vm2458, %v2828, %v2829
      %v2831 = vrot.slane %v2761, 2
      %v2832 = vrot.slane %v2763, 2
      %v2833 = vsel %vm2458, %v2831, %v2832
      %v2834 = vrot.slane %v2762, 2
      %v2835 = vrot.slane %v2764, 2
      %v2836 = vsel %vm2458, %v2834, %v2835
      %v2837 = vrot.slane %v2765, 2
      %v2838 = vrot.slane %v2767, 2
      %v2839 = vsel %vm2458, %v2837, %v2838
      %v2840 = vrot.slane %v2766, 2
      %v2841 = vrot.slane %v2768, 2
      %v2842 = vsel %vm2458, %v2840, %v2841
      %v2843 = vrot.slane %v2769, 2
      %v2844 = vrot.slane %v2771, 2
      %v2845 = vsel %vm2458, %v2843, %v2844
      %v2846 = vrot.slane %v2770, 2
      %v2847 = vrot.slane %v2772, 2
      %v2848 = vsel %vm2458, %v2846, %v2847
      %v2849 = vrot.slane %v2773, 2
      %v2850 = vrot.slane %v2775, 2
      %v2851 = vsel %vm2458, %v2849, %v2850
      %v2852 = vrot.slane %v2774, 2
      %v2853 = vrot.slane %v2776, 2
      %v2854 = vsel %vm2458, %v2852, %v2853
      %v2855 = vrot.slane %v2777, 2
      %v2856 = vrot.slane %v2779, 2
      %v2857 = vsel %vm2458, %v2855, %v2856
      %v2858 = vrot.slane %v2778, 2
      %v2859 = vrot.slane %v2780, 2
      %v2860 = vsel %vm2458, %v2858, %v2859
      %v2877 = vpack.c.bf16 %v2821, %v2815
      %v2878 = vpack.c.bf16 %v2824, %v2818
      %v2879 = vpack.c.bf16 %v2833, %v2827
      %v2880 = vpack.c.bf16 %v2836, %v2830
      %v2881 = vpack.c.bf16 %v2845, %v2839
      %v2882 = vpack.c.bf16 %v2848, %v2842
      %v2883 = vpack.c.bf16 %v2857, %v2851
      %v2884 = vpack.c.bf16 %v2860, %v2854
      %s2885 = scalar_lea.vmem %s1, 896
      %v2886 = vld [vmem:[%s2885] sm:$0xf]
      %v2887 = vld [vmem:[%s2885 + $0x4] sm:$0xf]
      %v2888 = vld [vmem:[%s2885 + $0x8] sm:$0xf]
      %v2889 = vld [vmem:[%s2885 + $0xc] sm:$0xf]
      %v2890 = vld [vmem:[%s2885 + $0x10] sm:$0xf]
      %v2891 = vld [vmem:[%s2885 + $0x14] sm:$0xf]
      %v2892 = vld [vmem:[%s2885 + $0x18] sm:$0xf]
      %v2893 = vld [vmem:[%s2885 + $0x1c] sm:$0xf]
      %v2894 = vld [vmem:[%s2885 + $0x20] sm:$0xf]
      %v2895 = vld [vmem:[%s2885 + $0x24] sm:$0xf]
      %v2896 = vld [vmem:[%s2885 + $0x28] sm:$0xf]
      %v2897 = vld [vmem:[%s2885 + $0x2c] sm:$0xf]
      %v2898 = vld [vmem:[%s2885 + $0x30] sm:$0xf]
      %v2899 = vld [vmem:[%s2885 + $0x34] sm:$0xf]
      %v2900 = vld [vmem:[%s2885 + $0x38] sm:$0xf]
      %v2901 = vld [vmem:[%s2885 + $0x3c] sm:$0xf]
      %v2902 = vld [vmem:[%s2885 + $0x40] sm:$0xf]
      %v2903 = vld [vmem:[%s2885 + $0x44] sm:$0xf]
      %v2904 = vld [vmem:[%s2885 + $0x48] sm:$0xf]
      %v2905 = vld [vmem:[%s2885 + $0x4c] sm:$0xf]
      %v2906 = vld [vmem:[%s2885 + $0x50] sm:$0xf]
      %v2907 = vld [vmem:[%s2885 + $0x54] sm:$0xf]
      %v2908 = vld [vmem:[%s2885 + $0x58] sm:$0xf]
      %v2909 = vld [vmem:[%s2885 + $0x5c] sm:$0xf]
      %v2910 = vld [vmem:[%s2885 + $0x60] sm:$0xf]
      %v2911 = vld [vmem:[%s2885 + $0x64] sm:$0xf]
      %v2912 = vld [vmem:[%s2885 + $0x68] sm:$0xf]
      %v2913 = vld [vmem:[%s2885 + $0x6c] sm:$0xf]
      %v2914 = vld [vmem:[%s2885 + $0x70] sm:$0xf]
      %v2915 = vld [vmem:[%s2885 + $0x74] sm:$0xf]
      %v2916 = vld [vmem:[%s2885 + $0x78] sm:$0xf]
      %v2917 = vld [vmem:[%s2885 + $0x7c] sm:$0xf]
      %v2950 = vunpack.c.l.b16 %v2886
      %v2951 = vunpack.c.l.b16 %v2887
      %v2952 = vunpack.c.l.b16 %v2888
      %v2953 = vunpack.c.l.b16 %v2889
      %v2954 = vunpack.c.l.b16 %v2890
      %v2955 = vunpack.c.l.b16 %v2891
      %v2956 = vunpack.c.l.b16 %v2892
      %v2957 = vunpack.c.l.b16 %v2893
      %v2958 = vunpack.c.l.b16 %v2894
      %v2959 = vunpack.c.l.b16 %v2895
      %v2960 = vunpack.c.l.b16 %v2896
      %v2961 = vunpack.c.l.b16 %v2897
      %v2962 = vunpack.c.l.b16 %v2898
      %v2963 = vunpack.c.l.b16 %v2899
      %v2964 = vunpack.c.l.b16 %v2900
      %v2965 = vunpack.c.l.b16 %v2901
      %v2966 = vunpack.c.l.b16 %v2902
      %v2967 = vunpack.c.l.b16 %v2903
      %v2968 = vunpack.c.l.b16 %v2904
      %v2969 = vunpack.c.l.b16 %v2905
      %v2970 = vunpack.c.l.b16 %v2906
      %v2971 = vunpack.c.l.b16 %v2907
      %v2972 = vunpack.c.l.b16 %v2908
      %v2973 = vunpack.c.l.b16 %v2909
      %v2974 = vunpack.c.l.b16 %v2910
      %v2975 = vunpack.c.l.b16 %v2911
      %v2976 = vunpack.c.l.b16 %v2912
      %v2977 = vunpack.c.l.b16 %v2913
      %v2978 = vunpack.c.l.b16 %v2914
      %v2979 = vunpack.c.l.b16 %v2915
      %v2980 = vunpack.c.l.b16 %v2916
      %v2981 = vunpack.c.l.b16 %v2917
      %v2982 = vpack.c.b16 %v2951, %v2950
      %v2983 = vpack.c.b16 %v2953, %v2952
      %v2984 = vpack.c.b16 %v2955, %v2954
      %v2985 = vpack.c.b16 %v2957, %v2956
      %v2986 = vpack.c.b16 %v2959, %v2958
      %v2987 = vpack.c.b16 %v2961, %v2960
      %v2988 = vpack.c.b16 %v2963, %v2962
      %v2989 = vpack.c.b16 %v2965, %v2964
      %v2990 = vpack.c.b16 %v2967, %v2966
      %v2991 = vpack.c.b16 %v2969, %v2968
      %v2992 = vpack.c.b16 %v2971, %v2970
      %v2993 = vpack.c.b16 %v2973, %v2972
      %v2994 = vpack.c.b16 %v2975, %v2974
      %v2995 = vpack.c.b16 %v2977, %v2976
      %v2996 = vpack.c.b16 %v2979, %v2978
      %v2997 = vpack.c.b16 %v2981, %v2980
      %3014 = vmatprep.subr.bf16.mxu0 0
      %3015 = vmatpush1.bf16.msra.mxu0 %v2982
      %3016 = vmatprep.subr.bf16.mxu0 0
      %3017 = vmatpush1.bf16.msra.mxu0 %v2983
      %3018 = vmatprep.subr.bf16.mxu0 0
      %3019 = vmatpush1.bf16.msra.mxu0 %v2984
      %3020 = vmatprep.subr.bf16.mxu0 0
      %3021 = vmatpush1.bf16.msra.mxu0 %v2985
      %3022 = vmatprep.subr.bf16.mxu0 0
      %3023 = vmatpush1.bf16.msra.mxu0 %v2986
      %3024 = vmatprep.subr.bf16.mxu0 0
      %3025 = vmatpush1.bf16.msra.mxu0 %v2987
      %3026 = vmatprep.subr.bf16.mxu0 0
      %3027 = vmatpush1.bf16.msra.mxu0 %v2988
      %3028 = vmatprep.subr.bf16.mxu0 0
      %3029 = vmatpush1.bf16.msra.mxu0 %v2989
      %3030 = vmatprep.subr.bf16.mxu0 0
      %3031 = vmatpush1.bf16.msra.mxu0 %v2990
      %3032 = vmatprep.subr.bf16.mxu0 0
      %3033 = vmatpush1.bf16.msra.mxu0 %v2991
      %3034 = vmatprep.subr.bf16.mxu0 0
      %3035 = vmatpush1.bf16.msra.mxu0 %v2992
      %3036 = vmatprep.subr.bf16.mxu0 0
      %3037 = vmatpush1.bf16.msra.mxu0 %v2993
      %3038 = vmatprep.subr.bf16.mxu0 0
      %3039 = vmatpush1.bf16.msra.mxu0 %v2994
      %3040 = vmatprep.subr.bf16.mxu0 0
      %3041 = vmatpush1.bf16.msra.mxu0 %v2995
      %3042 = vmatprep.subr.bf16.mxu0 0
      %3043 = vmatpush1.bf16.msra.mxu0 %v2996
      %3044 = vmatprep.subr.bf16.mxu0 0
      %3045 = vmatpush1.bf16.msra.mxu0 %v2997
      %3046 = vmatprep.mubr.bf16.mxu0 %v2878
      %3047 = vmatmul.mubr.bf16.gmra.mrb[0].mxu0 %v2877
      %v3048 = vpop.f32.mrb[0].mxu0
      %v3049 = vadd.f32 0.0, %v3048
      %v3050 = vpop.f32.mrb[0].mxu0
      %v3051 = vpop.f32.mrb[0].mxu0
      %v3052 = vadd.f32 0.0, %v3051
      %v3053 = vpop.f32.mrb[0].mxu0
      %3054 = vmatprep.mubr.bf16.mxu0 %v2880
      %3055 = vmatmul.mubr.bf16.gmra.mrb[0].mxu0 %v2879
      %v3056 = vpop.f32.mrb[0].mxu0
      %v3057 = vadd.f32 0.0, %v3056
      %v3058 = vpop.f32.mrb[0].mxu0
      %v3059 = vpop.f32.mrb[0].mxu0
      %v3060 = vadd.f32 0.0, %v3059
      %v3061 = vpop.f32.mrb[0].mxu0
      %3062 = vmatprep.mubr.bf16.mxu0 %v2882
      %3063 = vmatmul.mubr.bf16.gmra.mrb[0].mxu0 %v2881
      %v3064 = vpop.f32.mrb[0].mxu0
      %v3065 = vadd.f32 0.0, %v3064
      %v3066 = vpop.f32.mrb[0].mxu0
      %v3067 = vpop.f32.mrb[0].mxu0
      %v3068 = vadd.f32 0.0, %v3067
      %v3069 = vpop.f32.mrb[0].mxu0
      %3070 = vmatprep.mubr.bf16.mxu0 %v2884
      %3071 = vmatmul.mubr.bf16.gmra.mrb[0].mxu0 %v2883
      %v3072 = vpop.f32.mrb[0].mxu0
      %v3073 = vadd.f32 0.0, %v3072
      %v3074 = vpop.f32.mrb[0].mxu0
      %v3075 = vpop.f32.mrb[0].mxu0
      %v3076 = vadd.f32 0.0, %v3075
      %v3077 = vpop.f32.mrb[0].mxu0
      %3078 = vdwg.mxu0
      %v3079 = vld [vmem:[%s946] sm:$0xff]
      %v3080 = vld [vmem:[%s946 + $0x8] sm:$0xff]
      %v3081 = vld [vmem:[%s946 + $0x10] sm:$0xff]
      %v3082 = vld [vmem:[%s946 + $0x18] sm:$0xff]
      %v3083 = vld [vmem:[%s946 + $0x20] sm:$0xff]
      %v3084 = vld [vmem:[%s946 + $0x28] sm:$0xff]
      %v3085 = vld [vmem:[%s946 + $0x30] sm:$0xff]
      %v3086 = vld [vmem:[%s946 + $0x38] sm:$0xff]
      %v3087 = vadd.f32 %v3079, %v3049
      %v3088 = vadd.f32 %v3080, %v3052
      %v3089 = vadd.f32 %v3081, %v3057
      %v3090 = vadd.f32 %v3082, %v3060
      %v3091 = vadd.f32 %v3083, %v3065
      %v3092 = vadd.f32 %v3084, %v3068
      %v3093 = vadd.f32 %v3085, %v3073
      %v3094 = vadd.f32 %v3086, %v3076
      %3095 = vst [vmem:[%s946] sm:$0xff] %v3087
      %3096 = vst [vmem:[%s946 + $0x8] sm:$0xff] %v3088
      %3097 = vst [vmem:[%s946 + $0x10] sm:$0xff] %v3089
      %3098 = vst [vmem:[%s946 + $0x18] sm:$0xff] %v3090
      %3099 = vst [vmem:[%s946 + $0x20] sm:$0xff] %v3091
      %3100 = vst [vmem:[%s946 + $0x28] sm:$0xff] %v3092
      %3101 = vst [vmem:[%s946 + $0x30] sm:$0xff] %v3093
      %3102 = vst [vmem:[%s946 + $0x38] sm:$0xff] %v3094
      %s3103 = scalar_lea.vmem %s1, 1664
      %v3104 = vld [vmem:[%s3103] sm:$0xf]
      %v3105 = vld [vmem:[%s3103 + $0x4] sm:$0xf]
      %v3106 = vld [vmem:[%s3103 + $0x8] sm:$0xf]
      %v3107 = vld [vmem:[%s3103 + $0xc] sm:$0xf]
      %v3108 = vld [vmem:[%s3103 + $0x10] sm:$0xf]
      %v3109 = vld [vmem:[%s3103 + $0x14] sm:$0xf]
      %v3110 = vld [vmem:[%s3103 + $0x18] sm:$0xf]
      %v3111 = vld [vmem:[%s3103 + $0x1c] sm:$0xf]
      %v3112 = vld [vmem:[%s3103 + $0x20] sm:$0xf]
      %v3113 = vld [vmem:[%s3103 + $0x24] sm:$0xf]
      %v3114 = vld [vmem:[%s3103 + $0x28] sm:$0xf]
      %v3115 = vld [vmem:[%s3103 + $0x2c] sm:$0xf]
      %v3116 = vld [vmem:[%s3103 + $0x30] sm:$0xf]
      %v3117 = vld [vmem:[%s3103 + $0x34] sm:$0xf]
      %v3118 = vld [vmem:[%s3103 + $0x38] sm:$0xf]
      %v3119 = vld [vmem:[%s3103 + $0x3c] sm:$0xf]
      %v3120 = vld [vmem:[%s3103 + $0x40] sm:$0xf]
      %v3121 = vld [vmem:[%s3103 + $0x44] sm:$0xf]
      %v3122 = vld [vmem:[%s3103 + $0x48] sm:$0xf]
      %v3123 = vld [vmem:[%s3103 + $0x4c] sm:$0xf]
      %v3124 = vld [vmem:[%s3103 + $0x50] sm:$0xf]
      %v3125 = vld [vmem:[%s3103 + $0x54] sm:$0xf]
      %v3126 = vld [vmem:[%s3103 + $0x58] sm:$0xf]
      %v3127 = vld [vmem:[%s3103 + $0x5c] sm:$0xf]
      %v3128 = vld [vmem:[%s3103 + $0x60] sm:$0xf]
      %v3129 = vld [vmem:[%s3103 + $0x64] sm:$0xf]
      %v3130 = vld [vmem:[%s3103 + $0x68] sm:$0xf]
      %v3131 = vld [vmem:[%s3103 + $0x6c] sm:$0xf]
      %v3132 = vld [vmem:[%s3103 + $0x70] sm:$0xf]
      %v3133 = vld [vmem:[%s3103 + $0x74] sm:$0xf]
      %v3134 = vld [vmem:[%s3103 + $0x78] sm:$0xf]
      %v3135 = vld [vmem:[%s3103 + $0x7c] sm:$0xf]
      %v3168 = vunpack.c.l.b16 %v3104
      %v3169 = vunpack.c.l.b16 %v3105
      %v3170 = vunpack.c.l.b16 %v3106
      %v3171 = vunpack.c.l.b16 %v3107
      %v3172 = vunpack.c.l.b16 %v3108
      %v3173 = vunpack.c.l.b16 %v3109
      %v3174 = vunpack.c.l.b16 %v3110
      %v3175 = vunpack.c.l.b16 %v3111
      %v3176 = vunpack.c.l.b16 %v3112
      %v3177 = vunpack.c.l.b16 %v3113
      %v3178 = vunpack.c.l.b16 %v3114
      %v3179 = vunpack.c.l.b16 %v3115
      %v3180 = vunpack.c.l.b16 %v3116
      %v3181 = vunpack.c.l.b16 %v3117
      %v3182 = vunpack.c.l.b16 %v3118
      %v3183 = vunpack.c.l.b16 %v3119
      %v3184 = vunpack.c.l.b16 %v3120
      %v3185 = vunpack.c.l.b16 %v3121
      %v3186 = vunpack.c.l.b16 %v3122
      %v3187 = vunpack.c.l.b16 %v3123
      %v3188 = vunpack.c.l.b16 %v3124
      %v3189 = vunpack.c.l.b16 %v3125
      %v3190 = vunpack.c.l.b16 %v3126
      %v3191 = vunpack.c.l.b16 %v3127
      %v3192 = vunpack.c.l.b16 %v3128
      %v3193 = vunpack.c.l.b16 %v3129
      %v3194 = vunpack.c.l.b16 %v3130
      %v3195 = vunpack.c.l.b16 %v3131
      %v3196 = vunpack.c.l.b16 %v3132
      %v3197 = vunpack.c.l.b16 %v3133
      %v3198 = vunpack.c.l.b16 %v3134
      %v3199 = vunpack.c.l.b16 %v3135
      %v3200 = vpack.c.b16 %v3169, %v3168
      %v3201 = vpack.c.b16 %v3171, %v3170
      %v3202 = vpack.c.b16 %v3173, %v3172
      %v3203 = vpack.c.b16 %v3175, %v3174
      %v3204 = vpack.c.b16 %v3177, %v3176
      %v3205 = vpack.c.b16 %v3179, %v3178
      %v3206 = vpack.c.b16 %v3181, %v3180
      %v3207 = vpack.c.b16 %v3183, %v3182
      %v3208 = vpack.c.b16 %v3185, %v3184
      %v3209 = vpack.c.b16 %v3187, %v3186
      %v3210 = vpack.c.b16 %v3189, %v3188
      %v3211 = vpack.c.b16 %v3191, %v3190
      %v3212 = vpack.c.b16 %v3193, %v3192
      %v3213 = vpack.c.b16 %v3195, %v3194
      %v3214 = vpack.c.b16 %v3197, %v3196
      %v3215 = vpack.c.b16 %v3199, %v3198
      %3232 = vmatprep.subr.bf16.mxu0 0
      %3233 = vmatpush1.bf16.msra.mxu0 %v3200
      %3234 = vmatprep.subr.bf16.mxu0 0
      %3235 = vmatpush1.bf16.msra.mxu0 %v3201
      %3236 = vmatprep.subr.bf16.mxu0 0
      %3237 = vmatpush1.bf16.msra.mxu0 %v3202
      %3238 = vmatprep.subr.bf16.mxu0 0
      %3239 = vmatpush1.bf16.msra.mxu0 %v3203
      %3240 = vmatprep.subr.bf16.mxu0 0
      %3241 = vmatpush1.bf16.msra.mxu0 %v3204
      %3242 = vmatprep.subr.bf16.mxu0 0
      %3243 = vmatpush1.bf16.msra.mxu0 %v3205
      %3244 = vmatprep.subr.bf16.mxu0 0
      %3245 = vmatpush1.bf16.msra.mxu0 %v3206
      %3246 = vmatprep.subr.bf16.mxu0 0
      %3247 = vmatpush1.bf16.msra.mxu0 %v3207
      %3248 = vmatprep.subr.bf16.mxu0 0
      %3249 = vmatpush1.bf16.msra.mxu0 %v3208
      %3250 = vmatprep.subr.bf16.mxu0 0
      %3251 = vmatpush1.bf16.msra.mxu0 %v3209
      %3252 = vmatprep.subr.bf16.mxu0 0
      %3253 = vmatpush1.bf16.msra.mxu0 %v3210
      %3254 = vmatprep.subr.bf16.mxu0 0
      %3255 = vmatpush1.bf16.msra.mxu0 %v3211
      %3256 = vmatprep.subr.bf16.mxu0 0
      %3257 = vmatpush1.bf16.msra.mxu0 %v3212
      %3258 = vmatprep.subr.bf16.mxu0 0
      %3259 = vmatpush1.bf16.msra.mxu0 %v3213
      %3260 = vmatprep.subr.bf16.mxu0 0
      %3261 = vmatpush1.bf16.msra.mxu0 %v3214
      %3262 = vmatprep.subr.bf16.mxu0 0
      %3263 = vmatpush1.bf16.msra.mxu0 %v3215
      %3264 = vmatprep.mubr.bf16.mxu0 %v2878
      %3265 = vmatmul.mubr.bf16.gmra.mrb[0].mxu0 %v2877
      %v3266 = vpop.f32.mrb[0].mxu0
      %v3267 = vadd.f32 0.0, %v3266
      %v3268 = vpop.f32.mrb[0].mxu0
      %v3269 = vpop.f32.mrb[0].mxu0
      %v3270 = vadd.f32 0.0, %v3269
      %v3271 = vpop.f32.mrb[0].mxu0
      %3272 = vmatprep.mubr.bf16.mxu0 %v2880
      %3273 = vmatmul.mubr.bf16.gmra.mrb[0].mxu0 %v2879
      %v3274 = vpop.f32.mrb[0].mxu0
      %v3275 = vadd.f32 0.0, %v3274
      %v3276 = vpop.f32.mrb[0].mxu0
      %v3277 = vpop.f32.mrb[0].mxu0
      %v3278 = vadd.f32 0.0, %v3277
      %v3279 = vpop.f32.mrb[0].mxu0
      %3280 = vmatprep.mubr.bf16.mxu0 %v2882
      %3281 = vmatmul.mubr.bf16.gmra.mrb[0].mxu0 %v2881
      %v3282 = vpop.f32.mrb[0].mxu0
      %v3283 = vadd.f32 0.0, %v3282
      %v3284 = vpop.f32.mrb[0].mxu0
      %v3285 = vpop.f32.mrb[0].mxu0
      %v3286 = vadd.f32 0.0, %v3285
      %v3287 = vpop.f32.mrb[0].mxu0
      %3288 = vmatprep.mubr.bf16.mxu0 %v2884
      %3289 = vmatmul.mubr.bf16.gmra.mrb[0].mxu0 %v2883
      %v3290 = vpop.f32.mrb[0].mxu0
      %v3291 = vadd.f32 0.0, %v3290
      %v3292 = vpop.f32.mrb[0].mxu0
      %v3293 = vpop.f32.mrb[0].mxu0
      %v3294 = vadd.f32 0.0, %v3293
      %v3295 = vpop.f32.mrb[0].mxu0
      %3296 = vdwg.mxu0
      %v3297 = vld [vmem:[%s2385] sm:$0xff]
      %v3298 = vld [vmem:[%s2385 + $0x8] sm:$0xff]
      %v3299 = vld [vmem:[%s2385 + $0x10] sm:$0xff]
      %v3300 = vld [vmem:[%s2385 + $0x18] sm:$0xff]
      %v3301 = vld [vmem:[%s2385 + $0x20] sm:$0xff]
      %v3302 = vld [vmem:[%s2385 + $0x28] sm:$0xff]
      %v3303 = vld [vmem:[%s2385 + $0x30] sm:$0xff]
      %v3304 = vld [vmem:[%s2385 + $0x38] sm:$0xff]
      %v3305 = vadd.f32 %v3297, %v3267
      %v3306 = vadd.f32 %v3298, %v3270
      %v3307 = vadd.f32 %v3299, %v3275
      %v3308 = vadd.f32 %v3300, %v3278
      %v3309 = vadd.f32 %v3301, %v3283
      %v3310 = vadd.f32 %v3302, %v3286
      %v3311 = vadd.f32 %v3303, %v3291
      %v3312 = vadd.f32 %v3304, %v3294
      %3313 = vst [vmem:[%s2385] sm:$0xff] %v3305
      %3314 = vst [vmem:[%s2385 + $0x8] sm:$0xff] %v3306
      %3315 = vst [vmem:[%s2385 + $0x10] sm:$0xff] %v3307
      %3316 = vst [vmem:[%s2385 + $0x18] sm:$0xff] %v3308
      %3317 = vst [vmem:[%s2385 + $0x20] sm:$0xff] %v3309
      %3318 = vst [vmem:[%s2385 + $0x28] sm:$0xff] %v3310
      %3319 = vst [vmem:[%s2385 + $0x30] sm:$0xff] %v3311
      %3320 = vst [vmem:[%s2385 + $0x38] sm:$0xff] %v3312
      %s3321 = scalar_lea.vmem %s165, 64
      %v3322 = vld [vmem:[%s3321] sm:$0xff]
      %v3323 = vld [vmem:[%s3321 + $0x8] sm:$0xff]
      %v3324 = vld [vmem:[%s3321 + $0x20] sm:$0xff]
      %v3325 = vld [vmem:[%s3321 + $0x28] sm:$0xff]
      %v3326 = vld [vmem:[%s3321 + $0x40] sm:$0xff]
      %v3327 = vld [vmem:[%s3321 + $0x48] sm:$0xff]
      %v3328 = vld [vmem:[%s3321 + $0x60] sm:$0xff]
      %v3329 = vld [vmem:[%s3321 + $0x68] sm:$0xff]
      %v3330 = vld [vmem:[%s3321 + $0x80] sm:$0xff]
      %v3331 = vld [vmem:[%s3321 + $0x88] sm:$0xff]
      %v3332 = vld [vmem:[%s3321 + $0xa0] sm:$0xff]
      %v3333 = vld [vmem:[%s3321 + $0xa8] sm:$0xff]
      %v3334 = vld [vmem:[%s3321 + $0xc0] sm:$0xff]
      %v3335 = vld [vmem:[%s3321 + $0xc8] sm:$0xff]
      %v3336 = vld [vmem:[%s3321 + $0xe0] sm:$0xff]
      %v3337 = vld [vmem:[%s3321 + $0xe8] sm:$0xff]
      %v3338 = vpack.c.bf16 %v3324, %v3322
      %v3339 = vpack.c.bf16 %v3325, %v3323
      %v3340 = vpack.c.bf16 %v3328, %v3326
      %v3341 = vpack.c.bf16 %v3329, %v3327
      %v3342 = vpack.c.bf16 %v3332, %v3330
      %v3343 = vpack.c.bf16 %v3333, %v3331
      %v3344 = vpack.c.bf16 %v3336, %v3334
      %v3345 = vpack.c.bf16 %v3337, %v3335
      %s3346 = scalar_lea.vmem %s1, 1280
      %v3347 = vld [vmem:[%s3346] sm:$0xf]
      %v3348 = vld [vmem:[%s3346 + $0x4] sm:$0xf]
      %v3349 = vld [vmem:[%s3346 + $0x8] sm:$0xf]
      %v3350 = vld [vmem:[%s3346 + $0xc] sm:$0xf]
      %v3351 = vld [vmem:[%s3346 + $0x10] sm:$0xf]
      %v3352 = vld [vmem:[%s3346 + $0x14] sm:$0xf]
      %v3353 = vld [vmem:[%s3346 + $0x18] sm:$0xf]
      %v3354 = vld [vmem:[%s3346 + $0x1c] sm:$0xf]
      %v3355 = vld [vmem:[%s3346 + $0x20] sm:$0xf]
      %v3356 = vld [vmem:[%s3346 + $0x24] sm:$0xf]
      %v3357 = vld [vmem:[%s3346 + $0x28] sm:$0xf]
      %v3358 = vld [vmem:[%s3346 + $0x2c] sm:$0xf]
      %v3359 = vld [vmem:[%s3346 + $0x30] sm:$0xf]
      %v3360 = vld [vmem:[%s3346 + $0x34] sm:$0xf]
      %v3361 = vld [vmem:[%s3346 + $0x38] sm:$0xf]
      %v3362 = vld [vmem:[%s3346 + $0x3c] sm:$0xf]
      %v3363 = vld [vmem:[%s3346 + $0x40] sm:$0xf]
      %v3364 = vld [vmem:[%s3346 + $0x44] sm:$0xf]
      %v3365 = vld [vmem:[%s3346 + $0x48] sm:$0xf]
      %v3366 = vld [vmem:[%s3346 + $0x4c] sm:$0xf]
      %v3367 = vld [vmem:[%s3346 + $0x50] sm:$0xf]
      %v3368 = vld [vmem:[%s3346 + $0x54] sm:$0xf]
      %v3369 = vld [vmem:[%s3346 + $0x58] sm:$0xf]
      %v3370 = vld [vmem:[%s3346 + $0x5c] sm:$0xf]
      %v3371 = vld [vmem:[%s3346 + $0x60] sm:$0xf]
      %v3372 = vld [vmem:[%s3346 + $0x64] sm:$0xf]
      %v3373 = vld [vmem:[%s3346 + $0x68] sm:$0xf]
      %v3374 = vld [vmem:[%s3346 + $0x6c] sm:$0xf]
      %v3375 = vld [vmem:[%s3346 + $0x70] sm:$0xf]
      %v3376 = vld [vmem:[%s3346 + $0x74] sm:$0xf]
      %v3377 = vld [vmem:[%s3346 + $0x78] sm:$0xf]
      %v3378 = vld [vmem:[%s3346 + $0x7c] sm:$0xf]
      %v3411 = vunpack.c.l.b16 %v3347
      %v3412 = vunpack.c.l.b16 %v3348
      %v3413 = vunpack.c.l.b16 %v3349
      %v3414 = vunpack.c.l.b16 %v3350
      %v3415 = vunpack.c.l.b16 %v3351
      %v3416 = vunpack.c.l.b16 %v3352
      %v3417 = vunpack.c.l.b16 %v3353
      %v3418 = vunpack.c.l.b16 %v3354
      %v3419 = vunpack.c.l.b16 %v3355
      %v3420 = vunpack.c.l.b16 %v3356
      %v3421 = vunpack.c.l.b16 %v3357
      %v3422 = vunpack.c.l.b16 %v3358
      %v3423 = vunpack.c.l.b16 %v3359
      %v3424 = vunpack.c.l.b16 %v3360
      %v3425 = vunpack.c.l.b16 %v3361
      %v3426 = vunpack.c.l.b16 %v3362
      %v3427 = vunpack.c.l.b16 %v3363
      %v3428 = vunpack.c.l.b16 %v3364
      %v3429 = vunpack.c.l.b16 %v3365
      %v3430 = vunpack.c.l.b16 %v3366
      %v3431 = vunpack.c.l.b16 %v3367
      %v3432 = vunpack.c.l.b16 %v3368
      %v3433 = vunpack.c.l.b16 %v3369
      %v3434 = vunpack.c.l.b16 %v3370
      %v3435 = vunpack.c.l.b16 %v3371
      %v3436 = vunpack.c.l.b16 %v3372
      %v3437 = vunpack.c.l.b16 %v3373
      %v3438 = vunpack.c.l.b16 %v3374
      %v3439 = vunpack.c.l.b16 %v3375
      %v3440 = vunpack.c.l.b16 %v3376
      %v3441 = vunpack.c.l.b16 %v3377
      %v3442 = vunpack.c.l.b16 %v3378
      %v3443 = vpack.c.b16 %v3412, %v3411
      %v3444 = vpack.c.b16 %v3414, %v3413
      %v3445 = vpack.c.b16 %v3416, %v3415
      %v3446 = vpack.c.b16 %v3418, %v3417
      %v3447 = vpack.c.b16 %v3420, %v3419
      %v3448 = vpack.c.b16 %v3422, %v3421
      %v3449 = vpack.c.b16 %v3424, %v3423
      %v3450 = vpack.c.b16 %v3426, %v3425
      %v3451 = vpack.c.b16 %v3428, %v3427
      %v3452 = vpack.c.b16 %v3430, %v3429
      %v3453 = vpack.c.b16 %v3432, %v3431
      %v3454 = vpack.c.b16 %v3434, %v3433
      %v3455 = vpack.c.b16 %v3436, %v3435
      %v3456 = vpack.c.b16 %v3438, %v3437
      %v3457 = vpack.c.b16 %v3440, %v3439
      %v3458 = vpack.c.b16 %v3442, %v3441
      %3475 = vmatprep.subr.bf16.mxu0 0
      %3476 = vmatpush1.bf16.msra.mxu0 %v3443
      %3477 = vmatprep.subr.bf16.mxu0 0
      %3478 = vmatpush1.bf16.msra.mxu0 %v3444
      %3479 = vmatprep.subr.bf16.mxu0 0
      %3480 = vmatpush1.bf16.msra.mxu0 %v3445
      %3481 = vmatprep.subr.bf16.mxu0 0
      %3482 = vmatpush1.bf16.msra.mxu0 %v3446
      %3483 = vmatprep.subr.bf16.mxu0 0
      %3484 = vmatpush1.bf16.msra.mxu0 %v3447
      %3485 = vmatprep.subr.bf16.mxu0 0
      %3486 = vmatpush1.bf16.msra.mxu0 %v3448
      %3487 = vmatprep.subr.bf16.mxu0 0
      %3488 = vmatpush1.bf16.msra.mxu0 %v3449
      %3489 = vmatprep.subr.bf16.mxu0 0
      %3490 = vmatpush1.bf16.msra.mxu0 %v3450
      %3491 = vmatprep.subr.bf16.mxu0 0
      %3492 = vmatpush1.bf16.msra.mxu0 %v3451
      %3493 = vmatprep.subr.bf16.mxu0 0
      %3494 = vmatpush1.bf16.msra.mxu0 %v3452
      %3495 = vmatprep.subr.bf16.mxu0 0
      %3496 = vmatpush1.bf16.msra.mxu0 %v3453
      %3497 = vmatprep.subr.bf16.mxu0 0
      %3498 = vmatpush1.bf16.msra.mxu0 %v3454
      %3499 = vmatprep.subr.bf16.mxu0 0
      %3500 = vmatpush1.bf16.msra.mxu0 %v3455
      %3501 = vmatprep.subr.bf16.mxu0 0
      %3502 = vmatpush1.bf16.msra.mxu0 %v3456
      %3503 = vmatprep.subr.bf16.mxu0 0
      %3504 = vmatpush1.bf16.msra.mxu0 %v3457
      %3505 = vmatprep.subr.bf16.mxu0 0
      %3506 = vmatpush1.bf16.msra.mxu0 %v3458
      %3507 = vmatprep.mubr.bf16.mxu0 %v3339
      %3508 = vmatmul.mubr.bf16.gmra.mrb[0].mxu0 %v3338
      %v3509 = vpop.f32.mrb[0].mxu0
      %v3510 = vadd.f32 0.0, %v3509
      %v3511 = vpop.f32.mrb[0].mxu0
      %v3512 = vpop.f32.mrb[0].mxu0
      %v3513 = vadd.f32 0.0, %v3512
      %v3514 = vpop.f32.mrb[0].mxu0
      %3515 = vmatprep.mubr.bf16.mxu0 %v3341
      %3516 = vmatmul.mubr.bf16.gmra.mrb[0].mxu0 %v3340
      %v3517 = vpop.f32.mrb[0].mxu0
      %v3518 = vadd.f32 0.0, %v3517
      %v3519 = vpop.f32.mrb[0].mxu0
      %v3520 = vpop.f32.mrb[0].mxu0
      %v3521 = vadd.f32 0.0, %v3520
      %v3522 = vpop.f32.mrb[0].mxu0
      %3523 = vmatprep.mubr.bf16.mxu0 %v3343
      %3524 = vmatmul.mubr.bf16.gmra.mrb[0].mxu0 %v3342
      %v3525 = vpop.f32.mrb[0].mxu0
      %v3526 = vadd.f32 0.0, %v3525
      %v3527 = vpop.f32.mrb[0].mxu0
      %v3528 = vpop.f32.mrb[0].mxu0
      %v3529 = vadd.f32 0.0, %v3528
      %v3530 = vpop.f32.mrb[0].mxu0
      %3531 = vmatprep.mubr.bf16.mxu0 %v3345
      %3532 = vmatmul.mubr.bf16.gmra.mrb[0].mxu0 %v3344
      %v3533 = vpop.f32.mrb[0].mxu0
      %v3534 = vadd.f32 0.0, %v3533
      %v3535 = vpop.f32.mrb[0].mxu0
      %v3536 = vpop.f32.mrb[0].mxu0
      %v3537 = vadd.f32 0.0, %v3536
      %v3538 = vpop.f32.mrb[0].mxu0
      %3539 = vdwg.mxu0
      %v3540 = vld [vmem:[%s1392] sm:$0xff]
      %v3541 = vld [vmem:[%s1392 + $0x8] sm:$0xff]
      %v3542 = vld [vmem:[%s1392 + $0x10] sm:$0xff]
      %v3543 = vld [vmem:[%s1392 + $0x18] sm:$0xff]
      %v3544 = vld [vmem:[%s1392 + $0x20] sm:$0xff]
      %v3545 = vld [vmem:[%s1392 + $0x28] sm:$0xff]
      %v3546 = vld [vmem:[%s1392 + $0x30] sm:$0xff]
      %v3547 = vld [vmem:[%s1392 + $0x38] sm:$0xff]
      %v3548 = vadd.f32 %v3540, %v3510
      %v3549 = vadd.f32 %v3541, %v3513
      %v3550 = vadd.f32 %v3542, %v3518
      %v3551 = vadd.f32 %v3543, %v3521
      %v3552 = vadd.f32 %v3544, %v3526
      %v3553 = vadd.f32 %v3545, %v3529
      %v3554 = vadd.f32 %v3546, %v3534
      %v3555 = vadd.f32 %v3547, %v3537
      %3556 = vst [vmem:[%s1392] sm:$0xff] %v3548
      %3557 = vst [vmem:[%s1392 + $0x8] sm:$0xff] %v3549
      %3558 = vst [vmem:[%s1392 + $0x10] sm:$0xff] %v3550
      %3559 = vst [vmem:[%s1392 + $0x18] sm:$0xff] %v3551
      %3560 = vst [vmem:[%s1392 + $0x20] sm:$0xff] %v3552
      %3561 = vst [vmem:[%s1392 + $0x28] sm:$0xff] %v3553
      %3562 = vst [vmem:[%s1392 + $0x30] sm:$0xff] %v3554
      %3563 = vst [vmem:[%s1392 + $0x38] sm:$0xff] %v3555
      %v3564 = vld [vmem:[%s3321] sm:$0xfe]
      %v3565 = vld [vmem:[%s3321 + $0x8] sm:$0xfe]
      %v3566 = vld [vmem:[%s3321 + $0x10] sm:$0x1]
      %v3567 = vld [vmem:[%s3321 + $0x18] sm:$0x1]
      %v3568 = vld [vmem:[%s3321 + $0x20] sm:$0xfe]
      %v3569 = vld [vmem:[%s3321 + $0x28] sm:$0xfe]
      %v3570 = vld [vmem:[%s3321 + $0x30] sm:$0x1]
      %v3571 = vld [vmem:[%s3321 + $0x38] sm:$0x1]
      %v3572 = vld [vmem:[%s3321 + $0x40] sm:$0xfe]
      %v3573 = vld [vmem:[%s3321 + $0x48] sm:$0xfe]
      %v3574 = vld [vmem:[%s3321 + $0x50] sm:$0x1]
      %v3575 = vld [vmem:[%s3321 + $0x58] sm:$0x1]
      %v3576 = vld [vmem:[%s3321 + $0x60] sm:$0xfe]
      %v3577 = vld [vmem:[%s3321 + $0x68] sm:$0xfe]
      %v3578 = vld [vmem:[%s3321 + $0x70] sm:$0x1]
      %v3579 = vld [vmem:[%s3321 + $0x78] sm:$0x1]
      %v3580 = vld [vmem:[%s3321 + $0x80] sm:$0xfe]
      %v3581 = vld [vmem:[%s3321 + $0x88] sm:$0xfe]
      %v3582 = vld [vmem:[%s3321 + $0x90] sm:$0x1]
      %v3583 = vld [vmem:[%s3321 + $0x98] sm:$0x1]
      %v3584 = vld [vmem:[%s3321 + $0xa0] sm:$0xfe]
      %v3585 = vld [vmem:[%s3321 + $0xa8] sm:$0xfe]
      %v3586 = vld [vmem:[%s3321 + $0xb0] sm:$0x1]
      %v3587 = vld [vmem:[%s3321 + $0xb8] sm:$0x1]
      %v3588 = vld [vmem:[%s3321 + $0xc0] sm:$0xfe]
      %v3589 = vld [vmem:[%s3321 + $0xc8] sm:$0xfe]
      %v3590 = vld [vmem:[%s3321 + $0xd0] sm:$0x1]
      %v3591 = vld [vmem:[%s3321 + $0xd8] sm:$0x1]
      %v3592 = vld [vmem:[%s3321 + $0xe0] sm:$0xfe]
      %v3593 = vld [vmem:[%s3321 + $0xe8] sm:$0xfe]
      %v3594 = vld [vmem:[%s3321 + $0xf0] sm:$0x1]
      %v3595 = vld [vmem:[%s3321 + $0xf8] sm:$0x1]
      %v3628 = vrot.slane %v3564, 1
      %v3629 = vrot.slane %v3566, 1
      %v3630 = vsel %vm461, %v3628, %v3629
      %v3631 = vrot.slane %v3565, 1
      %v3632 = vrot.slane %v3567, 1
      %v3633 = vsel %vm461, %v3631, %v3632
      %v3634 = vrot.slane %v3568, 1
      %v3635 = vrot.slane %v3570, 1
      %v3636 = vsel %vm461, %v3634, %v3635
      %v3637 = vrot.slane %v3569, 1
      %v3638 = vrot.slane %v3571, 1
      %v3639 = vsel %vm461, %v3637, %v3638
      %v3640 = vrot.slane %v3572, 1
      %v3641 = vrot.slane %v3574, 1
      %v3642 = vsel %vm461, %v3640, %v3641
      %v3643 = vrot.slane %v3573, 1
      %v3644 = vrot.slane %v3575, 1
      %v3645 = vsel %vm461, %v3643, %v3644
      %v3646 = vrot.slane %v3576, 1
      %v3647 = vrot.slane %v3578, 1
      %v3648 = vsel %vm461, %v3646, %v3647
      %v3649 = vrot.slane %v3577, 1
      %v3650 = vrot.slane %v3579, 1
      %v3651 = vsel %vm461, %v3649, %v3650
      %v3652 = vrot.slane %v3580, 1
      %v3653 = vrot.slane %v3582, 1
      %v3654 = vsel %vm461, %v3652, %v3653
      %v3655 = vrot.slane %v3581, 1
      %v3656 = vrot.slane %v3583, 1
      %v3657 = vsel %vm461, %v3655, %v3656
      %v3658 = vrot.slane %v3584, 1
      %v3659 = vrot.slane %v3586, 1
      %v3660 = vsel %vm461, %v3658, %v3659
      %v3661 = vrot.slane %v3585, 1
      %v3662 = vrot.slane %v3587, 1
      %v3663 = vsel %vm461, %v3661, %v3662
      %v3664 = vrot.slane %v3588, 1
      %v3665 = vrot.slane %v3590, 1
      %v3666 = vsel %vm461, %v3664, %v3665
      %v3667 = vrot.slane %v3589, 1
      %v3668 = vrot.slane %v3591, 1
      %v3669 = vsel %vm461, %v3667, %v3668
      %v3670 = vrot.slane %v3592, 1
      %v3671 = vrot.slane %v3594, 1
      %v3672 = vsel %vm461, %v3670, %v3671
      %v3673 = vrot.slane %v3593, 1
      %v3674 = vrot.slane %v3595, 1
      %v3675 = vsel %vm461, %v3673, %v3674
      %v3692 = vpack.c.bf16 %v3636, %v3630
      %v3693 = vpack.c.bf16 %v3639, %v3633
      %v3694 = vpack.c.bf16 %v3648, %v3642
      %v3695 = vpack.c.bf16 %v3651, %v3645
      %v3696 = vpack.c.bf16 %v3660, %v3654
      %v3697 = vpack.c.bf16 %v3663, %v3657
      %v3698 = vpack.c.bf16 %v3672, %v3666
      %v3699 = vpack.c.bf16 %v3675, %v3669
      %s3700 = scalar_lea.vmem %s1, 1408
      %v3701 = vld [vmem:[%s3700] sm:$0xf]
      %v3702 = vld [vmem:[%s3700 + $0x4] sm:$0xf]
      %v3703 = vld [vmem:[%s3700 + $0x8] sm:$0xf]
      %v3704 = vld [vmem:[%s3700 + $0xc] sm:$0xf]
      %v3705 = vld [vmem:[%s3700 + $0x10] sm:$0xf]
      %v3706 = vld [vmem:[%s3700 + $0x14] sm:$0xf]
      %v3707 = vld [vmem:[%s3700 + $0x18] sm:$0xf]
      %v3708 = vld [vmem:[%s3700 + $0x1c] sm:$0xf]
      %v3709 = vld [vmem:[%s3700 + $0x20] sm:$0xf]
      %v3710 = vld [vmem:[%s3700 + $0x24] sm:$0xf]
      %v3711 = vld [vmem:[%s3700 + $0x28] sm:$0xf]
      %v3712 = vld [vmem:[%s3700 + $0x2c] sm:$0xf]
      %v3713 = vld [vmem:[%s3700 + $0x30] sm:$0xf]
      %v3714 = vld [vmem:[%s3700 + $0x34] sm:$0xf]
      %v3715 = vld [vmem:[%s3700 + $0x38] sm:$0xf]
      %v3716 = vld [vmem:[%s3700 + $0x3c] sm:$0xf]
      %v3717 = vld [vmem:[%s3700 + $0x40] sm:$0xf]
      %v3718 = vld [vmem:[%s3700 + $0x44] sm:$0xf]
      %v3719 = vld [vmem:[%s3700 + $0x48] sm:$0xf]
      %v3720 = vld [vmem:[%s3700 + $0x4c] sm:$0xf]
      %v3721 = vld [vmem:[%s3700 + $0x50] sm:$0xf]
      %v3722 = vld [vmem:[%s3700 + $0x54] sm:$0xf]
      %v3723 = vld [vmem:[%s3700 + $0x58] sm:$0xf]
      %v3724 = vld [vmem:[%s3700 + $0x5c] sm:$0xf]
      %v3725 = vld [vmem:[%s3700 + $0x60] sm:$0xf]
      %v3726 = vld [vmem:[%s3700 + $0x64] sm:$0xf]
      %v3727 = vld [vmem:[%s3700 + $0x68] sm:$0xf]
      %v3728 = vld [vmem:[%s3700 + $0x6c] sm:$0xf]
      %v3729 = vld [vmem:[%s3700 + $0x70] sm:$0xf]
      %v3730 = vld [vmem:[%s3700 + $0x74] sm:$0xf]
      %v3731 = vld [vmem:[%s3700 + $0x78] sm:$0xf]
      %v3732 = vld [vmem:[%s3700 + $0x7c] sm:$0xf]
      %v3765 = vunpack.c.l.b16 %v3701
      %v3766 = vunpack.c.l.b16 %v3702
      %v3767 = vunpack.c.l.b16 %v3703
      %v3768 = vunpack.c.l.b16 %v3704
      %v3769 = vunpack.c.l.b16 %v3705
      %v3770 = vunpack.c.l.b16 %v3706
      %v3771 = vunpack.c.l.b16 %v3707
      %v3772 = vunpack.c.l.b16 %v3708
      %v3773 = vunpack.c.l.b16 %v3709
      %v3774 = vunpack.c.l.b16 %v3710
      %v3775 = vunpack.c.l.b16 %v3711
      %v3776 = vunpack.c.l.b16 %v3712
      %v3777 = vunpack.c.l.b16 %v3713
      %v3778 = vunpack.c.l.b16 %v3714
      %v3779 = vunpack.c.l.b16 %v3715
      %v3780 = vunpack.c.l.b16 %v3716
      %v3781 = vunpack.c.l.b16 %v3717
      %v3782 = vunpack.c.l.b16 %v3718
      %v3783 = vunpack.c.l.b16 %v3719
      %v3784 = vunpack.c.l.b16 %v3720
      %v3785 = vunpack.c.l.b16 %v3721
      %v3786 = vunpack.c.l.b16 %v3722
      %v3787 = vunpack.c.l.b16 %v3723
      %v3788 = vunpack.c.l.b16 %v3724
      %v3789 = vunpack.c.l.b16 %v3725
      %v3790 = vunpack.c.l.b16 %v3726
      %v3791 = vunpack.c.l.b16 %v3727
      %v3792 = vunpack.c.l.b16 %v3728
      %v3793 = vunpack.c.l.b16 %v3729
      %v3794 = vunpack.c.l.b16 %v3730
      %v3795 = vunpack.c.l.b16 %v3731
      %v3796 = vunpack.c.l.b16 %v3732
      %v3797 = vpack.c.b16 %v3766, %v3765
      %v3798 = vpack.c.b16 %v3768, %v3767
      %v3799 = vpack.c.b16 %v3770, %v3769
      %v3800 = vpack.c.b16 %v3772, %v3771
      %v3801 = vpack.c.b16 %v3774, %v3773
      %v3802 = vpack.c.b16 %v3776, %v3775
      %v3803 = vpack.c.b16 %v3778, %v3777
      %v3804 = vpack.c.b16 %v3780, %v3779
      %v3805 = vpack.c.b16 %v3782, %v3781
      %v3806 = vpack.c.b16 %v3784, %v3783
      %v3807 = vpack.c.b16 %v3786, %v3785
      %v3808 = vpack.c.b16 %v3788, %v3787
      %v3809 = vpack.c.b16 %v3790, %v3789
      %v3810 = vpack.c.b16 %v3792, %v3791
      %v3811 = vpack.c.b16 %v3794, %v3793
      %v3812 = vpack.c.b16 %v3796, %v3795
      %3829 = vmatprep.subr.bf16.mxu0 0
      %3830 = vmatpush1.bf16.msra.mxu0 %v3797
      %3831 = vmatprep.subr.bf16.mxu0 0
      %3832 = vmatpush1.bf16.msra.mxu0 %v3798
      %3833 = vmatprep.subr.bf16.mxu0 0
      %3834 = vmatpush1.bf16.msra.mxu0 %v3799
      %3835 = vmatprep.subr.bf16.mxu0 0
      %3836 = vmatpush1.bf16.msra.mxu0 %v3800
      %3837 = vmatprep.subr.bf16.mxu0 0
      %3838 = vmatpush1.bf16.msra.mxu0 %v3801
      %3839 = vmatprep.subr.bf16.mxu0 0
      %3840 = vmatpush1.bf16.msra.mxu0 %v3802
      %3841 = vmatprep.subr.bf16.mxu0 0
      %3842 = vmatpush1.bf16.msra.mxu0 %v3803
      %3843 = vmatprep.subr.bf16.mxu0 0
      %3844 = vmatpush1.bf16.msra.mxu0 %v3804
      %3845 = vmatprep.subr.bf16.mxu0 0
      %3846 = vmatpush1.bf16.msra.mxu0 %v3805
      %3847 = vmatprep.subr.bf16.mxu0 0
      %3848 = vmatpush1.bf16.msra.mxu0 %v3806
      %3849 = vmatprep.subr.bf16.mxu0 0
      %3850 = vmatpush1.bf16.msra.mxu0 %v3807
      %3851 = vmatprep.subr.bf16.mxu0 0
      %3852 = vmatpush1.bf16.msra.mxu0 %v3808
      %3853 = vmatprep.subr.bf16.mxu0 0
      %3854 = vmatpush1.bf16.msra.mxu0 %v3809
      %3855 = vmatprep.subr.bf16.mxu0 0
      %3856 = vmatpush1.bf16.msra.mxu0 %v3810
      %3857 = vmatprep.subr.bf16.mxu0 0
      %3858 = vmatpush1.bf16.msra.mxu0 %v3811
      %3859 = vmatprep.subr.bf16.mxu0 0
      %3860 = vmatpush1.bf16.msra.mxu0 %v3812
      %3861 = vmatprep.mubr.bf16.mxu0 %v3693
      %3862 = vmatmul.mubr.bf16.gmra.mrb[0].mxu0 %v3692
      %v3863 = vpop.f32.mrb[0].mxu0
      %v3864 = vadd.f32 0.0, %v3863
      %v3865 = vpop.f32.mrb[0].mxu0
      %v3866 = vpop.f32.mrb[0].mxu0
      %v3867 = vadd.f32 0.0, %v3866
      %v3868 = vpop.f32.mrb[0].mxu0
      %3869 = vmatprep.mubr.bf16.mxu0 %v3695
      %3870 = vmatmul.mubr.bf16.gmra.mrb[0].mxu0 %v3694
      %v3871 = vpop.f32.mrb[0].mxu0
      %v3872 = vadd.f32 0.0, %v3871
      %v3873 = vpop.f32.mrb[0].mxu0
      %v3874 = vpop.f32.mrb[0].mxu0
      %v3875 = vadd.f32 0.0, %v3874
      %v3876 = vpop.f32.mrb[0].mxu0
      %3877 = vmatprep.mubr.bf16.mxu0 %v3697
      %3878 = vmatmul.mubr.bf16.gmra.mrb[0].mxu0 %v3696
      %v3879 = vpop.f32.mrb[0].mxu0
      %v3880 = vadd.f32 0.0, %v3879
      %v3881 = vpop.f32.mrb[0].mxu0
      %v3882 = vpop.f32.mrb[0].mxu0
      %v3883 = vadd.f32 0.0, %v3882
      %v3884 = vpop.f32.mrb[0].mxu0
      %3885 = vmatprep.mubr.bf16.mxu0 %v3699
      %3886 = vmatmul.mubr.bf16.gmra.mrb[0].mxu0 %v3698
      %v3887 = vpop.f32.mrb[0].mxu0
      %v3888 = vadd.f32 0.0, %v3887
      %v3889 = vpop.f32.mrb[0].mxu0
      %v3890 = vpop.f32.mrb[0].mxu0
      %v3891 = vadd.f32 0.0, %v3890
      %v3892 = vpop.f32.mrb[0].mxu0
      %3893 = vdwg.mxu0
      %v3894 = vld [vmem:[%s1392] sm:$0xff]
      %v3895 = vld [vmem:[%s1392 + $0x8] sm:$0xff]
      %v3896 = vld [vmem:[%s1392 + $0x10] sm:$0xff]
      %v3897 = vld [vmem:[%s1392 + $0x18] sm:$0xff]
      %v3898 = vld [vmem:[%s1392 + $0x20] sm:$0xff]
      %v3899 = vld [vmem:[%s1392 + $0x28] sm:$0xff]
      %v3900 = vld [vmem:[%s1392 + $0x30] sm:$0xff]
      %v3901 = vld [vmem:[%s1392 + $0x38] sm:$0xff]
      %v3902 = vadd.f32 %v3894, %v3864
      %v3903 = vadd.f32 %v3895, %v3867
      %v3904 = vadd.f32 %v3896, %v3872
      %v3905 = vadd.f32 %v3897, %v3875
      %v3906 = vadd.f32 %v3898, %v3880
      %v3907 = vadd.f32 %v3899, %v3883
      %v3908 = vadd.f32 %v3900, %v3888
      %v3909 = vadd.f32 %v3901, %v3891
      %3910 = vst [vmem:[%s1392] sm:$0xff] %v3902
      %3911 = vst [vmem:[%s1392 + $0x8] sm:$0xff] %v3903
      %3912 = vst [vmem:[%s1392 + $0x10] sm:$0xff] %v3904
      %3913 = vst [vmem:[%s1392 + $0x18] sm:$0xff] %v3905
      %3914 = vst [vmem:[%s1392 + $0x20] sm:$0xff] %v3906
      %3915 = vst [vmem:[%s1392 + $0x28] sm:$0xff] %v3907
      %3916 = vst [vmem:[%s1392 + $0x30] sm:$0xff] %v3908
      %3917 = vst [vmem:[%s1392 + $0x38] sm:$0xff] %v3909
      %s3918 = scalar_lea.vmem %s1, 1792
      %v3919 = vld [vmem:[%s3918] sm:$0xf]
      %v3920 = vld [vmem:[%s3918 + $0x4] sm:$0xf]
      %v3921 = vld [vmem:[%s3918 + $0x8] sm:$0xf]
      %v3922 = vld [vmem:[%s3918 + $0xc] sm:$0xf]
      %v3923 = vld [vmem:[%s3918 + $0x10] sm:$0xf]
      %v3924 = vld [vmem:[%s3918 + $0x14] sm:$0xf]
      %v3925 = vld [vmem:[%s3918 + $0x18] sm:$0xf]
      %v3926 = vld [vmem:[%s3918 + $0x1c] sm:$0xf]
      %v3927 = vld [vmem:[%s3918 + $0x20] sm:$0xf]
      %v3928 = vld [vmem:[%s3918 + $0x24] sm:$0xf]
      %v3929 = vld [vmem:[%s3918 + $0x28] sm:$0xf]
      %v3930 = vld [vmem:[%s3918 + $0x2c] sm:$0xf]
      %v3931 = vld [vmem:[%s3918 + $0x30] sm:$0xf]
      %v3932 = vld [vmem:[%s3918 + $0x34] sm:$0xf]
      %v3933 = vld [vmem:[%s3918 + $0x38] sm:$0xf]
      %v3934 = vld [vmem:[%s3918 + $0x3c] sm:$0xf]
      %v3935 = vld [vmem:[%s3918 + $0x40] sm:$0xf]
      %v3936 = vld [vmem:[%s3918 + $0x44] sm:$0xf]
      %v3937 = vld [vmem:[%s3918 + $0x48] sm:$0xf]
      %v3938 = vld [vmem:[%s3918 + $0x4c] sm:$0xf]
      %v3939 = vld [vmem:[%s3918 + $0x50] sm:$0xf]
      %v3940 = vld [vmem:[%s3918 + $0x54] sm:$0xf]
      %v3941 = vld [vmem:[%s3918 + $0x58] sm:$0xf]
      %v3942 = vld [vmem:[%s3918 + $0x5c] sm:$0xf]
      %v3943 = vld [vmem:[%s3918 + $0x60] sm:$0xf]
      %v3944 = vld [vmem:[%s3918 + $0x64] sm:$0xf]
      %v3945 = vld [vmem:[%s3918 + $0x68] sm:$0xf]
      %v3946 = vld [vmem:[%s3918 + $0x6c] sm:$0xf]
      %v3947 = vld [vmem:[%s3918 + $0x70] sm:$0xf]
      %v3948 = vld [vmem:[%s3918 + $0x74] sm:$0xf]
      %v3949 = vld [vmem:[%s3918 + $0x78] sm:$0xf]
      %v3950 = vld [vmem:[%s3918 + $0x7c] sm:$0xf]
      %v3983 = vunpack.c.l.b16 %v3919
      %v3984 = vunpack.c.l.b16 %v3920
      %v3985 = vunpack.c.l.b16 %v3921
      %v3986 = vunpack.c.l.b16 %v3922
      %v3987 = vunpack.c.l.b16 %v3923
      %v3988 = vunpack.c.l.b16 %v3924
      %v3989 = vunpack.c.l.b16 %v3925
      %v3990 = vunpack.c.l.b16 %v3926
      %v3991 = vunpack.c.l.b16 %v3927
      %v3992 = vunpack.c.l.b16 %v3928
      %v3993 = vunpack.c.l.b16 %v3929
      %v3994 = vunpack.c.l.b16 %v3930
      %v3995 = vunpack.c.l.b16 %v3931
      %v3996 = vunpack.c.l.b16 %v3932
      %v3997 = vunpack.c.l.b16 %v3933
      %v3998 = vunpack.c.l.b16 %v3934
      %v3999 = vunpack.c.l.b16 %v3935
      %v4000 = vunpack.c.l.b16 %v3936
      %v4001 = vunpack.c.l.b16 %v3937
      %v4002 = vunpack.c.l.b16 %v3938
      %v4003 = vunpack.c.l.b16 %v3939
      %v4004 = vunpack.c.l.b16 %v3940
      %v4005 = vunpack.c.l.b16 %v3941
      %v4006 = vunpack.c.l.b16 %v3942
      %v4007 = vunpack.c.l.b16 %v3943
      %v4008 = vunpack.c.l.b16 %v3944
      %v4009 = vunpack.c.l.b16 %v3945
      %v4010 = vunpack.c.l.b16 %v3946
      %v4011 = vunpack.c.l.b16 %v3947
      %v4012 = vunpack.c.l.b16 %v3948
      %v4013 = vunpack.c.l.b16 %v3949
      %v4014 = vunpack.c.l.b16 %v3950
      %v4015 = vpack.c.b16 %v3984, %v3983
      %v4016 = vpack.c.b16 %v3986, %v3985
      %v4017 = vpack.c.b16 %v3988, %v3987
      %v4018 = vpack.c.b16 %v3990, %v3989
      %v4019 = vpack.c.b16 %v3992, %v3991
      %v4020 = vpack.c.b16 %v3994, %v3993
      %v4021 = vpack.c.b16 %v3996, %v3995
      %v4022 = vpack.c.b16 %v3998, %v3997
      %v4023 = vpack.c.b16 %v4000, %v3999
      %v4024 = vpack.c.b16 %v4002, %v4001
      %v4025 = vpack.c.b16 %v4004, %v4003
      %v4026 = vpack.c.b16 %v4006, %v4005
      %v4027 = vpack.c.b16 %v4008, %v4007
      %v4028 = vpack.c.b16 %v4010, %v4009
      %v4029 = vpack.c.b16 %v4012, %v4011
      %v4030 = vpack.c.b16 %v4014, %v4013
      %4047 = vmatprep.subr.bf16.mxu0 0
      %4048 = vmatpush1.bf16.msra.mxu0 %v4015
      %4049 = vmatprep.subr.bf16.mxu0 0
      %4050 = vmatpush1.bf16.msra.mxu0 %v4016
      %4051 = vmatprep.subr.bf16.mxu0 0
      %4052 = vmatpush1.bf16.msra.mxu0 %v4017
      %4053 = vmatprep.subr.bf16.mxu0 0
      %4054 = vmatpush1.bf16.msra.mxu0 %v4018
      %4055 = vmatprep.subr.bf16.mxu0 0
      %4056 = vmatpush1.bf16.msra.mxu0 %v4019
      %4057 = vmatprep.subr.bf16.mxu0 0
      %4058 = vmatpush1.bf16.msra.mxu0 %v4020
      %4059 = vmatprep.subr.bf16.mxu0 0
      %4060 = vmatpush1.bf16.msra.mxu0 %v4021
      %4061 = vmatprep.subr.bf16.mxu0 0
      %4062 = vmatpush1.bf16.msra.mxu0 %v4022
      %4063 = vmatprep.subr.bf16.mxu0 0
      %4064 = vmatpush1.bf16.msra.mxu0 %v4023
      %4065 = vmatprep.subr.bf16.mxu0 0
      %4066 = vmatpush1.bf16.msra.mxu0 %v4024
      %4067 = vmatprep.subr.bf16.mxu0 0
      %4068 = vmatpush1.bf16.msra.mxu0 %v4025
      %4069 = vmatprep.subr.bf16.mxu0 0
      %4070 = vmatpush1.bf16.msra.mxu0 %v4026
      %4071 = vmatprep.subr.bf16.mxu0 0
      %4072 = vmatpush1.bf16.msra.mxu0 %v4027
      %4073 = vmatprep.subr.bf16.mxu0 0
      %4074 = vmatpush1.bf16.msra.mxu0 %v4028
      %4075 = vmatprep.subr.bf16.mxu0 0
      %4076 = vmatpush1.bf16.msra.mxu0 %v4029
      %4077 = vmatprep.subr.bf16.mxu0 0
      %4078 = vmatpush1.bf16.msra.mxu0 %v4030
      %4079 = vmatprep.mubr.bf16.mxu0 %v3693
      %4080 = vmatmul.mubr.bf16.gmra.mrb[0].mxu0 %v3692
      %v4081 = vpop.f32.mrb[0].mxu0
      %v4082 = vadd.f32 0.0, %v4081
      %v4083 = vpop.f32.mrb[0].mxu0
      %v4084 = vpop.f32.mrb[0].mxu0
      %v4085 = vadd.f32 0.0, %v4084
      %v4086 = vpop.f32.mrb[0].mxu0
      %4087 = vmatprep.mubr.bf16.mxu0 %v3695
      %4088 = vmatmul.mubr.bf16.gmra.mrb[0].mxu0 %v3694
      %v4089 = vpop.f32.mrb[0].mxu0
      %v4090 = vadd.f32 0.0, %v4089
      %v4091 = vpop.f32.mrb[0].mxu0
      %v4092 = vpop.f32.mrb[0].mxu0
      %v4093 = vadd.f32 0.0, %v4092
      %v4094 = vpop.f32.mrb[0].mxu0
      %4095 = vmatprep.mubr.bf16.mxu0 %v3697
      %4096 = vmatmul.mubr.bf16.gmra.mrb[0].mxu0 %v3696
      %v4097 = vpop.f32.mrb[0].mxu0
      %v4098 = vadd.f32 0.0, %v4097
      %v4099 = vpop.f32.mrb[0].mxu0
      %v4100 = vpop.f32.mrb[0].mxu0
      %v4101 = vadd.f32 0.0, %v4100
      %v4102 = vpop.f32.mrb[0].mxu0
      %4103 = vmatprep.mubr.bf16.mxu0 %v3699
      %4104 = vmatmul.mubr.bf16.gmra.mrb[0].mxu0 %v3698
      %v4105 = vpop.f32.mrb[0].mxu0
      %v4106 = vadd.f32 0.0, %v4105
      %v4107 = vpop.f32.mrb[0].mxu0
      %v4108 = vpop.f32.mrb[0].mxu0
      %v4109 = vadd.f32 0.0, %v4108
      %v4110 = vpop.f32.mrb[0].mxu0
      %4111 = vdwg.mxu0
      %v4112 = vld [vmem:[%s2385] sm:$0xff]
      %v4113 = vld [vmem:[%s2385 + $0x8] sm:$0xff]
      %v4114 = vld [vmem:[%s2385 + $0x10] sm:$0xff]
      %v4115 = vld [vmem:[%s2385 + $0x18] sm:$0xff]
      %v4116 = vld [vmem:[%s2385 + $0x20] sm:$0xff]
      %v4117 = vld [vmem:[%s2385 + $0x28] sm:$0xff]
      %v4118 = vld [vmem:[%s2385 + $0x30] sm:$0xff]
      %v4119 = vld [vmem:[%s2385 + $0x38] sm:$0xff]
      %v4120 = vadd.f32 %v4112, %v4082
      %v4121 = vadd.f32 %v4113, %v4085
      %v4122 = vadd.f32 %v4114, %v4090
      %v4123 = vadd.f32 %v4115, %v4093
      %v4124 = vadd.f32 %v4116, %v4098
      %v4125 = vadd.f32 %v4117, %v4101
      %v4126 = vadd.f32 %v4118, %v4106
      %v4127 = vadd.f32 %v4119, %v4109
      %4128 = vst [vmem:[%s2385] sm:$0xff] %v4120
      %4129 = vst [vmem:[%s2385 + $0x8] sm:$0xff] %v4121
      %4130 = vst [vmem:[%s2385 + $0x10] sm:$0xff] %v4122
      %4131 = vst [vmem:[%s2385 + $0x18] sm:$0xff] %v4123
      %4132 = vst [vmem:[%s2385 + $0x20] sm:$0xff] %v4124
      %4133 = vst [vmem:[%s2385 + $0x28] sm:$0xff] %v4125
      %4134 = vst [vmem:[%s2385 + $0x30] sm:$0xff] %v4126
      %4135 = vst [vmem:[%s2385 + $0x38] sm:$0xff] %v4127
      %v4136 = vld [vmem:[%s3321] sm:$0xfc]
      %v4137 = vld [vmem:[%s3321 + $0x8] sm:$0xfc]
      %v4138 = vld [vmem:[%s3321 + $0x10] sm:$0x3]
      %v4139 = vld [vmem:[%s3321 + $0x18] sm:$0x3]
      %v4140 = vld [vmem:[%s3321 + $0x20] sm:$0xfc]
      %v4141 = vld [vmem:[%s3321 + $0x28] sm:$0xfc]
      %v4142 = vld [vmem:[%s3321 + $0x30] sm:$0x3]
      %v4143 = vld [vmem:[%s3321 + $0x38] sm:$0x3]
      %v4144 = vld [vmem:[%s3321 + $0x40] sm:$0xfc]
      %v4145 = vld [vmem:[%s3321 + $0x48] sm:$0xfc]
      %v4146 = vld [vmem:[%s3321 + $0x50] sm:$0x3]
      %v4147 = vld [vmem:[%s3321 + $0x58] sm:$0x3]
      %v4148 = vld [vmem:[%s3321 + $0x60] sm:$0xfc]
      %v4149 = vld [vmem:[%s3321 + $0x68] sm:$0xfc]
      %v4150 = vld [vmem:[%s3321 + $0x70] sm:$0x3]
      %v4151 = vld [vmem:[%s3321 + $0x78] sm:$0x3]
      %v4152 = vld [vmem:[%s3321 + $0x80] sm:$0xfc]
      %v4153 = vld [vmem:[%s3321 + $0x88] sm:$0xfc]
      %v4154 = vld [vmem:[%s3321 + $0x90] sm:$0x3]
      %v4155 = vld [vmem:[%s3321 + $0x98] sm:$0x3]
      %v4156 = vld [vmem:[%s3321 + $0xa0] sm:$0xfc]
      %v4157 = vld [vmem:[%s3321 + $0xa8] sm:$0xfc]
      %v4158 = vld [vmem:[%s3321 + $0xb0] sm:$0x3]
      %v4159 = vld [vmem:[%s3321 + $0xb8] sm:$0x3]
      %v4160 = vld [vmem:[%s3321 + $0xc0] sm:$0xfc]
      %v4161 = vld [vmem:[%s3321 + $0xc8] sm:$0xfc]
      %v4162 = vld [vmem:[%s3321 + $0xd0] sm:$0x3]
      %v4163 = vld [vmem:[%s3321 + $0xd8] sm:$0x3]
      %v4164 = vld [vmem:[%s3321 + $0xe0] sm:$0xfc]
      %v4165 = vld [vmem:[%s3321 + $0xe8] sm:$0xfc]
      %v4166 = vld [vmem:[%s3321 + $0xf0] sm:$0x3]
      %v4167 = vld [vmem:[%s3321 + $0xf8] sm:$0x3]
      %v4200 = vrot.slane %v4136, 2
      %v4201 = vrot.slane %v4138, 2
      %v4202 = vsel %vm2458, %v4200, %v4201
      %v4203 = vrot.slane %v4137, 2
      %v4204 = vrot.slane %v4139, 2
      %v4205 = vsel %vm2458, %v4203, %v4204
      %v4206 = vrot.slane %v4140, 2
      %v4207 = vrot.slane %v4142, 2
      %v4208 = vsel %vm2458, %v4206, %v4207
      %v4209 = vrot.slane %v4141, 2
      %v4210 = vrot.slane %v4143, 2
      %v4211 = vsel %vm2458, %v4209, %v4210
      %v4212 = vrot.slane %v4144, 2
      %v4213 = vrot.slane %v4146, 2
      %v4214 = vsel %vm2458, %v4212, %v4213
      %v4215 = vrot.slane %v4145, 2
      %v4216 = vrot.slane %v4147, 2
      %v4217 = vsel %vm2458, %v4215, %v4216
      %v4218 = vrot.slane %v4148, 2
      %v4219 = vrot.slane %v4150, 2
      %v4220 = vsel %vm2458, %v4218, %v4219
      %v4221 = vrot.slane %v4149, 2
      %v4222 = vrot.slane %v4151, 2
      %v4223 = vsel %vm2458, %v4221, %v4222
      %v4224 = vrot.slane %v4152, 2
      %v4225 = vrot.slane %v4154, 2
      %v4226 = vsel %vm2458, %v4224, %v4225
      %v4227 = vrot.slane %v4153, 2
      %v4228 = vrot.slane %v4155, 2
      %v4229 = vsel %vm2458, %v4227, %v4228
      %v4230 = vrot.slane %v4156, 2
      %v4231 = vrot.slane %v4158, 2
      %v4232 = vsel %vm2458, %v4230, %v4231
      %v4233 = vrot.slane %v4157, 2
      %v4234 = vrot.slane %v4159, 2
      %v4235 = vsel %vm2458, %v4233, %v4234
      %v4236 = vrot.slane %v4160, 2
      %v4237 = vrot.slane %v4162, 2
      %v4238 = vsel %vm2458, %v4236, %v4237
      %v4239 = vrot.slane %v4161, 2
      %v4240 = vrot.slane %v4163, 2
      %v4241 = vsel %vm2458, %v4239, %v4240
      %v4242 = vrot.slane %v4164, 2
      %v4243 = vrot.slane %v4166, 2
      %v4244 = vsel %vm2458, %v4242, %v4243
      %v4245 = vrot.slane %v4165, 2
      %v4246 = vrot.slane %v4167, 2
      %v4247 = vsel %vm2458, %v4245, %v4246
      %v4264 = vpack.c.bf16 %v4208, %v4202
      %v4265 = vpack.c.bf16 %v4211, %v4205
      %v4266 = vpack.c.bf16 %v4220, %v4214
      %v4267 = vpack.c.bf16 %v4223, %v4217
      %v4268 = vpack.c.bf16 %v4232, %v4226
      %v4269 = vpack.c.bf16 %v4235, %v4229
      %v4270 = vpack.c.bf16 %v4244, %v4238
      %v4271 = vpack.c.bf16 %v4247, %v4241
      %s4272 = scalar_lea.vmem %s1, 1920
      %v4273 = vld [vmem:[%s4272] sm:$0xf]
      %v4274 = vld [vmem:[%s4272 + $0x4] sm:$0xf]
      %v4275 = vld [vmem:[%s4272 + $0x8] sm:$0xf]
      %v4276 = vld [vmem:[%s4272 + $0xc] sm:$0xf]
      %v4277 = vld [vmem:[%s4272 + $0x10] sm:$0xf]
      %v4278 = vld [vmem:[%s4272 + $0x14] sm:$0xf]
      %v4279 = vld [vmem:[%s4272 + $0x18] sm:$0xf]
      %v4280 = vld [vmem:[%s4272 + $0x1c] sm:$0xf]
      %v4281 = vld [vmem:[%s4272 + $0x20] sm:$0xf]
      %v4282 = vld [vmem:[%s4272 + $0x24] sm:$0xf]
      %v4283 = vld [vmem:[%s4272 + $0x28] sm:$0xf]
      %v4284 = vld [vmem:[%s4272 + $0x2c] sm:$0xf]
      %v4285 = vld [vmem:[%s4272 + $0x30] sm:$0xf]
      %v4286 = vld [vmem:[%s4272 + $0x34] sm:$0xf]
      %v4287 = vld [vmem:[%s4272 + $0x38] sm:$0xf]
      %v4288 = vld [vmem:[%s4272 + $0x3c] sm:$0xf]
      %v4289 = vld [vmem:[%s4272 + $0x40] sm:$0xf]
      %v4290 = vld [vmem:[%s4272 + $0x44] sm:$0xf]
      %v4291 = vld [vmem:[%s4272 + $0x48] sm:$0xf]
      %v4292 = vld [vmem:[%s4272 + $0x4c] sm:$0xf]
      %v4293 = vld [vmem:[%s4272 + $0x50] sm:$0xf]
      %v4294 = vld [vmem:[%s4272 + $0x54] sm:$0xf]
      %v4295 = vld [vmem:[%s4272 + $0x58] sm:$0xf]
      %v4296 = vld [vmem:[%s4272 + $0x5c] sm:$0xf]
      %v4297 = vld [vmem:[%s4272 + $0x60] sm:$0xf]
      %v4298 = vld [vmem:[%s4272 + $0x64] sm:$0xf]
      %v4299 = vld [vmem:[%s4272 + $0x68] sm:$0xf]
      %v4300 = vld [vmem:[%s4272 + $0x6c] sm:$0xf]
      %v4301 = vld [vmem:[%s4272 + $0x70] sm:$0xf]
      %v4302 = vld [vmem:[%s4272 + $0x74] sm:$0xf]
      %v4303 = vld [vmem:[%s4272 + $0x78] sm:$0xf]
      %v4304 = vld [vmem:[%s4272 + $0x7c] sm:$0xf]
      %v4337 = vunpack.c.l.b16 %v4273
      %v4338 = vunpack.c.l.b16 %v4274
      %v4339 = vunpack.c.l.b16 %v4275
      %v4340 = vunpack.c.l.b16 %v4276
      %v4341 = vunpack.c.l.b16 %v4277
      %v4342 = vunpack.c.l.b16 %v4278
      %v4343 = vunpack.c.l.b16 %v4279
      %v4344 = vunpack.c.l.b16 %v4280
      %v4345 = vunpack.c.l.b16 %v4281
      %v4346 = vunpack.c.l.b16 %v4282
      %v4347 = vunpack.c.l.b16 %v4283
      %v4348 = vunpack.c.l.b16 %v4284
      %v4349 = vunpack.c.l.b16 %v4285
      %v4350 = vunpack.c.l.b16 %v4286
      %v4351 = vunpack.c.l.b16 %v4287
      %v4352 = vunpack.c.l.b16 %v4288
      %v4353 = vunpack.c.l.b16 %v4289
      %v4354 = vunpack.c.l.b16 %v4290
      %v4355 = vunpack.c.l.b16 %v4291
      %v4356 = vunpack.c.l.b16 %v4292
      %v4357 = vunpack.c.l.b16 %v4293
      %v4358 = vunpack.c.l.b16 %v4294
      %v4359 = vunpack.c.l.b16 %v4295
      %v4360 = vunpack.c.l.b16 %v4296
      %v4361 = vunpack.c.l.b16 %v4297
      %v4362 = vunpack.c.l.b16 %v4298
      %v4363 = vunpack.c.l.b16 %v4299
      %v4364 = vunpack.c.l.b16 %v4300
      %v4365 = vunpack.c.l.b16 %v4301
      %v4366 = vunpack.c.l.b16 %v4302
      %v4367 = vunpack.c.l.b16 %v4303
      %v4368 = vunpack.c.l.b16 %v4304
      %v4369 = vpack.c.b16 %v4338, %v4337
      %v4370 = vpack.c.b16 %v4340, %v4339
      %v4371 = vpack.c.b16 %v4342, %v4341
      %v4372 = vpack.c.b16 %v4344, %v4343
      %v4373 = vpack.c.b16 %v4346, %v4345
      %v4374 = vpack.c.b16 %v4348, %v4347
      %v4375 = vpack.c.b16 %v4350, %v4349
      %v4376 = vpack.c.b16 %v4352, %v4351
      %v4377 = vpack.c.b16 %v4354, %v4353
      %v4378 = vpack.c.b16 %v4356, %v4355
      %v4379 = vpack.c.b16 %v4358, %v4357
      %v4380 = vpack.c.b16 %v4360, %v4359
      %v4381 = vpack.c.b16 %v4362, %v4361
      %v4382 = vpack.c.b16 %v4364, %v4363
      %v4383 = vpack.c.b16 %v4366, %v4365
      %v4384 = vpack.c.b16 %v4368, %v4367
      %4401 = vmatprep.subr.bf16.mxu0 0
      %4402 = vmatpush1.bf16.msra.mxu0 %v4369
      %4403 = vmatprep.subr.bf16.mxu0 0
      %4404 = vmatpush1.bf16.msra.mxu0 %v4370
      %4405 = vmatprep.subr.bf16.mxu0 0
      %4406 = vmatpush1.bf16.msra.mxu0 %v4371
      %4407 = vmatprep.subr.bf16.mxu0 0
      %4408 = vmatpush1.bf16.msra.mxu0 %v4372
      %4409 = vmatprep.subr.bf16.mxu0 0
      %4410 = vmatpush1.bf16.msra.mxu0 %v4373
      %4411 = vmatprep.subr.bf16.mxu0 0
      %4412 = vmatpush1.bf16.msra.mxu0 %v4374
      %4413 = vmatprep.subr.bf16.mxu0 0
      %4414 = vmatpush1.bf16.msra.mxu0 %v4375
      %4415 = vmatprep.subr.bf16.mxu0 0
      %4416 = vmatpush1.bf16.msra.mxu0 %v4376
      %4417 = vmatprep.subr.bf16.mxu0 0
      %4418 = vmatpush1.bf16.msra.mxu0 %v4377
      %4419 = vmatprep.subr.bf16.mxu0 0
      %4420 = vmatpush1.bf16.msra.mxu0 %v4378
      %4421 = vmatprep.subr.bf16.mxu0 0
      %4422 = vmatpush1.bf16.msra.mxu0 %v4379
      %4423 = vmatprep.subr.bf16.mxu0 0
      %4424 = vmatpush1.bf16.msra.mxu0 %v4380
      %4425 = vmatprep.subr.bf16.mxu0 0
      %4426 = vmatpush1.bf16.msra.mxu0 %v4381
      %4427 = vmatprep.subr.bf16.mxu0 0
      %4428 = vmatpush1.bf16.msra.mxu0 %v4382
      %4429 = vmatprep.subr.bf16.mxu0 0
      %4430 = vmatpush1.bf16.msra.mxu0 %v4383
      %4431 = vmatprep.subr.bf16.mxu0 0
      %4432 = vmatpush1.bf16.msra.mxu0 %v4384
      %4433 = vmatprep.mubr.bf16.mxu0 %v4265
      %4434 = vmatmul.mubr.bf16.gmra.mrb[0].mxu0 %v4264
      %v4435 = vpop.f32.mrb[0].mxu0
      %v4436 = vadd.f32 0.0, %v4435
      %v4437 = vpop.f32.mrb[0].mxu0
      %v4438 = vpop.f32.mrb[0].mxu0
      %v4439 = vadd.f32 0.0, %v4438
      %v4440 = vpop.f32.mrb[0].mxu0
      %4441 = vmatprep.mubr.bf16.mxu0 %v4267
      %4442 = vmatmul.mubr.bf16.gmra.mrb[0].mxu0 %v4266
      %v4443 = vpop.f32.mrb[0].mxu0
      %v4444 = vadd.f32 0.0, %v4443
      %v4445 = vpop.f32.mrb[0].mxu0
      %v4446 = vpop.f32.mrb[0].mxu0
      %v4447 = vadd.f32 0.0, %v4446
      %v4448 = vpop.f32.mrb[0].mxu0
      %4449 = vmatprep.mubr.bf16.mxu0 %v4269
      %4450 = vmatmul.mubr.bf16.gmra.mrb[0].mxu0 %v4268
      %v4451 = vpop.f32.mrb[0].mxu0
      %v4452 = vadd.f32 0.0, %v4451
      %v4453 = vpop.f32.mrb[0].mxu0
      %v4454 = vpop.f32.mrb[0].mxu0
      %v4455 = vadd.f32 0.0, %v4454
      %v4456 = vpop.f32.mrb[0].mxu0
      %4457 = vmatprep.mubr.bf16.mxu0 %v4271
      %4458 = vmatmul.mubr.bf16.gmra.mrb[0].mxu0 %v4270
      %v4459 = vpop.f32.mrb[0].mxu0
      %v4460 = vadd.f32 0.0, %v4459
      %v4461 = vpop.f32.mrb[0].mxu0
      %v4462 = vpop.f32.mrb[0].mxu0
      %v4463 = vadd.f32 0.0, %v4462
      %v4464 = vpop.f32.mrb[0].mxu0
      %4465 = vdwg.mxu0
      %v4466 = vld [vmem:[%s2385] sm:$0xff]
      %v4467 = vld [vmem:[%s2385 + $0x8] sm:$0xff]
      %v4468 = vld [vmem:[%s2385 + $0x10] sm:$0xff]
      %v4469 = vld [vmem:[%s2385 + $0x18] sm:$0xff]
      %v4470 = vld [vmem:[%s2385 + $0x20] sm:$0xff]
      %v4471 = vld [vmem:[%s2385 + $0x28] sm:$0xff]
      %v4472 = vld [vmem:[%s2385 + $0x30] sm:$0xff]
      %v4473 = vld [vmem:[%s2385 + $0x38] sm:$0xff]
      %v4474 = vadd.f32 %v4466, %v4436
      %v4475 = vadd.f32 %v4467, %v4439
      %v4476 = vadd.f32 %v4468, %v4444
      %v4477 = vadd.f32 %v4469, %v4447
      %v4478 = vadd.f32 %v4470, %v4452
      %v4479 = vadd.f32 %v4471, %v4455
      %v4480 = vadd.f32 %v4472, %v4460
      %v4481 = vadd.f32 %v4473, %v4463
      %4482 = vst [vmem:[%s2385] sm:$0xff] %v4474
      %4483 = vst [vmem:[%s2385 + $0x8] sm:$0xff] %v4475
      %4484 = vst [vmem:[%s2385 + $0x10] sm:$0xff] %v4476
      %4485 = vst [vmem:[%s2385 + $0x18] sm:$0xff] %v4477
      %4486 = vst [vmem:[%s2385 + $0x20] sm:$0xff] %v4478
      %4487 = vst [vmem:[%s2385 + $0x28] sm:$0xff] %v4479
      %4488 = vst [vmem:[%s2385 + $0x30] sm:$0xff] %v4480
      %4489 = vst [vmem:[%s2385 + $0x38] sm:$0xff] %v4481
      %v4490 = vld [vmem:[%s2] sm:$0x1]
      %v4491 = vld [vmem:[#allocation2] sm:$0xff]
      %v4492 = vld [vmem:[#allocation2 + $0x8] sm:$0xff]
      %v4493 = vld [vmem:[#allocation2 + $0x10] sm:$0xff]
      %v4494 = vld [vmem:[#allocation2 + $0x18] sm:$0xff]
      %v4495 = vld [vmem:[#allocation2 + $0x20] sm:$0xff]
      %v4496 = vld [vmem:[#allocation2 + $0x28] sm:$0xff]
      %v4497 = vld [vmem:[#allocation2 + $0x30] sm:$0xff]
      %v4498 = vld [vmem:[#allocation2 + $0x38] sm:$0xff]
      %v4500 = vlaneseq
      %v4501 = vshrl.u32 %v4500, 7
      %v4502 = vsub.s32 0, %v4501
      %v4503 = vrot.slane %v4490, %v4502
      %v4505 = vadd.f32 %v4491, %v4503
      %v4506 = vadd.f32 %v4492, %v4503
      %v4507 = vadd.f32 %v4493, %v4503
      %v4508 = vadd.f32 %v4494, %v4503
      %v4509 = vadd.f32 %v4495, %v4503
      %v4510 = vadd.f32 %v4496, %v4503
      %v4511 = vadd.f32 %v4497, %v4503
      %v4512 = vadd.f32 %v4498, %v4503
      %v4513 = vmul.f32 %v4505, 0.5
      %v4514 = vmul.f32 %v4506, 0.5
      %v4515 = vmul.f32 %v4507, 0.5
      %v4516 = vmul.f32 %v4508, 0.5
      %v4517 = vmul.f32 %v4509, 0.5
      %v4518 = vmul.f32 %v4510, 0.5
      %v4519 = vmul.f32 %v4511, 0.5
      %v4520 = vmul.f32 %v4512, 0.5
      %v4521 = vmul.f32 %v4505, 0.70710677
      %v4522 = vmul.f32 %v4506, 0.70710677
      %v4523 = vmul.f32 %v4507, 0.70710677
      %v4524 = vmul.f32 %v4508, 0.70710677
      %v4525 = vmul.f32 %v4509, 0.70710677
      %v4526 = vmul.f32 %v4510, 0.70710677
      %v4527 = vmul.f32 %v4511, 0.70710677
      %v4528 = vmul.f32 %v4512, 0.70710677
      %vm4529 = vcmp.ge.f32.partialorder %v4521, 0.0
      %vm4530 = vcmp.ge.f32.partialorder %v4522, 0.0
      %vm4531 = vcmp.ge.f32.partialorder %v4523, 0.0
      %vm4532 = vcmp.ge.f32.partialorder %v4524, 0.0
      %vm4533 = vcmp.ge.f32.partialorder %v4525, 0.0
      %vm4534 = vcmp.ge.f32.partialorder %v4526, 0.0
      %vm4535 = vcmp.ge.f32.partialorder %v4527, 0.0
      %vm4536 = vcmp.ge.f32.partialorder %v4528, 0.0
      %v4537 = vsel %vm4529, 1.0, -1.0
      %v4538 = vsel %vm4530, 1.0, -1.0
      %v4539 = vsel %vm4531, 1.0, -1.0
      %v4540 = vsel %vm4532, 1.0, -1.0
      %v4541 = vsel %vm4533, 1.0, -1.0
      %v4542 = vsel %vm4534, 1.0, -1.0
      %v4543 = vsel %vm4535, 1.0, -1.0
      %v4544 = vsel %vm4536, 1.0, -1.0
      %v4545 = vand.u32 2147483647, %v4521
      %v4546 = vand.u32 2147483647, %v4522
      %v4547 = vand.u32 2147483647, %v4523
      %v4548 = vand.u32 2147483647, %v4524
      %v4549 = vand.u32 2147483647, %v4525
      %v4550 = vand.u32 2147483647, %v4526
      %v4551 = vand.u32 2147483647, %v4527
      %v4552 = vand.u32 2147483647, %v4528
      %v4553 = vmul.f32 %v4545, 0.3275911
      %v4554 = vmul.f32 %v4546, 0.3275911
      %v4555 = vmul.f32 %v4547, 0.3275911
      %v4556 = vmul.f32 %v4548, 0.3275911
      %v4557 = vmul.f32 %v4549, 0.3275911
      %v4558 = vmul.f32 %v4550, 0.3275911
      %v4559 = vmul.f32 %v4551, 0.3275911
      %v4560 = vmul.f32 %v4552, 0.3275911
      %v4561 = vadd.f32 %v4553, 1.0
      %v4562 = vadd.f32 %v4554, 1.0
      %v4563 = vadd.f32 %v4555, 1.0
      %v4564 = vadd.f32 %v4556, 1.0
      %v4565 = vadd.f32 %v4557, 1.0
      %v4566 = vadd.f32 %v4558, 1.0
      %v4567 = vadd.f32 %v4559, 1.0
      %v4568 = vadd.f32 %v4560, 1.0
      %v4569 = vrcp.pop %v4561
      %v4570 = vrcp.pop %v4562
      %v4571 = vrcp.pop %v4563
      %v4572 = vrcp.pop %v4564
      %v4573 = vrcp.pop %v4565
      %v4574 = vrcp.pop %v4566
      %v4575 = vrcp.pop %v4567
      %v4576 = vrcp.pop %v4568
      %v4577 = vmul.f32 %v4569, 1.0614054
      %v4578 = vmul.f32 %v4570, 1.0614054
      %v4579 = vmul.f32 %v4571, 1.0614054
      %v4580 = vmul.f32 %v4572, 1.0614054
      %v4581 = vmul.f32 %v4573, 1.0614054
      %v4582 = vmul.f32 %v4574, 1.0614054
      %v4583 = vmul.f32 %v4575, 1.0614054
      %v4584 = vmul.f32 %v4576, 1.0614054
      %v4585 = vadd.f32 %v4577, -1.4531521
      %v4586 = vadd.f32 %v4578, -1.4531521
      %v4587 = vadd.f32 %v4579, -1.4531521
      %v4588 = vadd.f32 %v4580, -1.4531521
      %v4589 = vadd.f32 %v4581, -1.4531521
      %v4590 = vadd.f32 %v4582, -1.4531521
      %v4591 = vadd.f32 %v4583, -1.4531521
      %v4592 = vadd.f32 %v4584, -1.4531521
      %v4593 = vmul.f32 %v4585, %v4569
      %v4594 = vmul.f32 %v4586, %v4570
      %v4595 = vmul.f32 %v4587, %v4571
      %v4596 = vmul.f32 %v4588, %v4572
      %v4597 = vmul.f32 %v4589, %v4573
      %v4598 = vmul.f32 %v4590, %v4574
      %v4599 = vmul.f32 %v4591, %v4575
      %v4600 = vmul.f32 %v4592, %v4576
      %v4601 = vadd.f32 %v4593, 1.4214138
      %v4602 = vadd.f32 %v4594, 1.4214138
      %v4603 = vadd.f32 %v4595, 1.4214138
      %v4604 = vadd.f32 %v4596, 1.4214138
      %v4605 = vadd.f32 %v4597, 1.4214138
      %v4606 = vadd.f32 %v4598, 1.4214138
      %v4607 = vadd.f32 %v4599, 1.4214138
      %v4608 = vadd.f32 %v4600, 1.4214138
      %v4609 = vmul.f32 %v4601, %v4569
      %v4610 = vmul.f32 %v4602, %v4570
      %v4611 = vmul.f32 %v4603, %v4571
      %v4612 = vmul.f32 %v4604, %v4572
      %v4613 = vmul.f32 %v4605, %v4573
      %v4614 = vmul.f32 %v4606, %v4574
      %v4615 = vmul.f32 %v4607, %v4575
      %v4616 = vmul.f32 %v4608, %v4576
      %v4617 = vadd.f32 %v4609, -0.28449672
      %v4618 = vadd.f32 %v4610, -0.28449672
      %v4619 = vadd.f32 %v4611, -0.28449672
      %v4620 = vadd.f32 %v4612, -0.28449672
      %v4621 = vadd.f32 %v4613, -0.28449672
      %v4622 = vadd.f32 %v4614, -0.28449672
      %v4623 = vadd.f32 %v4615, -0.28449672
      %v4624 = vadd.f32 %v4616, -0.28449672
      %v4625 = vmul.f32 %v4617, %v4569
      %v4626 = vmul.f32 %v4618, %v4570
      %v4627 = vmul.f32 %v4619, %v4571
      %v4628 = vmul.f32 %v4620, %v4572
      %v4629 = vmul.f32 %v4621, %v4573
      %v4630 = vmul.f32 %v4622, %v4574
      %v4631 = vmul.f32 %v4623, %v4575
      %v4632 = vmul.f32 %v4624, %v4576
      %v4633 = vadd.f32 %v4625, 0.2548296
      %v4634 = vadd.f32 %v4626, 0.2548296
      %v4635 = vadd.f32 %v4627, 0.2548296
      %v4636 = vadd.f32 %v4628, 0.2548296
      %v4637 = vadd.f32 %v4629, 0.2548296
      %v4638 = vadd.f32 %v4630, 0.2548296
      %v4639 = vadd.f32 %v4631, 0.2548296
      %v4640 = vadd.f32 %v4632, 0.2548296
      %v4641 = vmul.f32 %v4633, %v4569
      %v4642 = vmul.f32 %v4634, %v4570
      %v4643 = vmul.f32 %v4635, %v4571
      %v4644 = vmul.f32 %v4636, %v4572
      %v4645 = vmul.f32 %v4637, %v4573
      %v4646 = vmul.f32 %v4638, %v4574
      %v4647 = vmul.f32 %v4639, %v4575
      %v4648 = vmul.f32 %v4640, %v4576
      %v4649 = vsub.f32 0.0, %v4545
      %v4650 = vsub.f32 0.0, %v4546
      %v4651 = vsub.f32 0.0, %v4547
      %v4652 = vsub.f32 0.0, %v4548
      %v4653 = vsub.f32 0.0, %v4549
      %v4654 = vsub.f32 0.0, %v4550
      %v4655 = vsub.f32 0.0, %v4551
      %v4656 = vsub.f32 0.0, %v4552
      %v4657 = vmul.f32 %v4649, %v4545
      %v4658 = vmul.f32 %v4650, %v4546
      %v4659 = vmul.f32 %v4651, %v4547
      %v4660 = vmul.f32 %v4652, %v4548
      %v4661 = vmul.f32 %v4653, %v4549
      %v4662 = vmul.f32 %v4654, %v4550
      %v4663 = vmul.f32 %v4655, %v4551
      %v4664 = vmul.f32 %v4656, %v4552
      %v4665 = vmul.f32 %v4657, 1.442695
      %v4666 = vpow.pop %v4665
      %v4667 = vmul.f32 %v4658, 1.442695
      %v4668 = vpow.pop %v4667
      %v4669 = vmul.f32 %v4659, 1.442695
      %v4670 = vpow.pop %v4669
      %v4671 = vmul.f32 %v4660, 1.442695
      %v4672 = vpow.pop %v4671
      %v4673 = vmul.f32 %v4661, 1.442695
      %v4674 = vpow.pop %v4673
      %v4675 = vmul.f32 %v4662, 1.442695
      %v4676 = vpow.pop %v4675
      %v4677 = vmul.f32 %v4663, 1.442695
      %v4678 = vpow.pop %v4677
      %v4679 = vmul.f32 %v4664, 1.442695
      %v4680 = vpow.pop %v4679
      %v4681 = vmul.f32 %v4641, %v4666
      %v4682 = vmul.f32 %v4642, %v4668
      %v4683 = vmul.f32 %v4643, %v4670
      %v4684 = vmul.f32 %v4644, %v4672
      %v4685 = vmul.f32 %v4645, %v4674
      %v4686 = vmul.f32 %v4646, %v4676
      %v4687 = vmul.f32 %v4647, %v4678
      %v4688 = vmul.f32 %v4648, %v4680
      %v4689 = vsub.f32 1.0, %v4681
      %v4690 = vsub.f32 1.0, %v4682
      %v4691 = vsub.f32 1.0, %v4683
      %v4692 = vsub.f32 1.0, %v4684
      %v4693 = vsub.f32 1.0, %v4685
      %v4694 = vsub.f32 1.0, %v4686
      %v4695 = vsub.f32 1.0, %v4687
      %v4696 = vsub.f32 1.0, %v4688
      %v4697 = vmul.f32 %v4537, %v4689
      %v4698 = vmul.f32 %v4538, %v4690
      %v4699 = vmul.f32 %v4539, %v4691
      %v4700 = vmul.f32 %v4540, %v4692
      %v4701 = vmul.f32 %v4541, %v4693
      %v4702 = vmul.f32 %v4542, %v4694
      %v4703 = vmul.f32 %v4543, %v4695
      %v4704 = vmul.f32 %v4544, %v4696
      %v4705 = vadd.f32 %v4697, 1.0
      %v4706 = vadd.f32 %v4698, 1.0
      %v4707 = vadd.f32 %v4699, 1.0
      %v4708 = vadd.f32 %v4700, 1.0
      %v4709 = vadd.f32 %v4701, 1.0
      %v4710 = vadd.f32 %v4702, 1.0
      %v4711 = vadd.f32 %v4703, 1.0
      %v4712 = vadd.f32 %v4704, 1.0
      %v4713 = vmul.f32 %v4513, %v4705
      %v4714 = vmul.f32 %v4514, %v4706
      %v4715 = vmul.f32 %v4515, %v4707
      %v4716 = vmul.f32 %v4516, %v4708
      %v4717 = vmul.f32 %v4517, %v4709
      %v4718 = vmul.f32 %v4518, %v4710
      %v4719 = vmul.f32 %v4519, %v4711
      %v4720 = vmul.f32 %v4520, %v4712
      %4721 = vst [vmem:[%s170] sm:$0xff] %v4713
      %4722 = vst [vmem:[%s170 + $0x8] sm:$0xff] %v4714
      %4723 = vst [vmem:[%s170 + $0x10] sm:$0xff] %v4715
      %4724 = vst [vmem:[%s170 + $0x18] sm:$0xff] %v4716
      %4725 = vst [vmem:[%s170 + $0x20] sm:$0xff] %v4717
      %4726 = vst [vmem:[%s170 + $0x28] sm:$0xff] %v4718
      %4727 = vst [vmem:[%s170 + $0x30] sm:$0xff] %v4719
      %4728 = vst [vmem:[%s170 + $0x38] sm:$0xff] %v4720
      %v4729 = vld [vmem:[%s946] sm:$0xff]
      %v4730 = vld [vmem:[%s946 + $0x8] sm:$0xff]
      %v4731 = vld [vmem:[%s946 + $0x10] sm:$0xff]
      %v4732 = vld [vmem:[%s946 + $0x18] sm:$0xff]
      %v4733 = vld [vmem:[%s946 + $0x20] sm:$0xff]
      %v4734 = vld [vmem:[%s946 + $0x28] sm:$0xff]
      %v4735 = vld [vmem:[%s946 + $0x30] sm:$0xff]
      %v4736 = vld [vmem:[%s946 + $0x38] sm:$0xff]
      %v4737 = vadd.f32 %v4729, %v4503
      %v4738 = vadd.f32 %v4730, %v4503
      %v4739 = vadd.f32 %v4731, %v4503
      %v4740 = vadd.f32 %v4732, %v4503
      %v4741 = vadd.f32 %v4733, %v4503
      %v4742 = vadd.f32 %v4734, %v4503
      %v4743 = vadd.f32 %v4735, %v4503
      %v4744 = vadd.f32 %v4736, %v4503
      %v4745 = vmul.f32 %v4737, 0.5
      %v4746 = vmul.f32 %v4738, 0.5
      %v4747 = vmul.f32 %v4739, 0.5
      %v4748 = vmul.f32 %v4740, 0.5
      %v4749 = vmul.f32 %v4741, 0.5
      %v4750 = vmul.f32 %v4742, 0.5
      %v4751 = vmul.f32 %v4743, 0.5
      %v4752 = vmul.f32 %v4744, 0.5
      %v4753 = vmul.f32 %v4737, 0.70710677
      %v4754 = vmul.f32 %v4738, 0.70710677
      %v4755 = vmul.f32 %v4739, 0.70710677
      %v4756 = vmul.f32 %v4740, 0.70710677
      %v4757 = vmul.f32 %v4741, 0.70710677
      %v4758 = vmul.f32 %v4742, 0.70710677
      %v4759 = vmul.f32 %v4743, 0.70710677
      %v4760 = vmul.f32 %v4744, 0.70710677
      %vm4761 = vcmp.ge.f32.partialorder %v4753, 0.0
      %vm4762 = vcmp.ge.f32.partialorder %v4754, 0.0
      %vm4763 = vcmp.ge.f32.partialorder %v4755, 0.0
      %vm4764 = vcmp.ge.f32.partialorder %v4756, 0.0
      %vm4765 = vcmp.ge.f32.partialorder %v4757, 0.0
      %vm4766 = vcmp.ge.f32.partialorder %v4758, 0.0
      %vm4767 = vcmp.ge.f32.partialorder %v4759, 0.0
      %vm4768 = vcmp.ge.f32.partialorder %v4760, 0.0
      %v4769 = vsel %vm4761, 1.0, -1.0
      %v4770 = vsel %vm4762, 1.0, -1.0
      %v4771 = vsel %vm4763, 1.0, -1.0
      %v4772 = vsel %vm4764, 1.0, -1.0
      %v4773 = vsel %vm4765, 1.0, -1.0
      %v4774 = vsel %vm4766, 1.0, -1.0
      %v4775 = vsel %vm4767, 1.0, -1.0
      %v4776 = vsel %vm4768, 1.0, -1.0
      %v4777 = vand.u32 2147483647, %v4753
      %v4778 = vand.u32 2147483647, %v4754
      %v4779 = vand.u32 2147483647, %v4755
      %v4780 = vand.u32 2147483647, %v4756
      %v4781 = vand.u32 2147483647, %v4757
      %v4782 = vand.u32 2147483647, %v4758
      %v4783 = vand.u32 2147483647, %v4759
      %v4784 = vand.u32 2147483647, %v4760
      %v4785 = vmul.f32 %v4777, 0.3275911
      %v4786 = vmul.f32 %v4778, 0.3275911
      %v4787 = vmul.f32 %v4779, 0.3275911
      %v4788 = vmul.f32 %v4780, 0.3275911
      %v4789 = vmul.f32 %v4781, 0.3275911
      %v4790 = vmul.f32 %v4782, 0.3275911
      %v4791 = vmul.f32 %v4783, 0.3275911
      %v4792 = vmul.f32 %v4784, 0.3275911
      %v4793 = vadd.f32 %v4785, 1.0
      %v4794 = vadd.f32 %v4786, 1.0
      %v4795 = vadd.f32 %v4787, 1.0
      %v4796 = vadd.f32 %v4788, 1.0
      %v4797 = vadd.f32 %v4789, 1.0
      %v4798 = vadd.f32 %v4790, 1.0
      %v4799 = vadd.f32 %v4791, 1.0
      %v4800 = vadd.f32 %v4792, 1.0
      %v4801 = vrcp.pop %v4793
      %v4802 = vrcp.pop %v4794
      %v4803 = vrcp.pop %v4795
      %v4804 = vrcp.pop %v4796
      %v4805 = vrcp.pop %v4797
      %v4806 = vrcp.pop %v4798
      %v4807 = vrcp.pop %v4799
      %v4808 = vrcp.pop %v4800
      %v4809 = vmul.f32 %v4801, 1.0614054
      %v4810 = vmul.f32 %v4802, 1.0614054
      %v4811 = vmul.f32 %v4803, 1.0614054
      %v4812 = vmul.f32 %v4804, 1.0614054
      %v4813 = vmul.f32 %v4805, 1.0614054
      %v4814 = vmul.f32 %v4806, 1.0614054
      %v4815 = vmul.f32 %v4807, 1.0614054
      %v4816 = vmul.f32 %v4808, 1.0614054
      %v4817 = vadd.f32 %v4809, -1.4531521
      %v4818 = vadd.f32 %v4810, -1.4531521
      %v4819 = vadd.f32 %v4811, -1.4531521
      %v4820 = vadd.f32 %v4812, -1.4531521
      %v4821 = vadd.f32 %v4813, -1.4531521
      %v4822 = vadd.f32 %v4814, -1.4531521
      %v4823 = vadd.f32 %v4815, -1.4531521
      %v4824 = vadd.f32 %v4816, -1.4531521
      %v4825 = vmul.f32 %v4817, %v4801
      %v4826 = vmul.f32 %v4818, %v4802
      %v4827 = vmul.f32 %v4819, %v4803
      %v4828 = vmul.f32 %v4820, %v4804
      %v4829 = vmul.f32 %v4821, %v4805
      %v4830 = vmul.f32 %v4822, %v4806
      %v4831 = vmul.f32 %v4823, %v4807
      %v4832 = vmul.f32 %v4824, %v4808
      %v4833 = vadd.f32 %v4825, 1.4214138
      %v4834 = vadd.f32 %v4826, 1.4214138
      %v4835 = vadd.f32 %v4827, 1.4214138
      %v4836 = vadd.f32 %v4828, 1.4214138
      %v4837 = vadd.f32 %v4829, 1.4214138
      %v4838 = vadd.f32 %v4830, 1.4214138
      %v4839 = vadd.f32 %v4831, 1.4214138
      %v4840 = vadd.f32 %v4832, 1.4214138
      %v4841 = vmul.f32 %v4833, %v4801
      %v4842 = vmul.f32 %v4834, %v4802
      %v4843 = vmul.f32 %v4835, %v4803
      %v4844 = vmul.f32 %v4836, %v4804
      %v4845 = vmul.f32 %v4837, %v4805
      %v4846 = vmul.f32 %v4838, %v4806
      %v4847 = vmul.f32 %v4839, %v4807
      %v4848 = vmul.f32 %v4840, %v4808
      %v4849 = vadd.f32 %v4841, -0.28449672
      %v4850 = vadd.f32 %v4842, -0.28449672
      %v4851 = vadd.f32 %v4843, -0.28449672
      %v4852 = vadd.f32 %v4844, -0.28449672
      %v4853 = vadd.f32 %v4845, -0.28449672
      %v4854 = vadd.f32 %v4846, -0.28449672
      %v4855 = vadd.f32 %v4847, -0.28449672
      %v4856 = vadd.f32 %v4848, -0.28449672
      %v4857 = vmul.f32 %v4849, %v4801
      %v4858 = vmul.f32 %v4850, %v4802
      %v4859 = vmul.f32 %v4851, %v4803
      %v4860 = vmul.f32 %v4852, %v4804
      %v4861 = vmul.f32 %v4853, %v4805
      %v4862 = vmul.f32 %v4854, %v4806
      %v4863 = vmul.f32 %v4855, %v4807
      %v4864 = vmul.f32 %v4856, %v4808
      %v4865 = vadd.f32 %v4857, 0.2548296
      %v4866 = vadd.f32 %v4858, 0.2548296
      %v4867 = vadd.f32 %v4859, 0.2548296
      %v4868 = vadd.f32 %v4860, 0.2548296
      %v4869 = vadd.f32 %v4861, 0.2548296
      %v4870 = vadd.f32 %v4862, 0.2548296
      %v4871 = vadd.f32 %v4863, 0.2548296
      %v4872 = vadd.f32 %v4864, 0.2548296
      %v4873 = vmul.f32 %v4865, %v4801
      %v4874 = vmul.f32 %v4866, %v4802
      %v4875 = vmul.f32 %v4867, %v4803
      %v4876 = vmul.f32 %v4868, %v4804
      %v4877 = vmul.f32 %v4869, %v4805
      %v4878 = vmul.f32 %v4870, %v4806
      %v4879 = vmul.f32 %v4871, %v4807
      %v4880 = vmul.f32 %v4872, %v4808
      %v4881 = vsub.f32 0.0, %v4777
      %v4882 = vsub.f32 0.0, %v4778
      %v4883 = vsub.f32 0.0, %v4779
      %v4884 = vsub.f32 0.0, %v4780
      %v4885 = vsub.f32 0.0, %v4781
      %v4886 = vsub.f32 0.0, %v4782
      %v4887 = vsub.f32 0.0, %v4783
      %v4888 = vsub.f32 0.0, %v4784
      %v4889 = vmul.f32 %v4881, %v4777
      %v4890 = vmul.f32 %v4882, %v4778
      %v4891 = vmul.f32 %v4883, %v4779
      %v4892 = vmul.f32 %v4884, %v4780
      %v4893 = vmul.f32 %v4885, %v4781
      %v4894 = vmul.f32 %v4886, %v4782
      %v4895 = vmul.f32 %v4887, %v4783
      %v4896 = vmul.f32 %v4888, %v4784
      %v4897 = vmul.f32 %v4889, 1.442695
      %v4898 = vpow.pop %v4897
      %v4899 = vmul.f32 %v4890, 1.442695
      %v4900 = vpow.pop %v4899
      %v4901 = vmul.f32 %v4891, 1.442695
      %v4902 = vpow.pop %v4901
      %v4903 = vmul.f32 %v4892, 1.442695
      %v4904 = vpow.pop %v4903
      %v4905 = vmul.f32 %v4893, 1.442695
      %v4906 = vpow.pop %v4905
      %v4907 = vmul.f32 %v4894, 1.442695
      %v4908 = vpow.pop %v4907
      %v4909 = vmul.f32 %v4895, 1.442695
      %v4910 = vpow.pop %v4909
      %v4911 = vmul.f32 %v4896, 1.442695
      %v4912 = vpow.pop %v4911
      %v4913 = vmul.f32 %v4873, %v4898
      %v4914 = vmul.f32 %v4874, %v4900
      %v4915 = vmul.f32 %v4875, %v4902
      %v4916 = vmul.f32 %v4876, %v4904
      %v4917 = vmul.f32 %v4877, %v4906
      %v4918 = vmul.f32 %v4878, %v4908
      %v4919 = vmul.f32 %v4879, %v4910
      %v4920 = vmul.f32 %v4880, %v4912
      %v4921 = vsub.f32 1.0, %v4913
      %v4922 = vsub.f32 1.0, %v4914
      %v4923 = vsub.f32 1.0, %v4915
      %v4924 = vsub.f32 1.0, %v4916
      %v4925 = vsub.f32 1.0, %v4917
      %v4926 = vsub.f32 1.0, %v4918
      %v4927 = vsub.f32 1.0, %v4919
      %v4928 = vsub.f32 1.0, %v4920
      %v4929 = vmul.f32 %v4769, %v4921
      %v4930 = vmul.f32 %v4770, %v4922
      %v4931 = vmul.f32 %v4771, %v4923
      %v4932 = vmul.f32 %v4772, %v4924
      %v4933 = vmul.f32 %v4773, %v4925
      %v4934 = vmul.f32 %v4774, %v4926
      %v4935 = vmul.f32 %v4775, %v4927
      %v4936 = vmul.f32 %v4776, %v4928
      %v4937 = vadd.f32 %v4929, 1.0
      %v4938 = vadd.f32 %v4930, 1.0
      %v4939 = vadd.f32 %v4931, 1.0
      %v4940 = vadd.f32 %v4932, 1.0
      %v4941 = vadd.f32 %v4933, 1.0
      %v4942 = vadd.f32 %v4934, 1.0
      %v4943 = vadd.f32 %v4935, 1.0
      %v4944 = vadd.f32 %v4936, 1.0
      %v4945 = vmul.f32 %v4745, %v4937
      %v4946 = vmul.f32 %v4746, %v4938
      %v4947 = vmul.f32 %v4747, %v4939
      %v4948 = vmul.f32 %v4748, %v4940
      %v4949 = vmul.f32 %v4749, %v4941
      %v4950 = vmul.f32 %v4750, %v4942
      %v4951 = vmul.f32 %v4751, %v4943
      %v4952 = vmul.f32 %v4752, %v4944
      %s4953 = scalar_lea.vmem %s170, 64
      %4954 = vst [vmem:[%s4953] sm:$0xff] %v4945
      %4955 = vst [vmem:[%s4953 + $0x8] sm:$0xff] %v4946
      %4956 = vst [vmem:[%s4953 + $0x10] sm:$0xff] %v4947
      %4957 = vst [vmem:[%s4953 + $0x18] sm:$0xff] %v4948
      %4958 = vst [vmem:[%s4953 + $0x20] sm:$0xff] %v4949
      %4959 = vst [vmem:[%s4953 + $0x28] sm:$0xff] %v4950
      %4960 = vst [vmem:[%s4953 + $0x30] sm:$0xff] %v4951
      %4961 = vst [vmem:[%s4953 + $0x38] sm:$0xff] %v4952
      %v4962 = vld [vmem:[%s1392] sm:$0xff]
      %v4963 = vld [vmem:[%s1392 + $0x8] sm:$0xff]
      %v4964 = vld [vmem:[%s1392 + $0x10] sm:$0xff]
      %v4965 = vld [vmem:[%s1392 + $0x18] sm:$0xff]
      %v4966 = vld [vmem:[%s1392 + $0x20] sm:$0xff]
      %v4967 = vld [vmem:[%s1392 + $0x28] sm:$0xff]
      %v4968 = vld [vmem:[%s1392 + $0x30] sm:$0xff]
      %v4969 = vld [vmem:[%s1392 + $0x38] sm:$0xff]
      %v4970 = vadd.f32 %v4962, %v4503
      %v4971 = vadd.f32 %v4963, %v4503
      %v4972 = vadd.f32 %v4964, %v4503
      %v4973 = vadd.f32 %v4965, %v4503
      %v4974 = vadd.f32 %v4966, %v4503
      %v4975 = vadd.f32 %v4967, %v4503
      %v4976 = vadd.f32 %v4968, %v4503
      %v4977 = vadd.f32 %v4969, %v4503
      %v4978 = vmul.f32 %v4970, 0.5
      %v4979 = vmul.f32 %v4971, 0.5
      %v4980 = vmul.f32 %v4972, 0.5
      %v4981 = vmul.f32 %v4973, 0.5
      %v4982 = vmul.f32 %v4974, 0.5
      %v4983 = vmul.f32 %v4975, 0.5
      %v4984 = vmul.f32 %v4976, 0.5
      %v4985 = vmul.f32 %v4977, 0.5
      %v4986 = vmul.f32 %v4970, 0.70710677
      %v4987 = vmul.f32 %v4971, 0.70710677
      %v4988 = vmul.f32 %v4972, 0.70710677
      %v4989 = vmul.f32 %v4973, 0.70710677
      %v4990 = vmul.f32 %v4974, 0.70710677
      %v4991 = vmul.f32 %v4975, 0.70710677
      %v4992 = vmul.f32 %v4976, 0.70710677
      %v4993 = vmul.f32 %v4977, 0.70710677
      %vm4994 = vcmp.ge.f32.partialorder %v4986, 0.0
      %vm4995 = vcmp.ge.f32.partialorder %v4987, 0.0
      %vm4996 = vcmp.ge.f32.partialorder %v4988, 0.0
      %vm4997 = vcmp.ge.f32.partialorder %v4989, 0.0
      %vm4998 = vcmp.ge.f32.partialorder %v4990, 0.0
      %vm4999 = vcmp.ge.f32.partialorder %v4991, 0.0
      %vm5000 = vcmp.ge.f32.partialorder %v4992, 0.0
      %vm5001 = vcmp.ge.f32.partialorder %v4993, 0.0
      %v5002 = vsel %vm4994, 1.0, -1.0
      %v5003 = vsel %vm4995, 1.0, -1.0
      %v5004 = vsel %vm4996, 1.0, -1.0
      %v5005 = vsel %vm4997, 1.0, -1.0
      %v5006 = vsel %vm4998, 1.0, -1.0
      %v5007 = vsel %vm4999, 1.0, -1.0
      %v5008 = vsel %vm5000, 1.0, -1.0
      %v5009 = vsel %vm5001, 1.0, -1.0
      %v5010 = vand.u32 2147483647, %v4986
      %v5011 = vand.u32 2147483647, %v4987
      %v5012 = vand.u32 2147483647, %v4988
      %v5013 = vand.u32 2147483647, %v4989
      %v5014 = vand.u32 2147483647, %v4990
      %v5015 = vand.u32 2147483647, %v4991
      %v5016 = vand.u32 2147483647, %v4992
      %v5017 = vand.u32 2147483647, %v4993
      %v5018 = vmul.f32 %v5010, 0.3275911
      %v5019 = vmul.f32 %v5011, 0.3275911
      %v5020 = vmul.f32 %v5012, 0.3275911
      %v5021 = vmul.f32 %v5013, 0.3275911
      %v5022 = vmul.f32 %v5014, 0.3275911
      %v5023 = vmul.f32 %v5015, 0.3275911
      %v5024 = vmul.f32 %v5016, 0.3275911
      %v5025 = vmul.f32 %v5017, 0.3275911
      %v5026 = vadd.f32 %v5018, 1.0
      %v5027 = vadd.f32 %v5019, 1.0
      %v5028 = vadd.f32 %v5020, 1.0
      %v5029 = vadd.f32 %v5021, 1.0
      %v5030 = vadd.f32 %v5022, 1.0
      %v5031 = vadd.f32 %v5023, 1.0
      %v5032 = vadd.f32 %v5024, 1.0
      %v5033 = vadd.f32 %v5025, 1.0
      %v5034 = vrcp.pop %v5026
      %v5035 = vrcp.pop %v5027
      %v5036 = vrcp.pop %v5028
      %v5037 = vrcp.pop %v5029
      %v5038 = vrcp.pop %v5030
      %v5039 = vrcp.pop %v5031
      %v5040 = vrcp.pop %v5032
      %v5041 = vrcp.pop %v5033
      %v5042 = vmul.f32 %v5034, 1.0614054
      %v5043 = vmul.f32 %v5035, 1.0614054
      %v5044 = vmul.f32 %v5036, 1.0614054
      %v5045 = vmul.f32 %v5037, 1.0614054
      %v5046 = vmul.f32 %v5038, 1.0614054
      %v5047 = vmul.f32 %v5039, 1.0614054
      %v5048 = vmul.f32 %v5040, 1.0614054
      %v5049 = vmul.f32 %v5041, 1.0614054
      %v5050 = vadd.f32 %v5042, -1.4531521
      %v5051 = vadd.f32 %v5043, -1.4531521
      %v5052 = vadd.f32 %v5044, -1.4531521
      %v5053 = vadd.f32 %v5045, -1.4531521
      %v5054 = vadd.f32 %v5046, -1.4531521
      %v5055 = vadd.f32 %v5047, -1.4531521
      %v5056 = vadd.f32 %v5048, -1.4531521
      %v5057 = vadd.f32 %v5049, -1.4531521
      %v5058 = vmul.f32 %v5050, %v5034
      %v5059 = vmul.f32 %v5051, %v5035
      %v5060 = vmul.f32 %v5052, %v5036
      %v5061 = vmul.f32 %v5053, %v5037
      %v5062 = vmul.f32 %v5054, %v5038
      %v5063 = vmul.f32 %v5055, %v5039
      %v5064 = vmul.f32 %v5056, %v5040
      %v5065 = vmul.f32 %v5057, %v5041
      %v5066 = vadd.f32 %v5058, 1.4214138
      %v5067 = vadd.f32 %v5059, 1.4214138
      %v5068 = vadd.f32 %v5060, 1.4214138
      %v5069 = vadd.f32 %v5061, 1.4214138
      %v5070 = vadd.f32 %v5062, 1.4214138
      %v5071 = vadd.f32 %v5063, 1.4214138
      %v5072 = vadd.f32 %v5064, 1.4214138
      %v5073 = vadd.f32 %v5065, 1.4214138
      %v5074 = vmul.f32 %v5066, %v5034
      %v5075 = vmul.f32 %v5067, %v5035
      %v5076 = vmul.f32 %v5068, %v5036
      %v5077 = vmul.f32 %v5069, %v5037
      %v5078 = vmul.f32 %v5070, %v5038
      %v5079 = vmul.f32 %v5071, %v5039
      %v5080 = vmul.f32 %v5072, %v5040
      %v5081 = vmul.f32 %v5073, %v5041
      %v5082 = vadd.f32 %v5074, -0.28449672
      %v5083 = vadd.f32 %v5075, -0.28449672
      %v5084 = vadd.f32 %v5076, -0.28449672
      %v5085 = vadd.f32 %v5077, -0.28449672
      %v5086 = vadd.f32 %v5078, -0.28449672
      %v5087 = vadd.f32 %v5079, -0.28449672
      %v5088 = vadd.f32 %v5080, -0.28449672
      %v5089 = vadd.f32 %v5081, -0.28449672
      %v5090 = vmul.f32 %v5082, %v5034
      %v5091 = vmul.f32 %v5083, %v5035
      %v5092 = vmul.f32 %v5084, %v5036
      %v5093 = vmul.f32 %v5085, %v5037
      %v5094 = vmul.f32 %v5086, %v5038
      %v5095 = vmul.f32 %v5087, %v5039
      %v5096 = vmul.f32 %v5088, %v5040
      %v5097 = vmul.f32 %v5089, %v5041
      %v5098 = vadd.f32 %v5090, 0.2548296
      %v5099 = vadd.f32 %v5091, 0.2548296
      %v5100 = vadd.f32 %v5092, 0.2548296
      %v5101 = vadd.f32 %v5093, 0.2548296
      %v5102 = vadd.f32 %v5094, 0.2548296
      %v5103 = vadd.f32 %v5095, 0.2548296
      %v5104 = vadd.f32 %v5096, 0.2548296
      %v5105 = vadd.f32 %v5097, 0.2548296
      %v5106 = vmul.f32 %v5098, %v5034
      %v5107 = vmul.f32 %v5099, %v5035
      %v5108 = vmul.f32 %v5100, %v5036
      %v5109 = vmul.f32 %v5101, %v5037
      %v5110 = vmul.f32 %v5102, %v5038
      %v5111 = vmul.f32 %v5103, %v5039
      %v5112 = vmul.f32 %v5104, %v5040
      %v5113 = vmul.f32 %v5105, %v5041
      %v5114 = vsub.f32 0.0, %v5010
      %v5115 = vsub.f32 0.0, %v5011
      %v5116 = vsub.f32 0.0, %v5012
      %v5117 = vsub.f32 0.0, %v5013
      %v5118 = vsub.f32 0.0, %v5014
      %v5119 = vsub.f32 0.0, %v5015
      %v5120 = vsub.f32 0.0, %v5016
      %v5121 = vsub.f32 0.0, %v5017
      %v5122 = vmul.f32 %v5114, %v5010
      %v5123 = vmul.f32 %v5115, %v5011
      %v5124 = vmul.f32 %v5116, %v5012
      %v5125 = vmul.f32 %v5117, %v5013
      %v5126 = vmul.f32 %v5118, %v5014
      %v5127 = vmul.f32 %v5119, %v5015
      %v5128 = vmul.f32 %v5120, %v5016
      %v5129 = vmul.f32 %v5121, %v5017
      %v5130 = vmul.f32 %v5122, 1.442695
      %v5131 = vpow.pop %v5130
      %v5132 = vmul.f32 %v5123, 1.442695
      %v5133 = vpow.pop %v5132
      %v5134 = vmul.f32 %v5124, 1.442695
      %v5135 = vpow.pop %v5134
      %v5136 = vmul.f32 %v5125, 1.442695
      %v5137 = vpow.pop %v5136
      %v5138 = vmul.f32 %v5126, 1.442695
      %v5139 = vpow.pop %v5138
      %v5140 = vmul.f32 %v5127, 1.442695
      %v5141 = vpow.pop %v5140
      %v5142 = vmul.f32 %v5128, 1.442695
      %v5143 = vpow.pop %v5142
      %v5144 = vmul.f32 %v5129, 1.442695
      %v5145 = vpow.pop %v5144
      %v5146 = vmul.f32 %v5106, %v5131
      %v5147 = vmul.f32 %v5107, %v5133
      %v5148 = vmul.f32 %v5108, %v5135
      %v5149 = vmul.f32 %v5109, %v5137
      %v5150 = vmul.f32 %v5110, %v5139
      %v5151 = vmul.f32 %v5111, %v5141
      %v5152 = vmul.f32 %v5112, %v5143
      %v5153 = vmul.f32 %v5113, %v5145
      %v5154 = vsub.f32 1.0, %v5146
      %v5155 = vsub.f32 1.0, %v5147
      %v5156 = vsub.f32 1.0, %v5148
      %v5157 = vsub.f32 1.0, %v5149
      %v5158 = vsub.f32 1.0, %v5150
      %v5159 = vsub.f32 1.0, %v5151
      %v5160 = vsub.f32 1.0, %v5152
      %v5161 = vsub.f32 1.0, %v5153
      %v5162 = vmul.f32 %v5002, %v5154
      %v5163 = vmul.f32 %v5003, %v5155
      %v5164 = vmul.f32 %v5004, %v5156
      %v5165 = vmul.f32 %v5005, %v5157
      %v5166 = vmul.f32 %v5006, %v5158
      %v5167 = vmul.f32 %v5007, %v5159
      %v5168 = vmul.f32 %v5008, %v5160
      %v5169 = vmul.f32 %v5009, %v5161
      %v5170 = vadd.f32 %v5162, 1.0
      %v5171 = vadd.f32 %v5163, 1.0
      %v5172 = vadd.f32 %v5164, 1.0
      %v5173 = vadd.f32 %v5165, 1.0
      %v5174 = vadd.f32 %v5166, 1.0
      %v5175 = vadd.f32 %v5167, 1.0
      %v5176 = vadd.f32 %v5168, 1.0
      %v5177 = vadd.f32 %v5169, 1.0
      %v5178 = vmul.f32 %v4978, %v5170
      %v5179 = vmul.f32 %v4979, %v5171
      %v5180 = vmul.f32 %v4980, %v5172
      %v5181 = vmul.f32 %v4981, %v5173
      %v5182 = vmul.f32 %v4982, %v5174
      %v5183 = vmul.f32 %v4983, %v5175
      %v5184 = vmul.f32 %v4984, %v5176
      %v5185 = vmul.f32 %v4985, %v5177
      %s5186 = scalar_lea.vmem %s170, 128
      %5187 = vst [vmem:[%s5186] sm:$0xff] %v5178
      %5188 = vst [vmem:[%s5186 + $0x8] sm:$0xff] %v5179
      %5189 = vst [vmem:[%s5186 + $0x10] sm:$0xff] %v5180
      %5190 = vst [vmem:[%s5186 + $0x18] sm:$0xff] %v5181
      %5191 = vst [vmem:[%s5186 + $0x20] sm:$0xff] %v5182
      %5192 = vst [vmem:[%s5186 + $0x28] sm:$0xff] %v5183
      %5193 = vst [vmem:[%s5186 + $0x30] sm:$0xff] %v5184
      %5194 = vst [vmem:[%s5186 + $0x38] sm:$0xff] %v5185
      %v5195 = vld [vmem:[%s2385] sm:$0xff]
      %v5196 = vld [vmem:[%s2385 + $0x8] sm:$0xff]
      %v5197 = vld [vmem:[%s2385 + $0x10] sm:$0xff]
      %v5198 = vld [vmem:[%s2385 + $0x18] sm:$0xff]
      %v5199 = vld [vmem:[%s2385 + $0x20] sm:$0xff]
      %v5200 = vld [vmem:[%s2385 + $0x28] sm:$0xff]
      %v5201 = vld [vmem:[%s2385 + $0x30] sm:$0xff]
      %v5202 = vld [vmem:[%s2385 + $0x38] sm:$0xff]
      %v5203 = vadd.f32 %v5195, %v4503
      %v5204 = vadd.f32 %v5196, %v4503
      %v5205 = vadd.f32 %v5197, %v4503
      %v5206 = vadd.f32 %v5198, %v4503
      %v5207 = vadd.f32 %v5199, %v4503
      %v5208 = vadd.f32 %v5200, %v4503
      %v5209 = vadd.f32 %v5201, %v4503
      %v5210 = vadd.f32 %v5202, %v4503
      %v5211 = vmul.f32 %v5203, 0.5
      %v5212 = vmul.f32 %v5204, 0.5
      %v5213 = vmul.f32 %v5205, 0.5
      %v5214 = vmul.f32 %v5206, 0.5
      %v5215 = vmul.f32 %v5207, 0.5
      %v5216 = vmul.f32 %v5208, 0.5
      %v5217 = vmul.f32 %v5209, 0.5
      %v5218 = vmul.f32 %v5210, 0.5
      %v5219 = vmul.f32 %v5203, 0.70710677
      %v5220 = vmul.f32 %v5204, 0.70710677
      %v5221 = vmul.f32 %v5205, 0.70710677
      %v5222 = vmul.f32 %v5206, 0.70710677
      %v5223 = vmul.f32 %v5207, 0.70710677
      %v5224 = vmul.f32 %v5208, 0.70710677
      %v5225 = vmul.f32 %v5209, 0.70710677
      %v5226 = vmul.f32 %v5210, 0.70710677
      %vm5227 = vcmp.ge.f32.partialorder %v5219, 0.0
      %vm5228 = vcmp.ge.f32.partialorder %v5220, 0.0
      %vm5229 = vcmp.ge.f32.partialorder %v5221, 0.0
      %vm5230 = vcmp.ge.f32.partialorder %v5222, 0.0
      %vm5231 = vcmp.ge.f32.partialorder %v5223, 0.0
      %vm5232 = vcmp.ge.f32.partialorder %v5224, 0.0
      %vm5233 = vcmp.ge.f32.partialorder %v5225, 0.0
      %vm5234 = vcmp.ge.f32.partialorder %v5226, 0.0
      %v5235 = vsel %vm5227, 1.0, -1.0
      %v5236 = vsel %vm5228, 1.0, -1.0
      %v5237 = vsel %vm5229, 1.0, -1.0
      %v5238 = vsel %vm5230, 1.0, -1.0
      %v5239 = vsel %vm5231, 1.0, -1.0
      %v5240 = vsel %vm5232, 1.0, -1.0
      %v5241 = vsel %vm5233, 1.0, -1.0
      %v5242 = vsel %vm5234, 1.0, -1.0
      %v5243 = vand.u32 2147483647, %v5219
      %v5244 = vand.u32 2147483647, %v5220
      %v5245 = vand.u32 2147483647, %v5221
      %v5246 = vand.u32 2147483647, %v5222
      %v5247 = vand.u32 2147483647, %v5223
      %v5248 = vand.u32 2147483647, %v5224
      %v5249 = vand.u32 2147483647, %v5225
      %v5250 = vand.u32 2147483647, %v5226
      %v5251 = vmul.f32 %v5243, 0.3275911
      %v5252 = vmul.f32 %v5244, 0.3275911
      %v5253 = vmul.f32 %v5245, 0.3275911
      %v5254 = vmul.f32 %v5246, 0.3275911
      %v5255 = vmul.f32 %v5247, 0.3275911
      %v5256 = vmul.f32 %v5248, 0.3275911
      %v5257 = vmul.f32 %v5249, 0.3275911
      %v5258 = vmul.f32 %v5250, 0.3275911
      %v5259 = vadd.f32 %v5251, 1.0
      %v5260 = vadd.f32 %v5252, 1.0
      %v5261 = vadd.f32 %v5253, 1.0
      %v5262 = vadd.f32 %v5254, 1.0
      %v5263 = vadd.f32 %v5255, 1.0
      %v5264 = vadd.f32 %v5256, 1.0
      %v5265 = vadd.f32 %v5257, 1.0
      %v5266 = vadd.f32 %v5258, 1.0
      %v5267 = vrcp.pop %v5259
      %v5268 = vrcp.pop %v5260
      %v5269 = vrcp.pop %v5261
      %v5270 = vrcp.pop %v5262
      %v5271 = vrcp.pop %v5263
      %v5272 = vrcp.pop %v5264
      %v5273 = vrcp.pop %v5265
      %v5274 = vrcp.pop %v5266
      %v5275 = vmul.f32 %v5267, 1.0614054
      %v5276 = vmul.f32 %v5268, 1.0614054
      %v5277 = vmul.f32 %v5269, 1.0614054
      %v5278 = vmul.f32 %v5270, 1.0614054
      %v5279 = vmul.f32 %v5271, 1.0614054
      %v5280 = vmul.f32 %v5272, 1.0614054
      %v5281 = vmul.f32 %v5273, 1.0614054
      %v5282 = vmul.f32 %v5274, 1.0614054
      %v5283 = vadd.f32 %v5275, -1.4531521
      %v5284 = vadd.f32 %v5276, -1.4531521
      %v5285 = vadd.f32 %v5277, -1.4531521
      %v5286 = vadd.f32 %v5278, -1.4531521
      %v5287 = vadd.f32 %v5279, -1.4531521
      %v5288 = vadd.f32 %v5280, -1.4531521
      %v5289 = vadd.f32 %v5281, -1.4531521
      %v5290 = vadd.f32 %v5282, -1.4531521
      %v5291 = vmul.f32 %v5283, %v5267
      %v5292 = vmul.f32 %v5284, %v5268
      %v5293 = vmul.f32 %v5285, %v5269
      %v5294 = vmul.f32 %v5286, %v5270
      %v5295 = vmul.f32 %v5287, %v5271
      %v5296 = vmul.f32 %v5288, %v5272
      %v5297 = vmul.f32 %v5289, %v5273
      %v5298 = vmul.f32 %v5290, %v5274
      %v5299 = vadd.f32 %v5291, 1.4214138
      %v5300 = vadd.f32 %v5292, 1.4214138
      %v5301 = vadd.f32 %v5293, 1.4214138
      %v5302 = vadd.f32 %v5294, 1.4214138
      %v5303 = vadd.f32 %v5295, 1.4214138
      %v5304 = vadd.f32 %v5296, 1.4214138
      %v5305 = vadd.f32 %v5297, 1.4214138
      %v5306 = vadd.f32 %v5298, 1.4214138
      %v5307 = vmul.f32 %v5299, %v5267
      %v5308 = vmul.f32 %v5300, %v5268
      %v5309 = vmul.f32 %v5301, %v5269
      %v5310 = vmul.f32 %v5302, %v5270
      %v5311 = vmul.f32 %v5303, %v5271
      %v5312 = vmul.f32 %v5304, %v5272
      %v5313 = vmul.f32 %v5305, %v5273
      %v5314 = vmul.f32 %v5306, %v5274
      %v5315 = vadd.f32 %v5307, -0.28449672
      %v5316 = vadd.f32 %v5308, -0.28449672
      %v5317 = vadd.f32 %v5309, -0.28449672
      %v5318 = vadd.f32 %v5310, -0.28449672
      %v5319 = vadd.f32 %v5311, -0.28449672
      %v5320 = vadd.f32 %v5312, -0.28449672
      %v5321 = vadd.f32 %v5313, -0.28449672
      %v5322 = vadd.f32 %v5314, -0.28449672
      %v5323 = vmul.f32 %v5315, %v5267
      %v5324 = vmul.f32 %v5316, %v5268
      %v5325 = vmul.f32 %v5317, %v5269
      %v5326 = vmul.f32 %v5318, %v5270
      %v5327 = vmul.f32 %v5319, %v5271
      %v5328 = vmul.f32 %v5320, %v5272
      %v5329 = vmul.f32 %v5321, %v5273
      %v5330 = vmul.f32 %v5322, %v5274
      %v5331 = vadd.f32 %v5323, 0.2548296
      %v5332 = vadd.f32 %v5324, 0.2548296
      %v5333 = vadd.f32 %v5325, 0.2548296
      %v5334 = vadd.f32 %v5326, 0.2548296
      %v5335 = vadd.f32 %v5327, 0.2548296
      %v5336 = vadd.f32 %v5328, 0.2548296
      %v5337 = vadd.f32 %v5329, 0.2548296
      %v5338 = vadd.f32 %v5330, 0.2548296
      %v5339 = vmul.f32 %v5331, %v5267
      %v5340 = vmul.f32 %v5332, %v5268
      %v5341 = vmul.f32 %v5333, %v5269
      %v5342 = vmul.f32 %v5334, %v5270
      %v5343 = vmul.f32 %v5335, %v5271
      %v5344 = vmul.f32 %v5336, %v5272
      %v5345 = vmul.f32 %v5337, %v5273
      %v5346 = vmul.f32 %v5338, %v5274
      %v5347 = vsub.f32 0.0, %v5243
      %v5348 = vsub.f32 0.0, %v5244
      %v5349 = vsub.f32 0.0, %v5245
      %v5350 = vsub.f32 0.0, %v5246
      %v5351 = vsub.f32 0.0, %v5247
      %v5352 = vsub.f32 0.0, %v5248
      %v5353 = vsub.f32 0.0, %v5249
      %v5354 = vsub.f32 0.0, %v5250
      %v5355 = vmul.f32 %v5347, %v5243
      %v5356 = vmul.f32 %v5348, %v5244
      %v5357 = vmul.f32 %v5349, %v5245
      %v5358 = vmul.f32 %v5350, %v5246
      %v5359 = vmul.f32 %v5351, %v5247
      %v5360 = vmul.f32 %v5352, %v5248
      %v5361 = vmul.f32 %v5353, %v5249
      %v5362 = vmul.f32 %v5354, %v5250
      %v5363 = vmul.f32 %v5355, 1.442695
      %v5364 = vpow.pop %v5363
      %v5365 = vmul.f32 %v5356, 1.442695
      %v5366 = vpow.pop %v5365
      %v5367 = vmul.f32 %v5357, 1.442695
      %v5368 = vpow.pop %v5367
      %v5369 = vmul.f32 %v5358, 1.442695
      %v5370 = vpow.pop %v5369
      %v5371 = vmul.f32 %v5359, 1.442695
      %v5372 = vpow.pop %v5371
      %v5373 = vmul.f32 %v5360, 1.442695
      %v5374 = vpow.pop %v5373
      %v5375 = vmul.f32 %v5361, 1.442695
      %v5376 = vpow.pop %v5375
      %v5377 = vmul.f32 %v5362, 1.442695
      %v5378 = vpow.pop %v5377
      %v5379 = vmul.f32 %v5339, %v5364
      %v5380 = vmul.f32 %v5340, %v5366
      %v5381 = vmul.f32 %v5341, %v5368
      %v5382 = vmul.f32 %v5342, %v5370
      %v5383 = vmul.f32 %v5343, %v5372
      %v5384 = vmul.f32 %v5344, %v5374
      %v5385 = vmul.f32 %v5345, %v5376
      %v5386 = vmul.f32 %v5346, %v5378
      %v5387 = vsub.f32 1.0, %v5379
      %v5388 = vsub.f32 1.0, %v5380
      %v5389 = vsub.f32 1.0, %v5381
      %v5390 = vsub.f32 1.0, %v5382
      %v5391 = vsub.f32 1.0, %v5383
      %v5392 = vsub.f32 1.0, %v5384
      %v5393 = vsub.f32 1.0, %v5385
      %v5394 = vsub.f32 1.0, %v5386
      %v5395 = vmul.f32 %v5235, %v5387
      %v5396 = vmul.f32 %v5236, %v5388
      %v5397 = vmul.f32 %v5237, %v5389
      %v5398 = vmul.f32 %v5238, %v5390
      %v5399 = vmul.f32 %v5239, %v5391
      %v5400 = vmul.f32 %v5240, %v5392
      %v5401 = vmul.f32 %v5241, %v5393
      %v5402 = vmul.f32 %v5242, %v5394
      %v5403 = vadd.f32 %v5395, 1.0
      %v5404 = vadd.f32 %v5396, 1.0
      %v5405 = vadd.f32 %v5397, 1.0
      %v5406 = vadd.f32 %v5398, 1.0
      %v5407 = vadd.f32 %v5399, 1.0
      %v5408 = vadd.f32 %v5400, 1.0
      %v5409 = vadd.f32 %v5401, 1.0
      %v5410 = vadd.f32 %v5402, 1.0
      %v5411 = vmul.f32 %v5211, %v5403
      %v5412 = vmul.f32 %v5212, %v5404
      %v5413 = vmul.f32 %v5213, %v5405
      %v5414 = vmul.f32 %v5214, %v5406
      %v5415 = vmul.f32 %v5215, %v5407
      %v5416 = vmul.f32 %v5216, %v5408
      %v5417 = vmul.f32 %v5217, %v5409
      %v5418 = vmul.f32 %v5218, %v5410
      %s5419 = scalar_lea.vmem %s170, 192
      %5420 = vst [vmem:[%s5419] sm:$0xff] %v5411
      %5421 = vst [vmem:[%s5419 + $0x8] sm:$0xff] %v5412
      %5422 = vst [vmem:[%s5419 + $0x10] sm:$0xff] %v5413
      %5423 = vst [vmem:[%s5419 + $0x18] sm:$0xff] %v5414
      %5424 = vst [vmem:[%s5419 + $0x20] sm:$0xff] %v5415
      %5425 = vst [vmem:[%s5419 + $0x28] sm:$0xff] %v5416
      %5426 = vst [vmem:[%s5419 + $0x30] sm:$0xff] %v5417
      %5427 = vst [vmem:[%s5419 + $0x38] sm:$0xff] %v5418
      %p5428 = scmp.lt.s32.totalorder %s14, 1
      %s5429 = scalar_select %p5428, %s14, 1
      %s5430 = smul.addr %s5429, 32
      %s5431 = smul.addr %s5430, 8
      %s5432 = scalar_lea.vmem %s3, %s5431
      // Predicated region
      $region33: #{upsample_block_forward.1} parent=31 // pred_check
        %p5433 = pneg %p100
      $region34: #{upsample_block_forward.1} parent=31 // pred_check_branch
        %5435 = sbr.rel (%p5433) target = $region36
      $region35: #{upsample_block_forward.1} parent=31 // pred_region
        _
      $region36: #{upsample_block_forward.1} parent=31 // pred_fallthru
        _
    $region32: #{upsample_block_forward.1} parent=5 // pred_fallthru
      _
    %p5436 = scmp.le.s32.totalorder 2, %s9
    // Predicated region
    $region37: #{upsample_block_forward.1} parent=5 // pred_check
      %p5437 = pneg %p5436
    $region38: #{upsample_block_forward.1} parent=5 // pred_check_branch
      %5439 = sbr.rel (%p5437) target = $region40
    $region39: #{upsample_block_forward.1} parent=5 // pred_region
      %s5440 = ssub.s32 %s9, 2
      // Predicated region
      $region41: #{upsample_block_forward.1} parent=39 // pred_check
        %p5441 = pneg %p106
      $region42: #{upsample_block_forward.1} parent=39 // pred_check_branch
        %5443 = sbr.rel (%p5441) target = $region44
      $region43: #{upsample_block_forward.1} parent=39 // pred_region
        %p5444 = scmp.lt.s32.totalorder %s15, 1
        %s5445 = scalar_select %p5444, %s15, 1
        %s5446 = smul.addr %s5445, 32
        %s5447 = smul.addr %s5446, 8
        %s5448 = scalar_lea.vmem %s3, %s5447
      $region44: #{upsample_block_forward.1} parent=39 // pred_fallthru
        _
    $region40: #{upsample_block_forward.1} parent=5 // pred_fallthru
      _
  $region6: #{upsample_block_forward.1} parent=0 // loop_footer
    %s13 = sadd.s32 1, %s9
  $region7: #{upsample_block_forward.1} parent=0 // loop_footer_branch
    %8 = sbr.rel target = $region3
  $region8: #{upsample_block_forward.1} parent=0 // loop_exit
    _

</llo_original>
